<compile_context>
chip_gen: v7x
topology: tpu7x:2x2x1
jax: 0.10.0
libtpu: 0.0.40
codegen_flags: <defaults>
</compile_context>

<pallas_src>
import numpy as np
import jax
import jax.numpy as jnp
from jax.experimental import pallas as pl
from jax.experimental.pallas import tpu as pltpu

K_FIRST = 7      # first conv kernel size
K_ENC = 3        # encoder conv kernel size
DIL = 3          # encoder conv dilation


def _round_up(x, m):
    return (x + m - 1) // m * m


# ----------------------------------------------------------------------------
# Fused MappingNet kernel: one grid step == TB batch elements, all layers fused
# ----------------------------------------------------------------------------
def _make_mapping_kernel(M0, descriptor_nc, num_layers):
    D = descriptor_nc

    def kernel(*refs):
        # refs = (slab, w_first, b_first, [w_i, b_i]*layers, pool, out)
        slab_ref, wf_ref, bf_ref = refs[0], refs[1], refs[2]
        enc_refs = refs[3:3 + 2 * num_layers]
        pool_ref = refs[3 + 2 * num_layers]
        o_ref = refs[-1]

        # ---- first conv (k=7): ONE MXU matmul, contraction = 7*coeff_nc ----
        Lc = M0 - (K_FIRST - 1)
        out = jnp.dot(slab_ref[0:Lc, :], wf_ref[...],
                      preferred_element_type=jnp.float32) + bf_ref[...]

        # ---- encoder blocks: LeakyReLU -> dilated conv -> residual crop ----
        for i in range(num_layers):
            w_ref = enc_refs[2 * i]
            b_ref = enc_refs[2 * i + 1]
            h = jnp.where(out >= 0, out, 0.1 * out)          # LeakyReLU(0.1), f32
            Lo = Lc - DIL * (K_ENC - 1)
            acc = None
            for k in range(K_ENC):                           # 3 MXU matmuls, K=D
                s = k * DIL
                tap = jnp.dot(h[s:s + Lo, :].astype(jnp.bfloat16), w_ref[k],
                              preferred_element_type=jnp.float32)
                acc = tap if acc is None else acc + tap
            # residual uses the *pre-activation* input, cropped [3:-3] in time
            out = acc + b_ref[...] + out[DIL:DIL + Lo, :]
            Lc = Lo

        # ---- AdaptiveAvgPool1d(1): one matmul with the averaging/mask matrix
        o_ref[...] = jnp.dot(pool_ref[...], out,
                             preferred_element_type=jnp.float32)

    return kernel


# ----------------------------------------------------------------------------
# One-time parameter repack (call OUTSIDE jit; hoists transposes / bf16 casts)
# ----------------------------------------------------------------------------
def prepare_params(params):
    """torch-layout Conv1d params -> kernel-layout (bf16 weights, f32 biases)."""
    D = params['first_b'].shape[0]
    cin = params['first_w'].shape[1]
    # (D, Cin, 7) -> (7, Cin, D) -> (7*Cin, D): matches the im2col slab layout
    wf = jnp.transpose(params['first_w'], (2, 1, 0)).reshape(K_FIRST * cin, D)
    return {
        'first_w': wf.astype(jnp.bfloat16),                              # (7*Cin, D)
        'first_b': params['first_b'].reshape(1, D).astype(jnp.float32),  # (1, D)
        'enc_w': [jnp.transpose(p['w'], (2, 1, 0)).astype(jnp.bfloat16)  # (3, D, D)
                  for p in params['enc']],
        'enc_b': [p['b'].reshape(1, D).astype(jnp.float32)               # (1, D)
                  for p in params['enc']],
    }


# ----------------------------------------------------------------------------
# Forward wrapper
# ----------------------------------------------------------------------------
def mapping_net_forward(prepared, input_3dmm, *, tb=8):
    """input_3dmm: (B, coeff_nc, T) f32  ->  (B, descriptor_nc, 1) f32."""
    B, coeff_nc, T = input_3dmm.shape
    D = prepared['first_b'].shape[1]
    num_layers = len(prepared['enc_w'])

    rf = (K_FIRST - 1) + num_layers * DIL * (K_ENC - 1)    # total length shrink
    assert T > rf, f"T={T} too short for MappingNet with layer={num_layers}"
    Lf = T - rf                                            # valid length per element

    TB = max(1, tb)                  # batch elements per grid step
    B_pad = _round_up(B, TB)
    T_pad = _round_up(T, 8)          # sublane-align each batch stripe
    M0 = TB * T_pad                  # matmul M rows per grid step
    R = B_pad * T_pad                # total slab rows
    Lc_final = M0 - rf
    num_tiles = B_pad // TB

    # --- (time, channel) layout with batch folded into the time / M axis -----
    x_t = jnp.transpose(input_3dmm, (0, 2, 1)).astype(jnp.float32)   # (B, T, C)
    x_t = jnp.pad(x_t, ((0, B_pad - B), (0, T_pad - T), (0, 0)))
    x2 = x_t.reshape(R, coeff_nc)

    # --- tiny im2col slab for the 7-tap first conv (ONE matmul in-kernel) ----
    x2e = jnp.pad(x2, ((0, K_FIRST - 1), (0, 0)))
    slab = jnp.concatenate([x2e[k:k + R, :] for k in range(K_FIRST)],
                           axis=1).astype(jnp.bfloat16)              # (R, 7*C)

    # --- pooling matrix: averages the Lf valid rows of each batch element ----
    # (zeros mask the garbage rows at element boundaries / zero padding)
    pool = np.zeros((TB, Lc_final), np.float32)
    for j in range(TB):
        pool[j, j * T_pad: j * T_pad + Lf] = 1.0 / Lf
    pool = jnp.asarray(pool)

    kernel = _make_mapping_kernel(M0, D, num_layers)

    in_specs = [
        pl.BlockSpec((M0, K_FIRST * coeff_nc), lambda b: (b, 0)),    # im2col slab
        pl.BlockSpec((K_FIRST * coeff_nc, D), lambda b: (0, 0)),     # first conv W
        pl.BlockSpec((1, D), lambda b: (0, 0)),                      # first conv b
    ]
    flat_args = [slab, prepared['first_w'], prepared['first_b']]
    for w, bvec in zip(prepared['enc_w'], prepared['enc_b']):
        in_specs.append(pl.BlockSpec((K_ENC, D, D), lambda b: (0, 0, 0)))
        in_specs.append(pl.BlockSpec((1, D), lambda b: (0, 0)))
        flat_args += [w, bvec]
    in_specs.append(pl.BlockSpec((TB, Lc_final), lambda b: (0, 0)))  # pooling mat
    flat_args.append(pool)

    # --- advisory cost estimate (helps XLA schedule around the custom call) --
    Lc = M0 - (K_FIRST - 1)
    flops = 2 * Lc * (K_FIRST * coeff_nc) * D
    for _ in range(num_layers):
        Lc -= DIL * (K_ENC - 1)
        flops += 2 * Lc * (K_ENC * D) * D
    flops += 2 * TB * Lc_final * D
    flops *= num_tiles
    param_bytes = (prepared['first_w'].size * 2 + prepared['first_b'].size * 4
                   + sum(int(w.size) * 2 for w in prepared['enc_w'])
                   + sum(int(b.size) * 4 for b in prepared['enc_b']))
    bytes_accessed = int(slab.size) * 2 + int(pool.size) * 4 + B_pad * D * 4 \
                     + param_bytes
    cost = pl.CostEstimate(flops=int(flops), transcendentals=0,
                           bytes_accessed=int(bytes_accessed))

    # --- VMEM budget: raise the scoped limit only when weights/tiles get big --
    vmem_est = (2 * (M0 * K_FIRST * coeff_nc * 2 + TB * D * 4)   # pipelined blocks
                + 2 * param_bytes                                # dbl-buffered weights
                + TB * Lc_final * 4
                + 6 * M0 * D * 4)                                # live f32 activations
    vmem_limit = None
    if vmem_est > (24 << 20):
        vmem_limit = int(min(max(2 * vmem_est, 32 << 20), 100 << 20))
    # NOTE: for production descriptor_nc (256-1024) the grid-invariant weight
    # specs can additionally use pipeline_mode=pl.Buffered(1) to halve their
    # VMEM footprint on v7x (64 MiB physical VMEM).

    out = pl.pallas_call(
        kernel,
        out_shape=jax.ShapeDtypeStruct((B_pad, D), jnp.float32),
        grid_spec=pltpu.PrefetchScalarGridSpec(
            num_scalar_prefetch=0,
            grid=(num_tiles,),
            in_specs=in_specs,
            out_specs=pl.BlockSpec((TB, D), lambda b: (b, 0))),
        compiler_params=pltpu.CompilerParams(
            dimension_semantics=("parallel",),        # batch tiles across TCs (v7x)
            vmem_limit_bytes=vmem_limit),
        cost_estimate=cost,
    )(*flat_args)

    return out[:B, :, None]            # (B, D, 1) torch layout


mapping_net_forward_jit = jax.jit(mapping_net_forward, static_argnames=("tb",))


# ----------------------------------------------------------------------------
# Pure-JAX reference (matches the torch module) for a correctness check
# ----------------------------------------------------------------------------
def mapping_net_reference(params, x):
    def conv1d(x, w, b, dilation=1):
        out = jax.lax.conv_general_dilated(
            x, w, window_strides=(1,), padding='VALID',
            rhs_dilation=(dilation,),
            dimension_numbers=('NCH', 'OIH', 'NCH'),
            precision=jax.lax.Precision.HIGHEST)
        return out + b[None, :, None]

    out = conv1d(x, params['first_w'], params['first_b'])
    for p in params['enc']:
        h = jnp.where(out >= 0, out, 0.1 * out)              # LeakyReLU(0.1)
        out = conv1d(h, p['w'], p['b'], dilation=3) + out[:, :, 3:-3]
    return jnp.mean(out, axis=2, keepdims=True)              # AdaptiveAvgPool1d(1)


# ----------------------------------------------------------------------------
# Deterministic parameter init (torch Conv1d default: U(-1/sqrt(fan_in), ...))
# ----------------------------------------------------------------------------
def init_mapping_net(key, coeff_nc, descriptor_nc, layer):
    def conv_init(k, cout, cin, ksz):
        kw, kb = jax.random.split(k)
        s = 1.0 / np.sqrt(cin * ksz)
        return (jax.random.uniform(kw, (cout, cin, ksz), jnp.float32, -s, s),
                jax.random.uniform(kb, (cout,), jnp.float32, -s, s))

    keys = jax.random.split(key, layer + 1)
    fw, fb = conv_init(keys[0], descriptor_nc, coeff_nc, 7)
    enc = []
    for i in range(layer):
        w, b = conv_init(keys[i + 1], descriptor_nc, descriptor_nc, 3)
        enc.append({'w': w, 'b': b})
    return {'first_w': fw, 'first_b': fb, 'enc': enc}


# ----------------------------------------------------------------------------
# main
# ----------------------------------------------------------------------------
if __name__ == "__main__":
    # D multiple of 128 -> lane-dense stores / full MXU columns (perf review).
    coeff_nc, descriptor_nc, layer = 16, 128, 3
    B, T = 13, 27        # T >= 7 + 6*layer; B=13 exercises batch-tile padding

    key = jax.random.PRNGKey(0)
    k_x, k_p = jax.random.split(key)
    input_3dmm = jax.random.normal(k_x, (B, coeff_nc, T), jnp.float32)
    params = init_mapping_net(k_p, coeff_nc, descriptor_nc, layer)

    prepared = prepare_params(params)      # one-time weight repack, outside jit

    out = mapping_net_forward_jit(prepared, input_3dmm)
    out = jax.block_until_ready(out)
    assert out.shape == (B, descriptor_nc, 1)

    ref = jax.block_until_ready(mapping_net_reference(params, input_3dmm))
    # bf16 MXU operands (per perf review) -> ~1e-2-level agreement vs f32 ref.
    np.testing.assert_allclose(np.asarray(out), np.asarray(ref),
                               rtol=2e-2, atol=2e-2)
    print("KERNEL_OK")
</pallas_src>

<mosaic_0001>
module attributes {stable_mosaic.version = 11 : i64} {
  func.func @kernel(%arg0: i32, %arg1: memref<256x112xbf16, #tpu.memory_space<vmem>>, %arg2: memref<112x128xbf16, #tpu.memory_space<vmem>>, %arg3: memref<1x128xf32, #tpu.memory_space<vmem>>, %arg4: memref<3x128x128xbf16, #tpu.memory_space<vmem>>, %arg5: memref<1x128xf32, #tpu.memory_space<vmem>>, %arg6: memref<3x128x128xbf16, #tpu.memory_space<vmem>>, %arg7: memref<1x128xf32, #tpu.memory_space<vmem>>, %arg8: memref<3x128x128xbf16, #tpu.memory_space<vmem>>, %arg9: memref<1x128xf32, #tpu.memory_space<vmem>>, %arg10: memref<8x232xf32, #tpu.memory_space<vmem>>, %arg11: memref<8x128xf32, #tpu.memory_space<vmem>>) attributes {dimension_semantics = [#tpu.dimension_semantics<parallel>], iteration_bounds = array<i64: 2>, scalar_prefetch = 0 : i64, scratch_operands = 0 : i64, tpu.core_type = #tpu.core_type<tc>, window_params = [{transform_indices = @transform_0, window_bounds = array<i64: 256, 112>}, {pipeline_mode = #tpu.pipeline_mode<synchronous>, transform_indices = @transform_1, window_bounds = array<i64: 112, 128>}, {pipeline_mode = #tpu.pipeline_mode<synchronous>, transform_indices = @transform_2, window_bounds = array<i64: 1, 128>}, {pipeline_mode = #tpu.pipeline_mode<synchronous>, transform_indices = @transform_3, window_bounds = array<i64: 3, 128, 128>}, {pipeline_mode = #tpu.pipeline_mode<synchronous>, transform_indices = @transform_4, window_bounds = array<i64: 1, 128>}, {pipeline_mode = #tpu.pipeline_mode<synchronous>, transform_indices = @transform_5, window_bounds = array<i64: 3, 128, 128>}, {pipeline_mode = #tpu.pipeline_mode<synchronous>, transform_indices = @transform_6, window_bounds = array<i64: 1, 128>}, {pipeline_mode = #tpu.pipeline_mode<synchronous>, transform_indices = @transform_7, window_bounds = array<i64: 3, 128, 128>}, {pipeline_mode = #tpu.pipeline_mode<synchronous>, transform_indices = @transform_8, window_bounds = array<i64: 1, 128>}, {pipeline_mode = #tpu.pipeline_mode<synchronous>, transform_indices = @transform_9, window_bounds = array<i64: 8, 232>}, {transform_indices = @transform_10, window_bounds = array<i64: 8, 128>}]} {
    %c0 = arith.constant 0 : index
    %c0_0 = arith.constant 0 : index
    %0 = vector.load %arg1[%c0, %c0_0] : memref<256x112xbf16, #tpu.memory_space<vmem>>, vector<250x112xbf16>
    %c0_1 = arith.constant 0 : index
    %c0_2 = arith.constant 0 : index
    %1 = vector.load %arg2[%c0_1, %c0_2] : memref<112x128xbf16, #tpu.memory_space<vmem>>, vector<112x128xbf16>
    %cst = arith.constant dense<0.000000e+00> : vector<250x128xf32>
    %2 = tpu.matmul %0, %1, %cst {dimension_numbers = #tpu.dot_dimension_numbers<[1], [0], [0], [1], [0, 0, 1, 1], [], []>} : vector<250x112xbf16>, vector<112x128xbf16>, vector<250x128xf32> -> vector<250x128xf32>
    %c0_3 = arith.constant 0 : index
    %c0_4 = arith.constant 0 : index
    %3 = vector.load %arg3[%c0_3, %c0_4] : memref<1x128xf32, #tpu.memory_space<vmem>>, vector<1x128xf32>
    %4 = vector.broadcast %3 : vector<1x128xf32> to vector<250x128xf32>
    %5 = arith.addf %2, %4 : vector<250x128xf32>
    %cst_5 = arith.constant 0.000000e+00 : f32
    %6 = vector.broadcast %cst_5 : f32 to vector<250x128xf32>
    %7 = arith.cmpf oge, %5, %6 : vector<250x128xf32>
    %cst_6 = arith.constant 1.000000e-01 : f32
    %8 = vector.broadcast %cst_6 : f32 to vector<250x128xf32>
    %9 = arith.mulf %8, %5 : vector<250x128xf32>
    %10 = arith.select %7, %5, %9 : vector<250x128xi1>, vector<250x128xf32>
    %11 = vector.extract_strided_slice %10 {offsets = [0, 0], sizes = [244, 128], strides = [1, 1]} : vector<250x128xf32> to vector<244x128xf32>
    %12 = arith.truncf %11 : vector<244x128xf32> to vector<244x128xbf16>
    %c0_7 = arith.constant 0 : index
    %c0_8 = arith.constant 0 : index
    %c0_9 = arith.constant 0 : index
    %13 = vector.load %arg4[%c0_7, %c0_8, %c0_9] : memref<3x128x128xbf16, #tpu.memory_space<vmem>>, vector<1x128x128xbf16>
    %14 = vector.shape_cast %13 : vector<1x128x128xbf16> to vector<128x128xbf16>
    %cst_10 = arith.constant dense<0.000000e+00> : vector<244x128xf32>
    %15 = tpu.matmul %12, %14, %cst_10 {dimension_numbers = #tpu.dot_dimension_numbers<[1], [0], [0], [1], [0, 0, 1, 1], [], []>} : vector<244x128xbf16>, vector<128x128xbf16>, vector<244x128xf32> -> vector<244x128xf32>
    %16 = vector.extract_strided_slice %10 {offsets = [3, 0], sizes = [244, 128], strides = [1, 1]} : vector<250x128xf32> to vector<244x128xf32>
    %17 = arith.truncf %16 : vector<244x128xf32> to vector<244x128xbf16>
    %c1 = arith.constant 1 : index
    %c0_11 = arith.constant 0 : index
    %c0_12 = arith.constant 0 : index
    %18 = vector.load %arg4[%c1, %c0_11, %c0_12] : memref<3x128x128xbf16, #tpu.memory_space<vmem>>, vector<1x128x128xbf16>
    %19 = vector.shape_cast %18 : vector<1x128x128xbf16> to vector<128x128xbf16>
    %cst_13 = arith.constant dense<0.000000e+00> : vector<244x128xf32>
    %20 = tpu.matmul %17, %19, %cst_13 {dimension_numbers = #tpu.dot_dimension_numbers<[1], [0], [0], [1], [0, 0, 1, 1], [], []>} : vector<244x128xbf16>, vector<128x128xbf16>, vector<244x128xf32> -> vector<244x128xf32>
    %21 = arith.addf %15, %20 : vector<244x128xf32>
    %22 = vector.extract_strided_slice %10 {offsets = [6, 0], sizes = [244, 128], strides = [1, 1]} : vector<250x128xf32> to vector<244x128xf32>
    %23 = arith.truncf %22 : vector<244x128xf32> to vector<244x128xbf16>
    %c2 = arith.constant 2 : index
    %c0_14 = arith.constant 0 : index
    %c0_15 = arith.constant 0 : index
    %24 = vector.load %arg4[%c2, %c0_14, %c0_15] : memref<3x128x128xbf16, #tpu.memory_space<vmem>>, vector<1x128x128xbf16>
    %25 = vector.shape_cast %24 : vector<1x128x128xbf16> to vector<128x128xbf16>
    %cst_16 = arith.constant dense<0.000000e+00> : vector<244x128xf32>
    %26 = tpu.matmul %23, %25, %cst_16 {dimension_numbers = #tpu.dot_dimension_numbers<[1], [0], [0], [1], [0, 0, 1, 1], [], []>} : vector<244x128xbf16>, vector<128x128xbf16>, vector<244x128xf32> -> vector<244x128xf32>
    %27 = arith.addf %21, %26 : vector<244x128xf32>
    %c0_17 = arith.constant 0 : index
    %c0_18 = arith.constant 0 : index
    %28 = vector.load %arg5[%c0_17, %c0_18] : memref<1x128xf32, #tpu.memory_space<vmem>>, vector<1x128xf32>
    %29 = vector.broadcast %28 : vector<1x128xf32> to vector<244x128xf32>
    %30 = arith.addf %27, %29 : vector<244x128xf32>
    %31 = vector.extract_strided_slice %5 {offsets = [3, 0], sizes = [244, 128], strides = [1, 1]} : vector<250x128xf32> to vector<244x128xf32>
    %32 = arith.addf %30, %31 : vector<244x128xf32>
    %cst_19 = arith.constant 0.000000e+00 : f32
    %33 = vector.broadcast %cst_19 : f32 to vector<244x128xf32>
    %34 = arith.cmpf oge, %32, %33 : vector<244x128xf32>
    %cst_20 = arith.constant 1.000000e-01 : f32
    %35 = vector.broadcast %cst_20 : f32 to vector<244x128xf32>
    %36 = arith.mulf %35, %32 : vector<244x128xf32>
    %37 = arith.select %34, %32, %36 : vector<244x128xi1>, vector<244x128xf32>
    %38 = vector.extract_strided_slice %37 {offsets = [0, 0], sizes = [238, 128], strides = [1, 1]} : vector<244x128xf32> to vector<238x128xf32>
    %39 = arith.truncf %38 : vector<238x128xf32> to vector<238x128xbf16>
    %c0_21 = arith.constant 0 : index
    %c0_22 = arith.constant 0 : index
    %c0_23 = arith.constant 0 : index
    %40 = vector.load %arg6[%c0_21, %c0_22, %c0_23] : memref<3x128x128xbf16, #tpu.memory_space<vmem>>, vector<1x128x128xbf16>
    %41 = vector.shape_cast %40 : vector<1x128x128xbf16> to vector<128x128xbf16>
    %cst_24 = arith.constant dense<0.000000e+00> : vector<238x128xf32>
    %42 = tpu.matmul %39, %41, %cst_24 {dimension_numbers = #tpu.dot_dimension_numbers<[1], [0], [0], [1], [0, 0, 1, 1], [], []>} : vector<238x128xbf16>, vector<128x128xbf16>, vector<238x128xf32> -> vector<238x128xf32>
    %43 = vector.extract_strided_slice %37 {offsets = [3, 0], sizes = [238, 128], strides = [1, 1]} : vector<244x128xf32> to vector<238x128xf32>
    %44 = arith.truncf %43 : vector<238x128xf32> to vector<238x128xbf16>
    %c1_25 = arith.constant 1 : index
    %c0_26 = arith.constant 0 : index
    %c0_27 = arith.constant 0 : index
    %45 = vector.load %arg6[%c1_25, %c0_26, %c0_27] : memref<3x128x128xbf16, #tpu.memory_space<vmem>>, vector<1x128x128xbf16>
    %46 = vector.shape_cast %45 : vector<1x128x128xbf16> to vector<128x128xbf16>
    %cst_28 = arith.constant dense<0.000000e+00> : vector<238x128xf32>
    %47 = tpu.matmul %44, %46, %cst_28 {dimension_numbers = #tpu.dot_dimension_numbers<[1], [0], [0], [1], [0, 0, 1, 1], [], []>} : vector<238x128xbf16>, vector<128x128xbf16>, vector<238x128xf32> -> vector<238x128xf32>
    %48 = arith.addf %42, %47 : vector<238x128xf32>
    %49 = vector.extract_strided_slice %37 {offsets = [6, 0], sizes = [238, 128], strides = [1, 1]} : vector<244x128xf32> to vector<238x128xf32>
    %50 = arith.truncf %49 : vector<238x128xf32> to vector<238x128xbf16>
    %c2_29 = arith.constant 2 : index
    %c0_30 = arith.constant 0 : index
    %c0_31 = arith.constant 0 : index
    %51 = vector.load %arg6[%c2_29, %c0_30, %c0_31] : memref<3x128x128xbf16, #tpu.memory_space<vmem>>, vector<1x128x128xbf16>
    %52 = vector.shape_cast %51 : vector<1x128x128xbf16> to vector<128x128xbf16>
    %cst_32 = arith.constant dense<0.000000e+00> : vector<238x128xf32>
    %53 = tpu.matmul %50, %52, %cst_32 {dimension_numbers = #tpu.dot_dimension_numbers<[1], [0], [0], [1], [0, 0, 1, 1], [], []>} : vector<238x128xbf16>, vector<128x128xbf16>, vector<238x128xf32> -> vector<238x128xf32>
    %54 = arith.addf %48, %53 : vector<238x128xf32>
    %c0_33 = arith.constant 0 : index
    %c0_34 = arith.constant 0 : index
    %55 = vector.load %arg7[%c0_33, %c0_34] : memref<1x128xf32, #tpu.memory_space<vmem>>, vector<1x128xf32>
    %56 = vector.broadcast %55 : vector<1x128xf32> to vector<238x128xf32>
    %57 = arith.addf %54, %56 : vector<238x128xf32>
    %58 = vector.extract_strided_slice %32 {offsets = [3, 0], sizes = [238, 128], strides = [1, 1]} : vector<244x128xf32> to vector<238x128xf32>
    %59 = arith.addf %57, %58 : vector<238x128xf32>
    %cst_35 = arith.constant 0.000000e+00 : f32
    %60 = vector.broadcast %cst_35 : f32 to vector<238x128xf32>
    %61 = arith.cmpf oge, %59, %60 : vector<238x128xf32>
    %cst_36 = arith.constant 1.000000e-01 : f32
    %62 = vector.broadcast %cst_36 : f32 to vector<238x128xf32>
    %63 = arith.mulf %62, %59 : vector<238x128xf32>
    %64 = arith.select %61, %59, %63 : vector<238x128xi1>, vector<238x128xf32>
    %65 = vector.extract_strided_slice %64 {offsets = [0, 0], sizes = [232, 128], strides = [1, 1]} : vector<238x128xf32> to vector<232x128xf32>
    %66 = arith.truncf %65 : vector<232x128xf32> to vector<232x128xbf16>
    %c0_37 = arith.constant 0 : index
    %c0_38 = arith.constant 0 : index
    %c0_39 = arith.constant 0 : index
    %67 = vector.load %arg8[%c0_37, %c0_38, %c0_39] : memref<3x128x128xbf16, #tpu.memory_space<vmem>>, vector<1x128x128xbf16>
    %68 = vector.shape_cast %67 : vector<1x128x128xbf16> to vector<128x128xbf16>
    %cst_40 = arith.constant dense<0.000000e+00> : vector<232x128xf32>
    %69 = tpu.matmul %66, %68, %cst_40 {dimension_numbers = #tpu.dot_dimension_numbers<[1], [0], [0], [1], [0, 0, 1, 1], [], []>} : vector<232x128xbf16>, vector<128x128xbf16>, vector<232x128xf32> -> vector<232x128xf32>
    %70 = vector.extract_strided_slice %64 {offsets = [3, 0], sizes = [232, 128], strides = [1, 1]} : vector<238x128xf32> to vector<232x128xf32>
    %71 = arith.truncf %70 : vector<232x128xf32> to vector<232x128xbf16>
    %c1_41 = arith.constant 1 : index
    %c0_42 = arith.constant 0 : index
    %c0_43 = arith.constant 0 : index
    %72 = vector.load %arg8[%c1_41, %c0_42, %c0_43] : memref<3x128x128xbf16, #tpu.memory_space<vmem>>, vector<1x128x128xbf16>
    %73 = vector.shape_cast %72 : vector<1x128x128xbf16> to vector<128x128xbf16>
    %cst_44 = arith.constant dense<0.000000e+00> : vector<232x128xf32>
    %74 = tpu.matmul %71, %73, %cst_44 {dimension_numbers = #tpu.dot_dimension_numbers<[1], [0], [0], [1], [0, 0, 1, 1], [], []>} : vector<232x128xbf16>, vector<128x128xbf16>, vector<232x128xf32> -> vector<232x128xf32>
    %75 = arith.addf %69, %74 : vector<232x128xf32>
    %76 = vector.extract_strided_slice %64 {offsets = [6, 0], sizes = [232, 128], strides = [1, 1]} : vector<238x128xf32> to vector<232x128xf32>
    %77 = arith.truncf %76 : vector<232x128xf32> to vector<232x128xbf16>
    %c2_45 = arith.constant 2 : index
    %c0_46 = arith.constant 0 : index
    %c0_47 = arith.constant 0 : index
    %78 = vector.load %arg8[%c2_45, %c0_46, %c0_47] : memref<3x128x128xbf16, #tpu.memory_space<vmem>>, vector<1x128x128xbf16>
    %79 = vector.shape_cast %78 : vector<1x128x128xbf16> to vector<128x128xbf16>
    %cst_48 = arith.constant dense<0.000000e+00> : vector<232x128xf32>
    %80 = tpu.matmul %77, %79, %cst_48 {dimension_numbers = #tpu.dot_dimension_numbers<[1], [0], [0], [1], [0, 0, 1, 1], [], []>} : vector<232x128xbf16>, vector<128x128xbf16>, vector<232x128xf32> -> vector<232x128xf32>
    %81 = arith.addf %75, %80 : vector<232x128xf32>
    %c0_49 = arith.constant 0 : index
    %c0_50 = arith.constant 0 : index
    %82 = vector.load %arg9[%c0_49, %c0_50] : memref<1x128xf32, #tpu.memory_space<vmem>>, vector<1x128xf32>
    %83 = vector.broadcast %82 : vector<1x128xf32> to vector<232x128xf32>
    %84 = arith.addf %81, %83 : vector<232x128xf32>
    %85 = vector.extract_strided_slice %59 {offsets = [3, 0], sizes = [232, 128], strides = [1, 1]} : vector<238x128xf32> to vector<232x128xf32>
    %86 = arith.addf %84, %85 : vector<232x128xf32>
    %c0_51 = arith.constant 0 : index
    %c0_52 = arith.constant 0 : index
    %87 = vector.load %arg10[%c0_51, %c0_52] : memref<8x232xf32, #tpu.memory_space<vmem>>, vector<8x232xf32>
    %cst_53 = arith.constant dense<0.000000e+00> : vector<8x128xf32>
    %88 = tpu.matmul %87, %86, %cst_53 {dimension_numbers = #tpu.dot_dimension_numbers<[1], [0], [0], [1], [0, 0, 1, 1], [], []>} : vector<8x232xf32>, vector<232x128xf32>, vector<8x128xf32> -> vector<8x128xf32>
    %c0_54 = arith.constant 0 : index
    %c0_55 = arith.constant 0 : index
    %89 = vector.load %arg11[%c0_54, %c0_55] : memref<8x128xf32, #tpu.memory_space<vmem>>, vector<8x128xf32>
    tpu.vector_store %arg11[%c0_54, %c0_55], %88 {strides = array<i32>} : memref<8x128xf32, #tpu.memory_space<vmem>>, vector<8x128xf32>,
    return
  }
  func.func @transform_0(%arg0: i32) -> (i32, i32) {
    %c0_i32 = arith.constant 0 : i32
    %c0_i32_0 = arith.constant 0 : i32
    return %arg0, %c0_i32 : i32, i32
  }
  func.func @transform_1(%arg0: i32) -> (i32, i32) {
    %c0_i32 = arith.constant 0 : i32
    %c0_i32_0 = arith.constant 0 : i32
    %c0_i32_1 = arith.constant 0 : i32
    return %c0_i32, %c0_i32_0 : i32, i32
  }
  func.func @transform_2(%arg0: i32) -> (i32, i32) {
    %c0_i32 = arith.constant 0 : i32
    %c0_i32_0 = arith.constant 0 : i32
    %c0_i32_1 = arith.constant 0 : i32
    return %c0_i32, %c0_i32_0 : i32, i32
  }
  func.func @transform_3(%arg0: i32) -> (i32, i32, i32) {
    %c0_i32 = arith.constant 0 : i32
    %c0_i32_0 = arith.constant 0 : i32
    %c0_i32_1 = arith.constant 0 : i32
    %c0_i32_2 = arith.constant 0 : i32
    return %c0_i32, %c0_i32_0, %c0_i32_1 : i32, i32, i32
  }
  func.func @transform_4(%arg0: i32) -> (i32, i32) {
    %c0_i32 = arith.constant 0 : i32
    %c0_i32_0 = arith.constant 0 : i32
    %c0_i32_1 = arith.constant 0 : i32
    return %c0_i32, %c0_i32_0 : i32, i32
  }
  func.func @transform_5(%arg0: i32) -> (i32, i32, i32) {
    %c0_i32 = arith.constant 0 : i32
    %c0_i32_0 = arith.constant 0 : i32
    %c0_i32_1 = arith.constant 0 : i32
    %c0_i32_2 = arith.constant 0 : i32
    return %c0_i32, %c0_i32_0, %c0_i32_1 : i32, i32, i32
  }
  func.func @transform_6(%arg0: i32) -> (i32, i32) {
    %c0_i32 = arith.constant 0 : i32
    %c0_i32_0 = arith.constant 0 : i32
    %c0_i32_1 = arith.constant 0 : i32
    return %c0_i32, %c0_i32_0 : i32, i32
  }
  func.func @transform_7(%arg0: i32) -> (i32, i32, i32) {
    %c0_i32 = arith.constant 0 : i32
    %c0_i32_0 = arith.constant 0 : i32
    %c0_i32_1 = arith.constant 0 : i32
    %c0_i32_2 = arith.constant 0 : i32
    return %c0_i32, %c0_i32_0, %c0_i32_1 : i32, i32, i32
  }
  func.func @transform_8(%arg0: i32) -> (i32, i32) {
    %c0_i32 = arith.constant 0 : i32
    %c0_i32_0 = arith.constant 0 : i32
    %c0_i32_1 = arith.constant 0 : i32
    return %c0_i32, %c0_i32_0 : i32, i32
  }
  func.func @transform_9(%arg0: i32) -> (i32, i32) {
    %c0_i32 = arith.constant 0 : i32
    %c0_i32_0 = arith.constant 0 : i32
    %c0_i32_1 = arith.constant 0 : i32
    return %c0_i32, %c0_i32_0 : i32, i32
  }
  func.func @transform_10(%arg0: i32) -> (i32, i32) {
    %c0_i32 = arith.constant 0 : i32
    %c0_i32_0 = arith.constant 0 : i32
    return %arg0, %c0_i32 : i32, i32
  }
}

</mosaic_0001>

<llo_original>
// kernel: mapping_net_forward.1
$region0: #{mapping_net_forward.1}
  #allocation0 [shape = 'u32[]', space=smem, size = 0x4, offset = 0x4, fixed_abs, tag = 'smem constant byte address 0x4 - core index']
  #allocation1 [shape = 'u32[144,128]{1,0:T(1,128)}', space=vmem, size = 0x12000, scoped, tag = 'internal scratch']
  %s0 = inlined_call_operand.vmem [shape: bf16[512,112], index: 0, kind: input, shape index: {}]
  %s1 = inlined_call_operand.vmem [shape: bf16[112,128], index: 1, kind: input, shape index: {}]
  %s2 = inlined_call_operand.vmem [shape: f32[1,128], index: 2, kind: input, shape index: {}]
  %s3 = inlined_call_operand.vmem [shape: bf16[3,128,128], index: 3, kind: input, shape index: {}]
  %s4 = inlined_call_operand.vmem [shape: f32[1,128], index: 4, kind: input, shape index: {}]
  %s5 = inlined_call_operand.vmem [shape: bf16[3,128,128], index: 5, kind: input, shape index: {}]
  %s6 = inlined_call_operand.vmem [shape: f32[1,128], index: 6, kind: input, shape index: {}]
  %s7 = inlined_call_operand.vmem [shape: bf16[3,128,128], index: 7, kind: input, shape index: {}]
  %s8 = inlined_call_operand.vmem [shape: f32[1,128], index: 8, kind: input, shape index: {}]
  %s9 = inlined_call_operand.vmem [shape: f32[8,232], index: 9, kind: input, shape index: {}]
  %s10 = inlined_call_operand.vmem [shape: f32[16,128], index: 10, kind: output, shape index: {}]
  %s11 = sld [smem:[#allocation0]]
  $region73: #{mapping_net_forward.1} parent=0
    _
  %s13 = ssub.s32 1, %s11
  %s14 = scalar_select 0, %s13, %s11
  loop: start=0, step=1, limit=4
  $region2: #{mapping_net_forward.1} parent=0 // loop_pre_header
    _
  $region3: #{mapping_net_forward.1} parent=0 // loop_header
    %s16 = sphi 0, %s20
    %p17 = scmp.ge.s32.totalorder %s16, 4
    %s26 = sphi 0, %s28
    %s29 = sphi 0, %s26
    %s30 = sphi 0, %s29
    %s46 = sphi 0, %s30
    %s50 = sphi 0, %s50
    %s52 = sphi 0, %s50
    %s53 = sphi 0, %s52
    %s67 = sphi 0, %s53
    %s71 = sphi 0, %s71
    %s73 = sphi 0, %s71
    %s74 = sphi 0, %s73
    %s88 = sphi 0, %s74
    %s92 = sphi 0, %s92
    %s94 = sphi 0, %s92
    %s95 = sphi 0, %s94
    %s109 = sphi 0, %s95
    %s113 = sphi 0, %s113
    %s115 = sphi 0, %s113
    %s116 = sphi 0, %s115
    %s130 = sphi 0, %s116
    %s134 = sphi 0, %s134
    %s136 = sphi 0, %s134
    %s137 = sphi 0, %s136
    %s151 = sphi 0, %s137
    %s155 = sphi 0, %s155
    %s157 = sphi 0, %s155
    %s158 = sphi 0, %s157
    %s172 = sphi 0, %s158
    %s176 = sphi 0, %s176
    %s178 = sphi 0, %s176
    %s179 = sphi 0, %s178
    %s193 = sphi 0, %s179
    %s197 = sphi 0, %s197
    %s199 = sphi 0, %s197
    %s200 = sphi 0, %s199
    %s214 = sphi 0, %s200
    %s218 = sphi 0, %s218
    %s220 = sphi 0, %s218
    %s221 = sphi 0, %s220
    %s235 = sphi 0, %s221
    %s241 = sphi 0, %s243
    %s244 = sphi 0, %s241
    %s245 = sphi 0, %s244
    %s261 = sphi 0, %s245
  $region4: #{mapping_net_forward.1} parent=0 // loop_header_branch
    %19 = sbr.rel (%p17) target = $region8
  $region5: #{mapping_net_forward.1} parent=0 // loop_body
    %s21 = ssub.s32 %s16, 1
    %s22 = ssub.s32 %s16, 2
    %s23 = sadd.s32 %s16, 1
    %s24 = ssub.s32 %s16, %s23
    %p25 = scmp.eq.s32.totalorder %s24, 0
    %s27 = sadd.s32 %s26, 1
    %s28 = scalar_select %p25, %s26, %s27
    %p31 = pneg %p25
    %p32 = scmp.eq.s32.totalorder %s16, 1
    %p33 = por %p31, %p32
    %p34 = scmp.ne.s32.totalorder %s26, %s29
    %p35 = scmp.eq.s32.totalorder %s16, 0
    %p36 = por %p34, %p35
    %p37 = scmp.ne.s32.totalorder %s26, %s29
    %p38 = scmp.eq.s32.totalorder %s21, 1
    %p39 = por %p37, %p38
    %p40 = scmp.ne.s32.totalorder %s29, %s30
    %p41 = scmp.eq.s32.totalorder %s21, 0
    %p42 = por %p40, %p41
    %p43 = scmp.ne.s32.totalorder %s29, %s30
    %p44 = scmp.eq.s32.totalorder %s22, 1
    %p45 = por %p43, %p44
    %p47 = scmp.ne.s32.totalorder %s30, %s46
    %p48 = scmp.eq.s32.totalorder %s22, 0
    %p49 = por %p47, %p48
    %s51 = sadd.s32 %s50, 1
    %p54 = scmp.eq.s32.totalorder %s16, 1
    %p55 = scmp.ne.s32.totalorder %s50, %s52
    %p56 = scmp.eq.s32.totalorder %s16, 0
    %p57 = por %p55, %p56
    %p58 = scmp.ne.s32.totalorder %s50, %s52
    %p59 = scmp.eq.s32.totalorder %s21, 1
    %p60 = por %p58, %p59
    %p61 = scmp.ne.s32.totalorder %s52, %s53
    %p62 = scmp.eq.s32.totalorder %s21, 0
    %p63 = por %p61, %p62
    %p64 = scmp.ne.s32.totalorder %s52, %s53
    %p65 = scmp.eq.s32.totalorder %s22, 1
    %p66 = por %p64, %p65
    %p68 = scmp.ne.s32.totalorder %s53, %s67
    %p69 = scmp.eq.s32.totalorder %s22, 0
    %p70 = por %p68, %p69
    %s72 = sadd.s32 %s71, 1
    %p75 = scmp.eq.s32.totalorder %s16, 1
    %p76 = scmp.ne.s32.totalorder %s71, %s73
    %p77 = scmp.eq.s32.totalorder %s16, 0
    %p78 = por %p76, %p77
    %p79 = scmp.ne.s32.totalorder %s71, %s73
    %p80 = scmp.eq.s32.totalorder %s21, 1
    %p81 = por %p79, %p80
    %p82 = scmp.ne.s32.totalorder %s73, %s74
    %p83 = scmp.eq.s32.totalorder %s21, 0
    %p84 = por %p82, %p83
    %p85 = scmp.ne.s32.totalorder %s73, %s74
    %p86 = scmp.eq.s32.totalorder %s22, 1
    %p87 = por %p85, %p86
    %p89 = scmp.ne.s32.totalorder %s74, %s88
    %p90 = scmp.eq.s32.totalorder %s22, 0
    %p91 = por %p89, %p90
    %s93 = sadd.s32 %s92, 1
    %p96 = scmp.eq.s32.totalorder %s16, 1
    %p97 = scmp.ne.s32.totalorder %s92, %s94
    %p98 = scmp.eq.s32.totalorder %s16, 0
    %p99 = por %p97, %p98
    %p100 = scmp.ne.s32.totalorder %s92, %s94
    %p101 = scmp.eq.s32.totalorder %s21, 1
    %p102 = por %p100, %p101
    %p103 = scmp.ne.s32.totalorder %s94, %s95
    %p104 = scmp.eq.s32.totalorder %s21, 0
    %p105 = por %p103, %p104
    %p106 = scmp.ne.s32.totalorder %s94, %s95
    %p107 = scmp.eq.s32.totalorder %s22, 1
    %p108 = por %p106, %p107
    %p110 = scmp.ne.s32.totalorder %s95, %s109
    %p111 = scmp.eq.s32.totalorder %s22, 0
    %p112 = por %p110, %p111
    %s114 = sadd.s32 %s113, 1
    %p117 = scmp.eq.s32.totalorder %s16, 1
    %p118 = scmp.ne.s32.totalorder %s113, %s115
    %p119 = scmp.eq.s32.totalorder %s16, 0
    %p120 = por %p118, %p119
    %p121 = scmp.ne.s32.totalorder %s113, %s115
    %p122 = scmp.eq.s32.totalorder %s21, 1
    %p123 = por %p121, %p122
    %p124 = scmp.ne.s32.totalorder %s115, %s116
    %p125 = scmp.eq.s32.totalorder %s21, 0
    %p126 = por %p124, %p125
    %p127 = scmp.ne.s32.totalorder %s115, %s116
    %p128 = scmp.eq.s32.totalorder %s22, 1
    %p129 = por %p127, %p128
    %p131 = scmp.ne.s32.totalorder %s116, %s130
    %p132 = scmp.eq.s32.totalorder %s22, 0
    %p133 = por %p131, %p132
    %s135 = sadd.s32 %s134, 1
    %p138 = scmp.eq.s32.totalorder %s16, 1
    %p139 = scmp.ne.s32.totalorder %s134, %s136
    %p140 = scmp.eq.s32.totalorder %s16, 0
    %p141 = por %p139, %p140
    %p142 = scmp.ne.s32.totalorder %s134, %s136
    %p143 = scmp.eq.s32.totalorder %s21, 1
    %p144 = por %p142, %p143
    %p145 = scmp.ne.s32.totalorder %s136, %s137
    %p146 = scmp.eq.s32.totalorder %s21, 0
    %p147 = por %p145, %p146
    %p148 = scmp.ne.s32.totalorder %s136, %s137
    %p149 = scmp.eq.s32.totalorder %s22, 1
    %p150 = por %p148, %p149
    %p152 = scmp.ne.s32.totalorder %s137, %s151
    %p153 = scmp.eq.s32.totalorder %s22, 0
    %p154 = por %p152, %p153
    %s156 = sadd.s32 %s155, 1
    %p159 = scmp.eq.s32.totalorder %s16, 1
    %p160 = scmp.ne.s32.totalorder %s155, %s157
    %p161 = scmp.eq.s32.totalorder %s16, 0
    %p162 = por %p160, %p161
    %p163 = scmp.ne.s32.totalorder %s155, %s157
    %p164 = scmp.eq.s32.totalorder %s21, 1
    %p165 = por %p163, %p164
    %p166 = scmp.ne.s32.totalorder %s157, %s158
    %p167 = scmp.eq.s32.totalorder %s21, 0
    %p168 = por %p166, %p167
    %p169 = scmp.ne.s32.totalorder %s157, %s158
    %p170 = scmp.eq.s32.totalorder %s22, 1
    %p171 = por %p169, %p170
    %p173 = scmp.ne.s32.totalorder %s158, %s172
    %p174 = scmp.eq.s32.totalorder %s22, 0
    %p175 = por %p173, %p174
    %s177 = sadd.s32 %s176, 1
    %p180 = scmp.eq.s32.totalorder %s16, 1
    %p181 = scmp.ne.s32.totalorder %s176, %s178
    %p182 = scmp.eq.s32.totalorder %s16, 0
    %p183 = por %p181, %p182
    %p184 = scmp.ne.s32.totalorder %s176, %s178
    %p185 = scmp.eq.s32.totalorder %s21, 1
    %p186 = por %p184, %p185
    %p187 = scmp.ne.s32.totalorder %s178, %s179
    %p188 = scmp.eq.s32.totalorder %s21, 0
    %p189 = por %p187, %p188
    %p190 = scmp.ne.s32.totalorder %s178, %s179
    %p191 = scmp.eq.s32.totalorder %s22, 1
    %p192 = por %p190, %p191
    %p194 = scmp.ne.s32.totalorder %s179, %s193
    %p195 = scmp.eq.s32.totalorder %s22, 0
    %p196 = por %p194, %p195
    %s198 = sadd.s32 %s197, 1
    %p201 = scmp.eq.s32.totalorder %s16, 1
    %p202 = scmp.ne.s32.totalorder %s197, %s199
    %p203 = scmp.eq.s32.totalorder %s16, 0
    %p204 = por %p202, %p203
    %p205 = scmp.ne.s32.totalorder %s197, %s199
    %p206 = scmp.eq.s32.totalorder %s21, 1
    %p207 = por %p205, %p206
    %p208 = scmp.ne.s32.totalorder %s199, %s200
    %p209 = scmp.eq.s32.totalorder %s21, 0
    %p210 = por %p208, %p209
    %p211 = scmp.ne.s32.totalorder %s199, %s200
    %p212 = scmp.eq.s32.totalorder %s22, 1
    %p213 = por %p211, %p212
    %p215 = scmp.ne.s32.totalorder %s200, %s214
    %p216 = scmp.eq.s32.totalorder %s22, 0
    %p217 = por %p215, %p216
    %s219 = sadd.s32 %s218, 1
    %p222 = scmp.eq.s32.totalorder %s16, 1
    %p223 = scmp.ne.s32.totalorder %s218, %s220
    %p224 = scmp.eq.s32.totalorder %s16, 0
    %p225 = por %p223, %p224
    %p226 = scmp.ne.s32.totalorder %s218, %s220
    %p227 = scmp.eq.s32.totalorder %s21, 1
    %p228 = por %p226, %p227
    %p229 = scmp.ne.s32.totalorder %s220, %s221
    %p230 = scmp.eq.s32.totalorder %s21, 0
    %p231 = por %p229, %p230
    %p232 = scmp.ne.s32.totalorder %s220, %s221
    %p233 = scmp.eq.s32.totalorder %s22, 1
    %p234 = por %p232, %p233
    %p236 = scmp.ne.s32.totalorder %s221, %s235
    %p237 = scmp.eq.s32.totalorder %s22, 0
    %p238 = por %p236, %p237
    %s239 = ssub.s32 %s16, %s23
    %p240 = scmp.eq.s32.totalorder %s239, 0
    %s242 = sadd.s32 %s241, 1
    %s243 = scalar_select %p240, %s241, %s242
    %p246 = pneg %p240
    %p247 = scmp.eq.s32.totalorder %s16, 1
    %p248 = por %p246, %p247
    %p249 = scmp.ne.s32.totalorder %s241, %s244
    %p250 = scmp.eq.s32.totalorder %s16, 0
    %p251 = por %p249, %p250
    %p252 = scmp.ne.s32.totalorder %s241, %s244
    %p253 = scmp.eq.s32.totalorder %s21, 1
    %p254 = por %p252, %p253
    %p255 = scmp.ne.s32.totalorder %s244, %s245
    %p256 = scmp.eq.s32.totalorder %s21, 0
    %p257 = por %p255, %p256
    %p258 = scmp.ne.s32.totalorder %s244, %s245
    %p259 = scmp.eq.s32.totalorder %s22, 1
    %p260 = por %p258, %p259
    %p262 = scmp.ne.s32.totalorder %s245, %s261
    %p263 = scmp.eq.s32.totalorder %s22, 0
    %p264 = por %p262, %p263
    %p265 = scmp.le.s32.totalorder 1, %s16
    %p266 = scmp.lt.s32.totalorder %s16, 3
    %p267 = pnand %p265, %p266
    %p268 = pneg %p267
    // Predicated region
    $region9: #{mapping_net_forward.1} parent=5 // pred_check
      _
    $region10: #{mapping_net_forward.1} parent=5 // pred_check_branch
      %270 = sbr.rel (%p267) target = $region12
    $region11: #{mapping_net_forward.1} parent=5 // pred_region
      %s271 = ssub.s32 %s16, 1
      // Predicated region
      $region13: #{mapping_net_forward.1} parent=11 // pred_check
        %p272 = pneg %p63
      $region14: #{mapping_net_forward.1} parent=11 // pred_check_branch
        %274 = sbr.rel (%p272) target = $region16
      $region15: #{mapping_net_forward.1} parent=11 // pred_region
        _
      $region16: #{mapping_net_forward.1} parent=11 // pred_fallthru
        _
      // Predicated region
      $region17: #{mapping_net_forward.1} parent=11 // pred_check
        %p275 = pneg %p84
      $region18: #{mapping_net_forward.1} parent=11 // pred_check_branch
        %277 = sbr.rel (%p275) target = $region20
      $region19: #{mapping_net_forward.1} parent=11 // pred_region
        _
      $region20: #{mapping_net_forward.1} parent=11 // pred_fallthru
        _
      // Predicated region
      $region21: #{mapping_net_forward.1} parent=11 // pred_check
        %p278 = pneg %p105
      $region22: #{mapping_net_forward.1} parent=11 // pred_check_branch
        %280 = sbr.rel (%p278) target = $region24
      $region23: #{mapping_net_forward.1} parent=11 // pred_region
        _
      $region24: #{mapping_net_forward.1} parent=11 // pred_fallthru
        _
      // Predicated region
      $region25: #{mapping_net_forward.1} parent=11 // pred_check
        %p281 = pneg %p126
      $region26: #{mapping_net_forward.1} parent=11 // pred_check_branch
        %283 = sbr.rel (%p281) target = $region28
      $region27: #{mapping_net_forward.1} parent=11 // pred_region
        _
      $region28: #{mapping_net_forward.1} parent=11 // pred_fallthru
        _
      // Predicated region
      $region29: #{mapping_net_forward.1} parent=11 // pred_check
        %p284 = pneg %p147
      $region30: #{mapping_net_forward.1} parent=11 // pred_check_branch
        %286 = sbr.rel (%p284) target = $region32
      $region31: #{mapping_net_forward.1} parent=11 // pred_region
        _
      $region32: #{mapping_net_forward.1} parent=11 // pred_fallthru
        _
      // Predicated region
      $region33: #{mapping_net_forward.1} parent=11 // pred_check
        %p287 = pneg %p168
      $region34: #{mapping_net_forward.1} parent=11 // pred_check_branch
        %289 = sbr.rel (%p287) target = $region36
      $region35: #{mapping_net_forward.1} parent=11 // pred_region
        _
      $region36: #{mapping_net_forward.1} parent=11 // pred_fallthru
        _
      // Predicated region
      $region37: #{mapping_net_forward.1} parent=11 // pred_check
        %p290 = pneg %p189
      $region38: #{mapping_net_forward.1} parent=11 // pred_check_branch
        %292 = sbr.rel (%p290) target = $region40
      $region39: #{mapping_net_forward.1} parent=11 // pred_region
        _
      $region40: #{mapping_net_forward.1} parent=11 // pred_fallthru
        _
      // Predicated region
      $region41: #{mapping_net_forward.1} parent=11 // pred_check
        %p293 = pneg %p210
      $region42: #{mapping_net_forward.1} parent=11 // pred_check_branch
        %295 = sbr.rel (%p293) target = $region44
      $region43: #{mapping_net_forward.1} parent=11 // pred_region
        _
      $region44: #{mapping_net_forward.1} parent=11 // pred_fallthru
        _
      // Predicated region
      $region45: #{mapping_net_forward.1} parent=11 // pred_check
        %p296 = pneg %p231
      $region46: #{mapping_net_forward.1} parent=11 // pred_check_branch
        %298 = sbr.rel (%p296) target = $region48
      $region47: #{mapping_net_forward.1} parent=11 // pred_region
        _
      $region48: #{mapping_net_forward.1} parent=11 // pred_fallthru
        _
    $region12: #{mapping_net_forward.1} parent=5 // pred_fallthru
      _
    %p299 = scmp.lt.s32.totalorder %s16, 2
    // Predicated region
    $region49: #{mapping_net_forward.1} parent=5 // pred_check
      %p300 = pneg %p299
    $region50: #{mapping_net_forward.1} parent=5 // pred_check_branch
      %302 = sbr.rel (%p300) target = $region52
    $region51: #{mapping_net_forward.1} parent=5 // pred_region
      // Predicated region
      $region53: #{mapping_net_forward.1} parent=51 // pred_check
        %p303 = pneg %p36
      $region54: #{mapping_net_forward.1} parent=51 // pred_check_branch
        %305 = sbr.rel (%p303) target = $region56
      $region55: #{mapping_net_forward.1} parent=51 // pred_region
        %s306 = smul.u32 32, %s16
        %p307 = scmp.lt.s32.totalorder %s306, 63
        %s308 = scalar_select %p307, %s306, 63
        %s309 = smul.addr %s308, 4
        %s310 = scalar_lea.vmem %s0, %s309
        %s311 = smul.u32 32, %s16
      $region56: #{mapping_net_forward.1} parent=51 // pred_fallthru
        _
    $region52: #{mapping_net_forward.1} parent=5 // pred_fallthru
      _
    %p312 = scmp.le.s32.totalorder 1, %s16
    %p313 = scmp.lt.s32.totalorder %s16, 3
    %p314 = pnand %p312, %p313
    %p315 = pneg %p314
    // Predicated region
    $region57: #{mapping_net_forward.1} parent=5 // pred_check
      _
    $region58: #{mapping_net_forward.1} parent=5 // pred_check_branch
      %317 = sbr.rel (%p314) target = $region60
    $region59: #{mapping_net_forward.1} parent=5 // pred_region
      %s318 = ssub.s32 %s16, 1
      %s319 = smul.u32 32, %s21
      %p320 = scmp.lt.s32.totalorder %s319, 63
      %s321 = scalar_select %p320, %s319, 63
      %s322 = smul.addr %s321, 4
      %s323 = scalar_lea.vmem %s0, %s322
      %p324 = pneg %p42
      %p325 = pneg %p39
      %p326 = pneg %p63
      %p327 = pneg %p60
      %p328 = pneg %p84
      %p329 = pneg %p81
      %p330 = pneg %p105
      %p331 = pneg %p102
      %p332 = pneg %p126
      %p333 = pneg %p123
      %p334 = pneg %p147
      %p335 = pneg %p144
      %p336 = pneg %p168
      %p337 = pneg %p165
      %p338 = pneg %p189
      %p339 = pneg %p186
      %p340 = pneg %p210
      %p341 = pneg %p207
      %p342 = pneg %p231
      %p343 = pneg %p228
      %p344 = pneg %p257
      %p345 = pneg %p254
      %p346 = scmp.lt.s32.totalorder %s21, 1
      %s347 = scalar_select %p346, %s21, 1
      %s348 = smul.addr %s347, 8
      %s349 = scalar_lea.vmem %s10, %s348
      %s350 = smul.u32 32, %s21
      %p351 = scmp.lt.s32.totalorder %s350, 63
      %s352 = scalar_select %p351, %s350, 63
      %s353 = smul.addr %s352, 4
      %s354 = scalar_lea.vmem %s0, %s353
      %s355 = smul.u32 32, %s21
      %p356 = scmp.lt.s32.totalorder %s21, 1
      %s357 = scalar_select %p356, %s21, 1
      %s358 = smul.addr %s357, 8
      %s359 = scalar_lea.vmem %s10, %s358
      %v361 = vld [vmem:[%s354] sm:$0xf]
      %v362 = vld [vmem:[%s354 + $0x4] sm:$0xf]
      %v363 = vld [vmem:[%s354 + $0x8] sm:$0xf]
      %v364 = vld [vmem:[%s354 + $0xc] sm:$0xf]
      %v365 = vld [vmem:[%s354 + $0x10] sm:$0xf]
      %v366 = vld [vmem:[%s354 + $0x14] sm:$0xf]
      %v367 = vld [vmem:[%s354 + $0x18] sm:$0xf]
      %v368 = vld [vmem:[%s354 + $0x1c] sm:$0xf]
      %v369 = vld [vmem:[%s354 + $0x20] sm:$0xf]
      %v370 = vld [vmem:[%s354 + $0x24] sm:$0xf]
      %v371 = vld [vmem:[%s354 + $0x28] sm:$0xf]
      %v372 = vld [vmem:[%s354 + $0x2c] sm:$0xf]
      %v373 = vld [vmem:[%s354 + $0x30] sm:$0xf]
      %v374 = vld [vmem:[%s354 + $0x34] sm:$0xf]
      %v375 = vld [vmem:[%s354 + $0x38] sm:$0xf]
      %v376 = vld [vmem:[%s354 + $0x3c] sm:$0xf]
      %v377 = vld [vmem:[%s354 + $0x40] sm:$0xf]
      %v378 = vld [vmem:[%s354 + $0x44] sm:$0xf]
      %v379 = vld [vmem:[%s354 + $0x48] sm:$0xf]
      %v380 = vld [vmem:[%s354 + $0x4c] sm:$0xf]
      %v381 = vld [vmem:[%s354 + $0x50] sm:$0xf]
      %v382 = vld [vmem:[%s354 + $0x54] sm:$0xf]
      %v383 = vld [vmem:[%s354 + $0x58] sm:$0xf]
      %v384 = vld [vmem:[%s354 + $0x5c] sm:$0xf]
      %v385 = vld [vmem:[%s354 + $0x60] sm:$0xf]
      %v386 = vld [vmem:[%s354 + $0x64] sm:$0xf]
      %v387 = vld [vmem:[%s354 + $0x68] sm:$0xf]
      %v388 = vld [vmem:[%s354 + $0x6c] sm:$0xf]
      %v389 = vld [vmem:[%s354 + $0x70] sm:$0xf]
      %v390 = vld [vmem:[%s354 + $0x74] sm:$0xf]
      %v391 = vld [vmem:[%s354 + $0x78] sm:$0xf]
      %v392 = vld [vmem:[%s354 + $0x7c] sm:$0x1]
      %v393 = vld [vmem:[%s1] sm:$0xf]
      %v394 = vld [vmem:[%s1 + $0x4] sm:$0xf]
      %v395 = vld [vmem:[%s1 + $0x8] sm:$0xf]
      %v396 = vld [vmem:[%s1 + $0xc] sm:$0xf]
      %v397 = vld [vmem:[%s1 + $0x10] sm:$0xf]
      %v398 = vld [vmem:[%s1 + $0x14] sm:$0xf]
      %v399 = vld [vmem:[%s1 + $0x18] sm:$0xf]
      %v400 = vld [vmem:[%s1 + $0x1c] sm:$0xf]
      %v401 = vld [vmem:[%s1 + $0x20] sm:$0xf]
      %v402 = vld [vmem:[%s1 + $0x24] sm:$0xf]
      %v403 = vld [vmem:[%s1 + $0x28] sm:$0xf]
      %v404 = vld [vmem:[%s1 + $0x2c] sm:$0xf]
      %v405 = vld [vmem:[%s1 + $0x30] sm:$0xf]
      %v406 = vld [vmem:[%s1 + $0x34] sm:$0xf]
      %v407 = vld [vmem:[%s2] sm:$0x1]
      %v409 = vlaneseq
      %v410 = vshrl.u32 %v409, 7
      %v411 = vsub.s32 0, %v410
      %v412 = vrot.slane %v407, %v411
      %v446 = vunpack.c.l.b16 %v361
      %v447 = vunpack.c.l.b16 %v362
      %v448 = vunpack.c.l.b16 %v363
      %v449 = vunpack.c.l.b16 %v364
      %v450 = vunpack.c.l.b16 %v365
      %v451 = vunpack.c.l.b16 %v366
      %v452 = vunpack.c.l.b16 %v367
      %v453 = vunpack.c.l.b16 %v368
      %v454 = vunpack.c.l.b16 %v369
      %v455 = vunpack.c.l.b16 %v370
      %v456 = vunpack.c.l.b16 %v371
      %v457 = vunpack.c.l.b16 %v372
      %v458 = vunpack.c.l.b16 %v373
      %v459 = vunpack.c.l.b16 %v374
      %v460 = vunpack.c.l.b16 %v375
      %v461 = vunpack.c.l.b16 %v376
      %v462 = vunpack.c.l.b16 %v377
      %v463 = vunpack.c.l.b16 %v378
      %v464 = vunpack.c.l.b16 %v379
      %v465 = vunpack.c.l.b16 %v380
      %v466 = vunpack.c.l.b16 %v381
      %v467 = vunpack.c.l.b16 %v382
      %v468 = vunpack.c.l.b16 %v383
      %v469 = vunpack.c.l.b16 %v384
      %v470 = vunpack.c.l.b16 %v385
      %v471 = vunpack.c.l.b16 %v386
      %v472 = vunpack.c.l.b16 %v387
      %v473 = vunpack.c.l.b16 %v388
      %v474 = vunpack.c.l.b16 %v389
      %v475 = vunpack.c.l.b16 %v390
      %v476 = vunpack.c.l.b16 %v391
      %v477 = vunpack.c.l.b16 %v392
      %v478 = vpack.c.b16 %v447, %v446
      %v479 = vpack.c.b16 %v449, %v448
      %v480 = vpack.c.b16 %v451, %v450
      %v481 = vpack.c.b16 %v453, %v452
      %v482 = vpack.c.b16 %v455, %v454
      %v483 = vpack.c.b16 %v457, %v456
      %v484 = vpack.c.b16 %v459, %v458
      %v485 = vpack.c.b16 %v461, %v460
      %v486 = vpack.c.b16 %v463, %v462
      %v487 = vpack.c.b16 %v465, %v464
      %v488 = vpack.c.b16 %v467, %v466
      %v489 = vpack.c.b16 %v469, %v468
      %v490 = vpack.c.b16 %v471, %v470
      %v491 = vpack.c.b16 %v473, %v472
      %v492 = vpack.c.b16 %v475, %v474
      %v493 = vpack.c.b16 %v477, %v476
      %v508 = vunpack.c.l.b16 %v393
      %v509 = vunpack.c.l.b16 %v394
      %v510 = vunpack.c.l.b16 %v395
      %v511 = vunpack.c.l.b16 %v396
      %v512 = vunpack.c.l.b16 %v397
      %v513 = vunpack.c.l.b16 %v398
      %v514 = vunpack.c.l.b16 %v399
      %v515 = vunpack.c.l.b16 %v400
      %v516 = vunpack.c.l.b16 %v401
      %v517 = vunpack.c.l.b16 %v402
      %v518 = vunpack.c.l.b16 %v403
      %v519 = vunpack.c.l.b16 %v404
      %v520 = vunpack.c.l.b16 %v405
      %v521 = vunpack.c.l.b16 %v406
      %v522 = vpack.c.b16 %v509, %v508
      %v523 = vpack.c.b16 %v511, %v510
      %v524 = vpack.c.b16 %v513, %v512
      %v525 = vpack.c.b16 %v515, %v514
      %v526 = vpack.c.b16 %v517, %v516
      %v527 = vpack.c.b16 %v519, %v518
      %v528 = vpack.c.b16 %v521, %v520
      %vm536 = vcmask 916480
      %v538 = vsel %vm536, %v478, 0
      %v541 = vsel %vm536, %v479, 0
      %v544 = vsel %vm536, %v480, 0
      %v547 = vsel %vm536, %v481, 0
      %v550 = vsel %vm536, %v482, 0
      %v553 = vsel %vm536, %v483, 0
      %v556 = vsel %vm536, %v484, 0
      %v559 = vsel %vm536, %v485, 0
      %v562 = vsel %vm536, %v486, 0
      %v565 = vsel %vm536, %v487, 0
      %v568 = vsel %vm536, %v488, 0
      %v571 = vsel %vm536, %v489, 0
      %v574 = vsel %vm536, %v490, 0
      %v577 = vsel %vm536, %v491, 0
      %v580 = vsel %vm536, %v492, 0
      %v583 = vsel %vm536, %v493, 0
      %585 = vmatprep.subr.bf16.mxu0 0
      %586 = vmatpush1.bf16.msra.mxu0 %v522
      %587 = vmatprep.subr.bf16.mxu0 0
      %588 = vmatpush1.bf16.msra.mxu0 %v523
      %589 = vmatprep.subr.bf16.mxu0 0
      %590 = vmatpush1.bf16.msra.mxu0 %v524
      %591 = vmatprep.subr.bf16.mxu0 0
      %592 = vmatpush1.bf16.msra.mxu0 %v525
      %593 = vmatprep.subr.bf16.mxu0 0
      %594 = vmatpush1.bf16.msra.mxu0 %v526
      %595 = vmatprep.subr.bf16.mxu0 0
      %596 = vmatpush1.bf16.msra.mxu0 %v527
      %597 = vmatprep.subr.bf16.mxu0 0
      %598 = vmatpush1.bf16.msra.mxu0 %v528
      %599 = vmatprep.subr.bf16.mxu0 0
      %600 = vmatpush1.bf16.msra.mxu0 0
      %601 = vmatprep.subr.bf16.mxu0 0
      %602 = vmatpush1.bf16.msra.mxu0 0
      %603 = vmatprep.subr.bf16.mxu0 0
      %604 = vmatpush1.bf16.msra.mxu0 0
      %605 = vmatprep.subr.bf16.mxu0 0
      %606 = vmatpush1.bf16.msra.mxu0 0
      %607 = vmatprep.subr.bf16.mxu0 0
      %608 = vmatpush1.bf16.msra.mxu0 0
      %609 = vmatprep.subr.bf16.mxu0 0
      %610 = vmatpush1.bf16.msra.mxu0 0
      %611 = vmatprep.subr.bf16.mxu0 0
      %612 = vmatpush1.bf16.msra.mxu0 0
      %613 = vmatprep.subr.bf16.mxu0 0
      %614 = vmatpush1.bf16.msra.mxu0 0
      %615 = vmatprep.subr.bf16.mxu0 0
      %616 = vmatpush1.bf16.msra.mxu0 0
      %617 = vmatprep.mubr.bf16.mxu0 0
      %618 = vmatmul.mubr.bf16.gmra.mrb[0].mxu0 %v538
      %v619 = vpop.f32.mrb[0].mxu0
      %v620 = vadd.f32 %v412, %v619
      %v621 = vpop.f32.mrb[0].mxu0
      %v622 = vpop.f32.mrb[0].mxu0
      %v623 = vadd.f32 %v412, %v622
      %v624 = vpop.f32.mrb[0].mxu0
      %625 = vmatprep.mubr.bf16.mxu0 0
      %626 = vmatmul.mubr.bf16.gmra.mrb[0].mxu0 %v541
      %v627 = vpop.f32.mrb[0].mxu0
      %v628 = vadd.f32 %v412, %v627
      %v629 = vpop.f32.mrb[0].mxu0
      %v630 = vpop.f32.mrb[0].mxu0
      %v631 = vadd.f32 %v412, %v630
      %v632 = vpop.f32.mrb[0].mxu0
      %633 = vmatprep.mubr.bf16.mxu0 0
      %634 = vmatmul.mubr.bf16.gmra.mrb[0].mxu0 %v544
      %v635 = vpop.f32.mrb[0].mxu0
      %v636 = vadd.f32 %v412, %v635
      %v637 = vpop.f32.mrb[0].mxu0
      %v638 = vpop.f32.mrb[0].mxu0
      %v639 = vadd.f32 %v412, %v638
      %v640 = vpop.f32.mrb[0].mxu0
      %641 = vmatprep.mubr.bf16.mxu0 0
      %642 = vmatmul.mubr.bf16.gmra.mrb[0].mxu0 %v547
      %v643 = vpop.f32.mrb[0].mxu0
      %v644 = vadd.f32 %v412, %v643
      %v645 = vpop.f32.mrb[0].mxu0
      %v646 = vpop.f32.mrb[0].mxu0
      %v647 = vadd.f32 %v412, %v646
      %v648 = vpop.f32.mrb[0].mxu0
      %649 = vmatprep.mubr.bf16.mxu0 0
      %650 = vmatmul.mubr.bf16.gmra.mrb[0].mxu0 %v550
      %v651 = vpop.f32.mrb[0].mxu0
      %v652 = vadd.f32 %v412, %v651
      %v653 = vpop.f32.mrb[0].mxu0
      %v654 = vpop.f32.mrb[0].mxu0
      %v655 = vadd.f32 %v412, %v654
      %v656 = vpop.f32.mrb[0].mxu0
      %657 = vmatprep.mubr.bf16.mxu0 0
      %658 = vmatmul.mubr.bf16.gmra.mrb[0].mxu0 %v553
      %v659 = vpop.f32.mrb[0].mxu0
      %v660 = vadd.f32 %v412, %v659
      %v661 = vpop.f32.mrb[0].mxu0
      %v662 = vpop.f32.mrb[0].mxu0
      %v663 = vadd.f32 %v412, %v662
      %v664 = vpop.f32.mrb[0].mxu0
      %665 = vmatprep.mubr.bf16.mxu0 0
      %666 = vmatmul.mubr.bf16.gmra.mrb[0].mxu0 %v556
      %v667 = vpop.f32.mrb[0].mxu0
      %v668 = vadd.f32 %v412, %v667
      %v669 = vpop.f32.mrb[0].mxu0
      %v670 = vpop.f32.mrb[0].mxu0
      %v671 = vadd.f32 %v412, %v670
      %v672 = vpop.f32.mrb[0].mxu0
      %673 = vmatprep.mubr.bf16.mxu0 0
      %674 = vmatmul.mubr.bf16.gmra.mrb[0].mxu0 %v559
      %v675 = vpop.f32.mrb[0].mxu0
      %v676 = vadd.f32 %v412, %v675
      %v677 = vpop.f32.mrb[0].mxu0
      %v678 = vpop.f32.mrb[0].mxu0
      %v679 = vadd.f32 %v412, %v678
      %v680 = vpop.f32.mrb[0].mxu0
      %681 = vmatprep.mubr.bf16.mxu0 0
      %682 = vmatmul.mubr.bf16.gmra.mrb[0].mxu0 %v562
      %v683 = vpop.f32.mrb[0].mxu0
      %v684 = vadd.f32 %v412, %v683
      %v685 = vpop.f32.mrb[0].mxu0
      %v686 = vpop.f32.mrb[0].mxu0
      %v687 = vadd.f32 %v412, %v686
      %v688 = vpop.f32.mrb[0].mxu0
      %689 = vmatprep.mubr.bf16.mxu0 0
      %690 = vmatmul.mubr.bf16.gmra.mrb[0].mxu0 %v565
      %v691 = vpop.f32.mrb[0].mxu0
      %v692 = vadd.f32 %v412, %v691
      %v693 = vpop.f32.mrb[0].mxu0
      %v694 = vpop.f32.mrb[0].mxu0
      %v695 = vadd.f32 %v412, %v694
      %v696 = vpop.f32.mrb[0].mxu0
      %697 = vmatprep.mubr.bf16.mxu0 0
      %698 = vmatmul.mubr.bf16.gmra.mrb[0].mxu0 %v568
      %v699 = vpop.f32.mrb[0].mxu0
      %v700 = vadd.f32 %v412, %v699
      %v701 = vpop.f32.mrb[0].mxu0
      %v702 = vpop.f32.mrb[0].mxu0
      %v703 = vadd.f32 %v412, %v702
      %v704 = vpop.f32.mrb[0].mxu0
      %705 = vmatprep.mubr.bf16.mxu0 0
      %706 = vmatmul.mubr.bf16.gmra.mrb[0].mxu0 %v571
      %v707 = vpop.f32.mrb[0].mxu0
      %v708 = vadd.f32 %v412, %v707
      %v709 = vpop.f32.mrb[0].mxu0
      %v710 = vpop.f32.mrb[0].mxu0
      %v711 = vadd.f32 %v412, %v710
      %v712 = vpop.f32.mrb[0].mxu0
      %713 = vmatprep.mubr.bf16.mxu0 0
      %714 = vmatmul.mubr.bf16.gmra.mrb[0].mxu0 %v574
      %v715 = vpop.f32.mrb[0].mxu0
      %v716 = vadd.f32 %v412, %v715
      %v717 = vpop.f32.mrb[0].mxu0
      %v718 = vpop.f32.mrb[0].mxu0
      %v719 = vadd.f32 %v412, %v718
      %v720 = vpop.f32.mrb[0].mxu0
      %721 = vmatprep.mubr.bf16.mxu0 0
      %722 = vmatmul.mubr.bf16.gmra.mrb[0].mxu0 %v577
      %v723 = vpop.f32.mrb[0].mxu0
      %v724 = vadd.f32 %v412, %v723
      %v725 = vpop.f32.mrb[0].mxu0
      %v726 = vpop.f32.mrb[0].mxu0
      %v727 = vadd.f32 %v412, %v726
      %v728 = vpop.f32.mrb[0].mxu0
      %729 = vmatprep.mubr.bf16.mxu0 0
      %730 = vmatmul.mubr.bf16.gmra.mrb[0].mxu0 %v580
      %v731 = vpop.f32.mrb[0].mxu0
      %v732 = vadd.f32 %v412, %v731
      %v733 = vpop.f32.mrb[0].mxu0
      %v734 = vpop.f32.mrb[0].mxu0
      %v735 = vadd.f32 %v412, %v734
      %v736 = vpop.f32.mrb[0].mxu0
      %737 = vmatprep.mubr.bf16.mxu0 0
      %738 = vmatmul.mubr.bf16.gmra.mrb[0].mxu0 %v583
      %v739 = vpop.f32.mrb[0].mxu0
      %v740 = vadd.f32 %v412, %v739
      %v741 = vpop.f32.mrb[0].mxu0
      %v742 = vpop.f32.mrb[0].mxu0
      %v743 = vadd.f32 %v412, %v742
      %v744 = vpop.f32.mrb[0].mxu0
      %745 = vdwg.mxu0
      %vm746 = vcmp.ge.f32.partialorder %v620, 0.0
      %vm747 = vcmp.ge.f32.partialorder %v623, 0.0
      %vm748 = vcmp.ge.f32.partialorder %v628, 0.0
      %vm749 = vcmp.ge.f32.partialorder %v631, 0.0
      %vm750 = vcmp.ge.f32.partialorder %v636, 0.0
      %vm751 = vcmp.ge.f32.partialorder %v639, 0.0
      %vm752 = vcmp.ge.f32.partialorder %v644, 0.0
      %vm753 = vcmp.ge.f32.partialorder %v647, 0.0
      %vm754 = vcmp.ge.f32.partialorder %v652, 0.0
      %vm755 = vcmp.ge.f32.partialorder %v655, 0.0
      %vm756 = vcmp.ge.f32.partialorder %v660, 0.0
      %vm757 = vcmp.ge.f32.partialorder %v663, 0.0
      %vm758 = vcmp.ge.f32.partialorder %v668, 0.0
      %vm759 = vcmp.ge.f32.partialorder %v671, 0.0
      %vm760 = vcmp.ge.f32.partialorder %v676, 0.0
      %vm761 = vcmp.ge.f32.partialorder %v679, 0.0
      %vm762 = vcmp.ge.f32.partialorder %v684, 0.0
      %vm763 = vcmp.ge.f32.partialorder %v687, 0.0
      %vm764 = vcmp.ge.f32.partialorder %v692, 0.0
      %vm765 = vcmp.ge.f32.partialorder %v695, 0.0
      %vm766 = vcmp.ge.f32.partialorder %v700, 0.0
      %vm767 = vcmp.ge.f32.partialorder %v703, 0.0
      %vm768 = vcmp.ge.f32.partialorder %v708, 0.0
      %vm769 = vcmp.ge.f32.partialorder %v711, 0.0
      %vm770 = vcmp.ge.f32.partialorder %v716, 0.0
      %vm771 = vcmp.ge.f32.partialorder %v719, 0.0
      %vm772 = vcmp.ge.f32.partialorder %v724, 0.0
      %vm773 = vcmp.ge.f32.partialorder %v727, 0.0
      %vm774 = vcmp.ge.f32.partialorder %v732, 0.0
      %vm775 = vcmp.ge.f32.partialorder %v735, 0.0
      %vm776 = vcmp.ge.f32.partialorder %v740, 0.0
      %vm777 = vcmp.ge.f32.partialorder %v743, 0.0
      %v778 = vmul.f32 %v620, 0.1
      %v779 = vmul.f32 %v623, 0.1
      %v780 = vmul.f32 %v628, 0.1
      %v781 = vmul.f32 %v631, 0.1
      %v782 = vmul.f32 %v636, 0.1
      %v783 = vmul.f32 %v639, 0.1
      %v784 = vmul.f32 %v644, 0.1
      %v785 = vmul.f32 %v647, 0.1
      %v786 = vmul.f32 %v652, 0.1
      %v787 = vmul.f32 %v655, 0.1
      %v788 = vmul.f32 %v660, 0.1
      %v789 = vmul.f32 %v663, 0.1
      %v790 = vmul.f32 %v668, 0.1
      %v791 = vmul.f32 %v671, 0.1
      %v792 = vmul.f32 %v676, 0.1
      %v793 = vmul.f32 %v679, 0.1
      %v794 = vmul.f32 %v684, 0.1
      %v795 = vmul.f32 %v687, 0.1
      %v796 = vmul.f32 %v692, 0.1
      %v797 = vmul.f32 %v695, 0.1
      %v798 = vmul.f32 %v700, 0.1
      %v799 = vmul.f32 %v703, 0.1
      %v800 = vmul.f32 %v708, 0.1
      %v801 = vmul.f32 %v711, 0.1
      %v802 = vmul.f32 %v716, 0.1
      %v803 = vmul.f32 %v719, 0.1
      %v804 = vmul.f32 %v724, 0.1
      %v805 = vmul.f32 %v727, 0.1
      %v806 = vmul.f32 %v732, 0.1
      %v807 = vmul.f32 %v735, 0.1
      %v808 = vmul.f32 %v740, 0.1
      %v809 = vmul.f32 %v743, 0.1
      %v810 = vsel %vm746, %v620, %v778
      %v811 = vsel %vm747, %v623, %v779
      %v812 = vsel %vm748, %v628, %v780
      %v813 = vsel %vm749, %v631, %v781
      %v814 = vsel %vm750, %v636, %v782
      %v815 = vsel %vm751, %v639, %v783
      %v816 = vsel %vm752, %v644, %v784
      %v817 = vsel %vm753, %v647, %v785
      %v818 = vsel %vm754, %v652, %v786
      %v819 = vsel %vm755, %v655, %v787
      %v820 = vsel %vm756, %v660, %v788
      %v821 = vsel %vm757, %v663, %v789
      %v822 = vsel %vm758, %v668, %v790
      %v823 = vsel %vm759, %v671, %v791
      %v824 = vsel %vm760, %v676, %v792
      %v825 = vsel %vm761, %v679, %v793
      %v826 = vsel %vm762, %v684, %v794
      %v827 = vsel %vm763, %v687, %v795
      %v828 = vsel %vm764, %v692, %v796
      %v829 = vsel %vm765, %v695, %v797
      %v830 = vsel %vm766, %v700, %v798
      %v831 = vsel %vm767, %v703, %v799
      %v832 = vsel %vm768, %v708, %v800
      %v833 = vsel %vm769, %v711, %v801
      %v834 = vsel %vm770, %v716, %v802
      %v835 = vsel %vm771, %v719, %v803
      %v836 = vsel %vm772, %v724, %v804
      %v837 = vsel %vm773, %v727, %v805
      %v838 = vsel %vm774, %v732, %v806
      %v839 = vsel %vm775, %v735, %v807
      %v840 = vsel %vm776, %v740, %v808
      %v841 = vsel %vm777, %v743, %v809
      %v842 = vpack.c.bf16 %v811, %v810
      %v843 = vpack.c.bf16 %v813, %v812
      %v844 = vpack.c.bf16 %v815, %v814
      %v845 = vpack.c.bf16 %v817, %v816
      %v846 = vpack.c.bf16 %v819, %v818
      %v847 = vpack.c.bf16 %v821, %v820
      %v848 = vpack.c.bf16 %v823, %v822
      %v849 = vpack.c.bf16 %v825, %v824
      %v850 = vpack.c.bf16 %v827, %v826
      %v851 = vpack.c.bf16 %v829, %v828
      %v852 = vpack.c.bf16 %v831, %v830
      %v853 = vpack.c.bf16 %v833, %v832
      %v854 = vpack.c.bf16 %v835, %v834
      %v855 = vpack.c.bf16 %v837, %v836
      %v856 = vpack.c.bf16 %v839, %v838
      %v857 = vpack.c.bf16 %v840, %v840
      %v858 = vld [vmem:[%s3] sm:$0xf]
      %v859 = vld [vmem:[%s3 + $0x4] sm:$0xf]
      %v860 = vld [vmem:[%s3 + $0x8] sm:$0xf]
      %v861 = vld [vmem:[%s3 + $0xc] sm:$0xf]
      %v862 = vld [vmem:[%s3 + $0x10] sm:$0xf]
      %v863 = vld [vmem:[%s3 + $0x14] sm:$0xf]
      %v864 = vld [vmem:[%s3 + $0x18] sm:$0xf]
      %v865 = vld [vmem:[%s3 + $0x1c] sm:$0xf]
      %v866 = vld [vmem:[%s3 + $0x20] sm:$0xf]
      %v867 = vld [vmem:[%s3 + $0x24] sm:$0xf]
      %v868 = vld [vmem:[%s3 + $0x28] sm:$0xf]
      %v869 = vld [vmem:[%s3 + $0x2c] sm:$0xf]
      %v870 = vld [vmem:[%s3 + $0x30] sm:$0xf]
      %v871 = vld [vmem:[%s3 + $0x34] sm:$0xf]
      %v872 = vld [vmem:[%s3 + $0x38] sm:$0xf]
      %v873 = vld [vmem:[%s3 + $0x3c] sm:$0xf]
      %s874 = scalar_lea.vmem %s3, 64
      %v875 = vld [vmem:[%s874] sm:$0xf]
      %v876 = vld [vmem:[%s874 + $0x4] sm:$0xf]
      %v877 = vld [vmem:[%s874 + $0x8] sm:$0xf]
      %v878 = vld [vmem:[%s874 + $0xc] sm:$0xf]
      %v879 = vld [vmem:[%s874 + $0x10] sm:$0xf]
      %v880 = vld [vmem:[%s874 + $0x14] sm:$0xf]
      %v881 = vld [vmem:[%s874 + $0x18] sm:$0xf]
      %v882 = vld [vmem:[%s874 + $0x1c] sm:$0xf]
      %v883 = vld [vmem:[%s874 + $0x20] sm:$0xf]
      %v884 = vld [vmem:[%s874 + $0x24] sm:$0xf]
      %v885 = vld [vmem:[%s874 + $0x28] sm:$0xf]
      %v886 = vld [vmem:[%s874 + $0x2c] sm:$0xf]
      %v887 = vld [vmem:[%s874 + $0x30] sm:$0xf]
      %v888 = vld [vmem:[%s874 + $0x34] sm:$0xf]
      %v889 = vld [vmem:[%s874 + $0x38] sm:$0xf]
      %v890 = vld [vmem:[%s874 + $0x3c] sm:$0xf]
      %vm891 = vsmask.f32 6400
      %v893 = vshrl.u32 %v842, 16
      %v895 = vrot.slane %v893, 1
      %v896 = vshll.u32 %v842, 16
      %v898 = vrot.slane %v896, 2
      %v899 = vor.u32 %v895, %v898
      %v901 = vshrl.u32 %v843, 16
      %v903 = vrot.slane %v901, 1
      %v904 = vshll.u32 %v843, 16
      %v906 = vrot.slane %v904, 2
      %v907 = vor.u32 %v903, %v906
      %v908 = vsel %vm891, %v899, %v907
      %v910 = vshrl.u32 %v844, 16
      %v912 = vrot.slane %v910, 1
      %v913 = vshll.u32 %v844, 16
      %v915 = vrot.slane %v913, 2
      %v916 = vor.u32 %v912, %v915
      %v917 = vsel %vm891, %v907, %v916
      %v919 = vshrl.u32 %v845, 16
      %v921 = vrot.slane %v919, 1
      %v922 = vshll.u32 %v845, 16
      %v924 = vrot.slane %v922, 2
      %v925 = vor.u32 %v921, %v924
      %v926 = vsel %vm891, %v916, %v925
      %v928 = vshrl.u32 %v846, 16
      %v930 = vrot.slane %v928, 1
      %v931 = vshll.u32 %v846, 16
      %v933 = vrot.slane %v931, 2
      %v934 = vor.u32 %v930, %v933
      %v935 = vsel %vm891, %v925, %v934
      %v937 = vshrl.u32 %v847, 16
      %v939 = vrot.slane %v937, 1
      %v940 = vshll.u32 %v847, 16
      %v942 = vrot.slane %v940, 2
      %v943 = vor.u32 %v939, %v942
      %v944 = vsel %vm891, %v934, %v943
      %v946 = vshrl.u32 %v848, 16
      %v948 = vrot.slane %v946, 1
      %v949 = vshll.u32 %v848, 16
      %v951 = vrot.slane %v949, 2
      %v952 = vor.u32 %v948, %v951
      %v953 = vsel %vm891, %v943, %v952
      %v955 = vshrl.u32 %v849, 16
      %v957 = vrot.slane %v955, 1
      %v958 = vshll.u32 %v849, 16
      %v960 = vrot.slane %v958, 2
      %v961 = vor.u32 %v957, %v960
      %v962 = vsel %vm891, %v952, %v961
      %v964 = vshrl.u32 %v850, 16
      %v966 = vrot.slane %v964, 1
      %v967 = vshll.u32 %v850, 16
      %v969 = vrot.slane %v967, 2
      %v970 = vor.u32 %v966, %v969
      %v971 = vsel %vm891, %v961, %v970
      %v973 = vshrl.u32 %v851, 16
      %v975 = vrot.slane %v973, 1
      %v976 = vshll.u32 %v851, 16
      %v978 = vrot.slane %v976, 2
      %v979 = vor.u32 %v975, %v978
      %v980 = vsel %vm891, %v970, %v979
      %v982 = vshrl.u32 %v852, 16
      %v984 = vrot.slane %v982, 1
      %v985 = vshll.u32 %v852, 16
      %v987 = vrot.slane %v985, 2
      %v988 = vor.u32 %v984, %v987
      %v989 = vsel %vm891, %v979, %v988
      %v991 = vshrl.u32 %v853, 16
      %v993 = vrot.slane %v991, 1
      %v994 = vshll.u32 %v853, 16
      %v996 = vrot.slane %v994, 2
      %v997 = vor.u32 %v993, %v996
      %v998 = vsel %vm891, %v988, %v997
      %v1000 = vshrl.u32 %v854, 16
      %v1002 = vrot.slane %v1000, 1
      %v1003 = vshll.u32 %v854, 16
      %v1005 = vrot.slane %v1003, 2
      %v1006 = vor.u32 %v1002, %v1005
      %v1007 = vsel %vm891, %v997, %v1006
      %v1009 = vshrl.u32 %v855, 16
      %v1011 = vrot.slane %v1009, 1
      %v1012 = vshll.u32 %v855, 16
      %v1014 = vrot.slane %v1012, 2
      %v1015 = vor.u32 %v1011, %v1014
      %v1016 = vsel %vm891, %v1006, %v1015
      %v1018 = vshrl.u32 %v856, 16
      %v1020 = vrot.slane %v1018, 1
      %v1021 = vshll.u32 %v856, 16
      %v1023 = vrot.slane %v1021, 2
      %v1024 = vor.u32 %v1020, %v1023
      %v1025 = vsel %vm891, %v1015, %v1024
      %v1027 = vshrl.u32 %v857, 16
      %v1029 = vrot.slane %v1027, 1
      %v1030 = vshll.u32 %v857, 16
      %v1032 = vrot.slane %v1030, 2
      %v1033 = vor.u32 %v1029, %v1032
      %v1034 = vsel %vm891, %v1024, %v1033
      %v1067 = vunpack.c.l.b16 %v875
      %v1068 = vunpack.c.l.b16 %v876
      %v1069 = vunpack.c.l.b16 %v877
      %v1070 = vunpack.c.l.b16 %v878
      %v1071 = vunpack.c.l.b16 %v879
      %v1072 = vunpack.c.l.b16 %v880
      %v1073 = vunpack.c.l.b16 %v881
      %v1074 = vunpack.c.l.b16 %v882
      %v1075 = vunpack.c.l.b16 %v883
      %v1076 = vunpack.c.l.b16 %v884
      %v1077 = vunpack.c.l.b16 %v885
      %v1078 = vunpack.c.l.b16 %v886
      %v1079 = vunpack.c.l.b16 %v887
      %v1080 = vunpack.c.l.b16 %v888
      %v1081 = vunpack.c.l.b16 %v889
      %v1082 = vunpack.c.l.b16 %v890
      %v1083 = vpack.c.b16 %v1068, %v1067
      %v1084 = vpack.c.b16 %v1070, %v1069
      %v1085 = vpack.c.b16 %v1072, %v1071
      %v1086 = vpack.c.b16 %v1074, %v1073
      %v1087 = vpack.c.b16 %v1076, %v1075
      %v1088 = vpack.c.b16 %v1078, %v1077
      %v1089 = vpack.c.b16 %v1080, %v1079
      %v1090 = vpack.c.b16 %v1082, %v1081
      %1099 = vmatprep.subr.bf16.mxu0 0
      %1100 = vmatpush1.bf16.msra.mxu0 %v1083
      %1101 = vmatprep.subr.bf16.mxu0 0
      %1102 = vmatpush1.bf16.msra.mxu0 %v1084
      %1103 = vmatprep.subr.bf16.mxu0 0
      %1104 = vmatpush1.bf16.msra.mxu0 %v1085
      %1105 = vmatprep.subr.bf16.mxu0 0
      %1106 = vmatpush1.bf16.msra.mxu0 %v1086
      %1107 = vmatprep.subr.bf16.mxu0 0
      %1108 = vmatpush1.bf16.msra.mxu0 %v1087
      %1109 = vmatprep.subr.bf16.mxu0 0
      %1110 = vmatpush1.bf16.msra.mxu0 %v1088
      %1111 = vmatprep.subr.bf16.mxu0 0
      %1112 = vmatpush1.bf16.msra.mxu0 %v1089
      %1113 = vmatprep.subr.bf16.mxu0 0
      %1114 = vmatpush1.bf16.msra.mxu0 %v1090
      %1115 = vmatprep.subr.bf16.mxu0 0
      %1116 = vmatpush1.bf16.msra.mxu0 0
      %1117 = vmatprep.subr.bf16.mxu0 0
      %1118 = vmatpush1.bf16.msra.mxu0 0
      %1119 = vmatprep.subr.bf16.mxu0 0
      %1120 = vmatpush1.bf16.msra.mxu0 0
      %1121 = vmatprep.subr.bf16.mxu0 0
      %1122 = vmatpush1.bf16.msra.mxu0 0
      %1123 = vmatprep.subr.bf16.mxu0 0
      %1124 = vmatpush1.bf16.msra.mxu0 0
      %1125 = vmatprep.subr.bf16.mxu0 0
      %1126 = vmatpush1.bf16.msra.mxu0 0
      %1127 = vmatprep.subr.bf16.mxu0 0
      %1128 = vmatpush1.bf16.msra.mxu0 0
      %1129 = vmatprep.subr.bf16.mxu0 0
      %1130 = vmatpush1.bf16.msra.mxu0 0
      %1131 = vmatprep.mubr.bf16.mxu0 0
      %1132 = vmatmul.mubr.bf16.gmra.mrb[0].mxu0 %v908
      %v1133 = vpop.f32.mrb[0].mxu0
      %v1134 = vadd.f32 0.0, %v1133
      %v1135 = vpop.f32.mrb[0].mxu0
      %v1136 = vpop.f32.mrb[0].mxu0
      %v1137 = vadd.f32 0.0, %v1136
      %v1138 = vpop.f32.mrb[0].mxu0
      %1139 = vmatprep.mubr.bf16.mxu0 0
      %1140 = vmatmul.mubr.bf16.gmra.mrb[0].mxu0 %v917
      %v1141 = vpop.f32.mrb[0].mxu0
      %v1142 = vadd.f32 0.0, %v1141
      %v1143 = vpop.f32.mrb[0].mxu0
      %v1144 = vpop.f32.mrb[0].mxu0
      %v1145 = vadd.f32 0.0, %v1144
      %v1146 = vpop.f32.mrb[0].mxu0
      %1147 = vmatprep.mubr.bf16.mxu0 0
      %1148 = vmatmul.mubr.bf16.gmra.mrb[0].mxu0 %v926
      %v1149 = vpop.f32.mrb[0].mxu0
      %v1150 = vadd.f32 0.0, %v1149
      %v1151 = vpop.f32.mrb[0].mxu0
      %v1152 = vpop.f32.mrb[0].mxu0
      %v1153 = vadd.f32 0.0, %v1152
      %v1154 = vpop.f32.mrb[0].mxu0
      %1155 = vmatprep.mubr.bf16.mxu0 0
      %1156 = vmatmul.mubr.bf16.gmra.mrb[0].mxu0 %v935
      %v1157 = vpop.f32.mrb[0].mxu0
      %v1158 = vadd.f32 0.0, %v1157
      %v1159 = vpop.f32.mrb[0].mxu0
      %v1160 = vpop.f32.mrb[0].mxu0
      %v1161 = vadd.f32 0.0, %v1160
      %v1162 = vpop.f32.mrb[0].mxu0
      %1163 = vmatprep.mubr.bf16.mxu0 0
      %1164 = vmatmul.mubr.bf16.gmra.mrb[0].mxu0 %v944
      %v1165 = vpop.f32.mrb[0].mxu0
      %v1166 = vadd.f32 0.0, %v1165
      %v1167 = vpop.f32.mrb[0].mxu0
      %v1168 = vpop.f32.mrb[0].mxu0
      %v1169 = vadd.f32 0.0, %v1168
      %v1170 = vpop.f32.mrb[0].mxu0
      %1171 = vmatprep.mubr.bf16.mxu0 0
      %1172 = vmatmul.mubr.bf16.gmra.mrb[0].mxu0 %v953
      %v1173 = vpop.f32.mrb[0].mxu0
      %v1174 = vadd.f32 0.0, %v1173
      %v1175 = vpop.f32.mrb[0].mxu0
      %v1176 = vpop.f32.mrb[0].mxu0
      %v1177 = vadd.f32 0.0, %v1176
      %v1178 = vpop.f32.mrb[0].mxu0
      %1179 = vmatprep.mubr.bf16.mxu0 0
      %1180 = vmatmul.mubr.bf16.gmra.mrb[0].mxu0 %v962
      %v1181 = vpop.f32.mrb[0].mxu0
      %v1182 = vadd.f32 0.0, %v1181
      %v1183 = vpop.f32.mrb[0].mxu0
      %v1184 = vpop.f32.mrb[0].mxu0
      %v1185 = vadd.f32 0.0, %v1184
      %v1186 = vpop.f32.mrb[0].mxu0
      %1187 = vmatprep.mubr.bf16.mxu0 0
      %1188 = vmatmul.mubr.bf16.gmra.mrb[0].mxu0 %v971
      %v1189 = vpop.f32.mrb[0].mxu0
      %v1190 = vadd.f32 0.0, %v1189
      %v1191 = vpop.f32.mrb[0].mxu0
      %v1192 = vpop.f32.mrb[0].mxu0
      %v1193 = vadd.f32 0.0, %v1192
      %v1194 = vpop.f32.mrb[0].mxu0
      %1195 = vmatprep.mubr.bf16.mxu0 0
      %1196 = vmatmul.mubr.bf16.gmra.mrb[0].mxu0 %v980
      %v1197 = vpop.f32.mrb[0].mxu0
      %v1198 = vadd.f32 0.0, %v1197
      %v1199 = vpop.f32.mrb[0].mxu0
      %v1200 = vpop.f32.mrb[0].mxu0
      %v1201 = vadd.f32 0.0, %v1200
      %v1202 = vpop.f32.mrb[0].mxu0
      %1203 = vmatprep.mubr.bf16.mxu0 0
      %1204 = vmatmul.mubr.bf16.gmra.mrb[0].mxu0 %v989
      %v1205 = vpop.f32.mrb[0].mxu0
      %v1206 = vadd.f32 0.0, %v1205
      %v1207 = vpop.f32.mrb[0].mxu0
      %v1208 = vpop.f32.mrb[0].mxu0
      %v1209 = vadd.f32 0.0, %v1208
      %v1210 = vpop.f32.mrb[0].mxu0
      %1211 = vmatprep.mubr.bf16.mxu0 0
      %1212 = vmatmul.mubr.bf16.gmra.mrb[0].mxu0 %v998
      %v1213 = vpop.f32.mrb[0].mxu0
      %v1214 = vadd.f32 0.0, %v1213
      %v1215 = vpop.f32.mrb[0].mxu0
      %v1216 = vpop.f32.mrb[0].mxu0
      %v1217 = vadd.f32 0.0, %v1216
      %v1218 = vpop.f32.mrb[0].mxu0
      %1219 = vmatprep.mubr.bf16.mxu0 0
      %1220 = vmatmul.mubr.bf16.gmra.mrb[0].mxu0 %v1007
      %v1221 = vpop.f32.mrb[0].mxu0
      %v1222 = vadd.f32 0.0, %v1221
      %v1223 = vpop.f32.mrb[0].mxu0
      %v1224 = vpop.f32.mrb[0].mxu0
      %v1225 = vadd.f32 0.0, %v1224
      %v1226 = vpop.f32.mrb[0].mxu0
      %1227 = vmatprep.mubr.bf16.mxu0 0
      %1228 = vmatmul.mubr.bf16.gmra.mrb[0].mxu0 %v1016
      %v1229 = vpop.f32.mrb[0].mxu0
      %v1230 = vadd.f32 0.0, %v1229
      %v1231 = vpop.f32.mrb[0].mxu0
      %v1232 = vpop.f32.mrb[0].mxu0
      %v1233 = vadd.f32 0.0, %v1232
      %v1234 = vpop.f32.mrb[0].mxu0
      %1235 = vmatprep.mubr.bf16.mxu0 0
      %1236 = vmatmul.mubr.bf16.gmra.mrb[0].mxu0 %v1025
      %v1237 = vpop.f32.mrb[0].mxu0
      %v1238 = vadd.f32 0.0, %v1237
      %v1239 = vpop.f32.mrb[0].mxu0
      %v1240 = vpop.f32.mrb[0].mxu0
      %v1241 = vadd.f32 0.0, %v1240
      %v1242 = vpop.f32.mrb[0].mxu0
      %1243 = vmatprep.mubr.bf16.mxu0 0
      %1244 = vmatmul.mubr.bf16.gmra.mrb[0].mxu0 %v1034
      %v1245 = vpop.f32.mrb[0].mxu0
      %v1246 = vadd.f32 0.0, %v1245
      %v1247 = vpop.f32.mrb[0].mxu0
      %v1248 = vpop.f32.mrb[0].mxu0
      %v1249 = vadd.f32 0.0, %v1248
      %v1250 = vpop.f32.mrb[0].mxu0
      %1251 = vmatprep.mubr.bf16.mxu0 0
      %1252 = vmatmul.mubr.bf16.gmra.mrb[0].mxu0 %v1033
      %v1253 = vpop.f32.mrb[0].mxu0
      %v1254 = vadd.f32 0.0, %v1253
      %v1255 = vpop.f32.mrb[0].mxu0
      %v1256 = vpop.f32.mrb[0].mxu0
      %v1257 = vpop.f32.mrb[0].mxu0
      %1258 = vdwg.mxu0
      %v1275 = vunpack.c.l.b16 %v858
      %v1276 = vunpack.c.l.b16 %v859
      %v1277 = vunpack.c.l.b16 %v860
      %v1278 = vunpack.c.l.b16 %v861
      %v1279 = vunpack.c.l.b16 %v862
      %v1280 = vunpack.c.l.b16 %v863
      %v1281 = vunpack.c.l.b16 %v864
      %v1282 = vunpack.c.l.b16 %v865
      %v1283 = vunpack.c.l.b16 %v866
      %v1284 = vunpack.c.l.b16 %v867
      %v1285 = vunpack.c.l.b16 %v868
      %v1286 = vunpack.c.l.b16 %v869
      %v1287 = vunpack.c.l.b16 %v870
      %v1288 = vunpack.c.l.b16 %v871
      %v1289 = vunpack.c.l.b16 %v872
      %v1290 = vunpack.c.l.b16 %v873
      %v1291 = vpack.c.b16 %v1276, %v1275
      %v1292 = vpack.c.b16 %v1278, %v1277
      %v1293 = vpack.c.b16 %v1280, %v1279
      %v1294 = vpack.c.b16 %v1282, %v1281
      %v1295 = vpack.c.b16 %v1284, %v1283
      %v1296 = vpack.c.b16 %v1286, %v1285
      %v1297 = vpack.c.b16 %v1288, %v1287
      %v1298 = vpack.c.b16 %v1290, %v1289
      %1307 = vmatprep.subr.bf16.mxu0 0
      %1308 = vmatpush1.bf16.msra.mxu0 %v1291
      %1309 = vmatprep.subr.bf16.mxu0 0
      %1310 = vmatpush1.bf16.msra.mxu0 %v1292
      %1311 = vmatprep.subr.bf16.mxu0 0
      %1312 = vmatpush1.bf16.msra.mxu0 %v1293
      %1313 = vmatprep.subr.bf16.mxu0 0
      %1314 = vmatpush1.bf16.msra.mxu0 %v1294
      %1315 = vmatprep.subr.bf16.mxu0 0
      %1316 = vmatpush1.bf16.msra.mxu0 %v1295
      %1317 = vmatprep.subr.bf16.mxu0 0
      %1318 = vmatpush1.bf16.msra.mxu0 %v1296
      %1319 = vmatprep.subr.bf16.mxu0 0
      %1320 = vmatpush1.bf16.msra.mxu0 %v1297
      %1321 = vmatprep.subr.bf16.mxu0 0
      %1322 = vmatpush1.bf16.msra.mxu0 %v1298
      %1323 = vmatprep.subr.bf16.mxu0 0
      %1324 = vmatpush1.bf16.msra.mxu0 0
      %1325 = vmatprep.subr.bf16.mxu0 0
      %1326 = vmatpush1.bf16.msra.mxu0 0
      %1327 = vmatprep.subr.bf16.mxu0 0
      %1328 = vmatpush1.bf16.msra.mxu0 0
      %1329 = vmatprep.subr.bf16.mxu0 0
      %1330 = vmatpush1.bf16.msra.mxu0 0
      %1331 = vmatprep.subr.bf16.mxu0 0
      %1332 = vmatpush1.bf16.msra.mxu0 0
      %1333 = vmatprep.subr.bf16.mxu0 0
      %1334 = vmatpush1.bf16.msra.mxu0 0
      %1335 = vmatprep.subr.bf16.mxu0 0
      %1336 = vmatpush1.bf16.msra.mxu0 0
      %1337 = vmatprep.subr.bf16.mxu0 0
      %1338 = vmatpush1.bf16.msra.mxu0 0
      %1339 = vmatprep.mubr.bf16.mxu0 0
      %1340 = vmatmul.mubr.bf16.gmra.mrb[0].mxu0 %v842
      %v1341 = vpop.f32.mrb[0].mxu0
      %v1342 = vadd.f32 %v1134, %v1341
      %v1343 = vpop.f32.mrb[0].mxu0
      %v1344 = vpop.f32.mrb[0].mxu0
      %v1345 = vadd.f32 %v1137, %v1344
      %v1346 = vpop.f32.mrb[0].mxu0
      %1347 = vmatprep.mubr.bf16.mxu0 0
      %1348 = vmatmul.mubr.bf16.gmra.mrb[0].mxu0 %v843
      %v1349 = vpop.f32.mrb[0].mxu0
      %v1350 = vadd.f32 %v1142, %v1349
      %v1351 = vpop.f32.mrb[0].mxu0
      %v1352 = vpop.f32.mrb[0].mxu0
      %v1353 = vadd.f32 %v1145, %v1352
      %v1354 = vpop.f32.mrb[0].mxu0
      %1355 = vmatprep.mubr.bf16.mxu0 0
      %1356 = vmatmul.mubr.bf16.gmra.mrb[0].mxu0 %v844
      %v1357 = vpop.f32.mrb[0].mxu0
      %v1358 = vadd.f32 %v1150, %v1357
      %v1359 = vpop.f32.mrb[0].mxu0
      %v1360 = vpop.f32.mrb[0].mxu0
      %v1361 = vadd.f32 %v1153, %v1360
      %v1362 = vpop.f32.mrb[0].mxu0
      %1363 = vmatprep.mubr.bf16.mxu0 0
      %1364 = vmatmul.mubr.bf16.gmra.mrb[0].mxu0 %v845
      %v1365 = vpop.f32.mrb[0].mxu0
      %v1366 = vadd.f32 %v1158, %v1365
      %v1367 = vpop.f32.mrb[0].mxu0
      %v1368 = vpop.f32.mrb[0].mxu0
      %v1369 = vadd.f32 %v1161, %v1368
      %v1370 = vpop.f32.mrb[0].mxu0
      %1371 = vmatprep.mubr.bf16.mxu0 0
      %1372 = vmatmul.mubr.bf16.gmra.mrb[0].mxu0 %v846
      %v1373 = vpop.f32.mrb[0].mxu0
      %v1374 = vadd.f32 %v1166, %v1373
      %v1375 = vpop.f32.mrb[0].mxu0
      %v1376 = vpop.f32.mrb[0].mxu0
      %v1377 = vadd.f32 %v1169, %v1376
      %v1378 = vpop.f32.mrb[0].mxu0
      %1379 = vmatprep.mubr.bf16.mxu0 0
      %1380 = vmatmul.mubr.bf16.gmra.mrb[0].mxu0 %v847
      %v1381 = vpop.f32.mrb[0].mxu0
      %v1382 = vadd.f32 %v1174, %v1381
      %v1383 = vpop.f32.mrb[0].mxu0
      %v1384 = vpop.f32.mrb[0].mxu0
      %v1385 = vadd.f32 %v1177, %v1384
      %v1386 = vpop.f32.mrb[0].mxu0
      %1387 = vmatprep.mubr.bf16.mxu0 0
      %1388 = vmatmul.mubr.bf16.gmra.mrb[0].mxu0 %v848
      %v1389 = vpop.f32.mrb[0].mxu0
      %v1390 = vadd.f32 %v1182, %v1389
      %v1391 = vpop.f32.mrb[0].mxu0
      %v1392 = vpop.f32.mrb[0].mxu0
      %v1393 = vadd.f32 %v1185, %v1392
      %v1394 = vpop.f32.mrb[0].mxu0
      %1395 = vmatprep.mubr.bf16.mxu0 0
      %1396 = vmatmul.mubr.bf16.gmra.mrb[0].mxu0 %v849
      %v1397 = vpop.f32.mrb[0].mxu0
      %v1398 = vadd.f32 %v1190, %v1397
      %v1399 = vpop.f32.mrb[0].mxu0
      %v1400 = vpop.f32.mrb[0].mxu0
      %v1401 = vadd.f32 %v1193, %v1400
      %v1402 = vpop.f32.mrb[0].mxu0
      %1403 = vmatprep.mubr.bf16.mxu0 0
      %1404 = vmatmul.mubr.bf16.gmra.mrb[0].mxu0 %v850
      %v1405 = vpop.f32.mrb[0].mxu0
      %v1406 = vadd.f32 %v1198, %v1405
      %v1407 = vpop.f32.mrb[0].mxu0
      %v1408 = vpop.f32.mrb[0].mxu0
      %v1409 = vadd.f32 %v1201, %v1408
      %v1410 = vpop.f32.mrb[0].mxu0
      %1411 = vmatprep.mubr.bf16.mxu0 0
      %1412 = vmatmul.mubr.bf16.gmra.mrb[0].mxu0 %v851
      %v1413 = vpop.f32.mrb[0].mxu0
      %v1414 = vadd.f32 %v1206, %v1413
      %v1415 = vpop.f32.mrb[0].mxu0
      %v1416 = vpop.f32.mrb[0].mxu0
      %v1417 = vadd.f32 %v1209, %v1416
      %v1418 = vpop.f32.mrb[0].mxu0
      %1419 = vmatprep.mubr.bf16.mxu0 0
      %1420 = vmatmul.mubr.bf16.gmra.mrb[0].mxu0 %v852
      %v1421 = vpop.f32.mrb[0].mxu0
      %v1422 = vadd.f32 %v1214, %v1421
      %v1423 = vpop.f32.mrb[0].mxu0
      %v1424 = vpop.f32.mrb[0].mxu0
      %v1425 = vadd.f32 %v1217, %v1424
      %v1426 = vpop.f32.mrb[0].mxu0
      %1427 = vmatprep.mubr.bf16.mxu0 0
      %1428 = vmatmul.mubr.bf16.gmra.mrb[0].mxu0 %v853
      %v1429 = vpop.f32.mrb[0].mxu0
      %v1430 = vadd.f32 %v1222, %v1429
      %v1431 = vpop.f32.mrb[0].mxu0
      %v1432 = vpop.f32.mrb[0].mxu0
      %v1433 = vadd.f32 %v1225, %v1432
      %v1434 = vpop.f32.mrb[0].mxu0
      %1435 = vmatprep.mubr.bf16.mxu0 0
      %1436 = vmatmul.mubr.bf16.gmra.mrb[0].mxu0 %v854
      %v1437 = vpop.f32.mrb[0].mxu0
      %v1438 = vadd.f32 %v1230, %v1437
      %v1439 = vpop.f32.mrb[0].mxu0
      %v1440 = vpop.f32.mrb[0].mxu0
      %v1441 = vadd.f32 %v1233, %v1440
      %v1442 = vpop.f32.mrb[0].mxu0
      %1443 = vmatprep.mubr.bf16.mxu0 0
      %1444 = vmatmul.mubr.bf16.gmra.mrb[0].mxu0 %v855
      %v1445 = vpop.f32.mrb[0].mxu0
      %v1446 = vadd.f32 %v1238, %v1445
      %v1447 = vpop.f32.mrb[0].mxu0
      %v1448 = vpop.f32.mrb[0].mxu0
      %v1449 = vadd.f32 %v1241, %v1448
      %v1450 = vpop.f32.mrb[0].mxu0
      %1451 = vmatprep.mubr.bf16.mxu0 0
      %1452 = vmatmul.mubr.bf16.gmra.mrb[0].mxu0 %v856
      %v1453 = vpop.f32.mrb[0].mxu0
      %v1454 = vadd.f32 %v1246, %v1453
      %v1455 = vpop.f32.mrb[0].mxu0
      %v1456 = vpop.f32.mrb[0].mxu0
      %v1457 = vadd.f32 %v1249, %v1456
      %v1458 = vpop.f32.mrb[0].mxu0
      %1459 = vmatprep.mubr.bf16.mxu0 0
      %1460 = vmatmul.mubr.bf16.gmra.mrb[0].mxu0 %v857
      %v1461 = vpop.f32.mrb[0].mxu0
      %v1462 = vadd.f32 %v1254, %v1461
      %v1463 = vpop.f32.mrb[0].mxu0
      %v1464 = vpop.f32.mrb[0].mxu0
      %v1465 = vpop.f32.mrb[0].mxu0
      %1466 = vdwg.mxu0
      %v1467 = vpack.c.bf16 %v841, %v840
      %s1468 = scalar_lea.vmem %s3, 128
      %v1469 = vld [vmem:[%s1468] sm:$0xf]
      %v1470 = vld [vmem:[%s1468 + $0x4] sm:$0xf]
      %v1471 = vld [vmem:[%s1468 + $0x8] sm:$0xf]
      %v1472 = vld [vmem:[%s1468 + $0xc] sm:$0xf]
      %v1473 = vld [vmem:[%s1468 + $0x10] sm:$0xf]
      %v1474 = vld [vmem:[%s1468 + $0x14] sm:$0xf]
      %v1475 = vld [vmem:[%s1468 + $0x18] sm:$0xf]
      %v1476 = vld [vmem:[%s1468 + $0x1c] sm:$0xf]
      %v1477 = vld [vmem:[%s1468 + $0x20] sm:$0xf]
      %v1478 = vld [vmem:[%s1468 + $0x24] sm:$0xf]
      %v1479 = vld [vmem:[%s1468 + $0x28] sm:$0xf]
      %v1480 = vld [vmem:[%s1468 + $0x2c] sm:$0xf]
      %v1481 = vld [vmem:[%s1468 + $0x30] sm:$0xf]
      %v1482 = vld [vmem:[%s1468 + $0x34] sm:$0xf]
      %v1483 = vld [vmem:[%s1468 + $0x38] sm:$0xf]
      %v1484 = vld [vmem:[%s1468 + $0x3c] sm:$0xf]
      %vm1501 = vcmask 1044480
      %v1502 = vrot.slane %v842, 3
      %v1503 = vrot.slane %v843, 3
      %v1504 = vsel %vm1501, %v1502, %v1503
      %v1505 = vrot.slane %v844, 3
      %v1506 = vsel %vm1501, %v1503, %v1505
      %v1507 = vrot.slane %v845, 3
      %v1508 = vsel %vm1501, %v1505, %v1507
      %v1509 = vrot.slane %v846, 3
      %v1510 = vsel %vm1501, %v1507, %v1509
      %v1511 = vrot.slane %v847, 3
      %v1512 = vsel %vm1501, %v1509, %v1511
      %v1513 = vrot.slane %v848, 3
      %v1514 = vsel %vm1501, %v1511, %v1513
      %v1515 = vrot.slane %v849, 3
      %v1516 = vsel %vm1501, %v1513, %v1515
      %v1517 = vrot.slane %v850, 3
      %v1518 = vsel %vm1501, %v1515, %v1517
      %v1519 = vrot.slane %v851, 3
      %v1520 = vsel %vm1501, %v1517, %v1519
      %v1521 = vrot.slane %v852, 3
      %v1522 = vsel %vm1501, %v1519, %v1521
      %v1523 = vrot.slane %v853, 3
      %v1524 = vsel %vm1501, %v1521, %v1523
      %v1525 = vrot.slane %v854, 3
      %v1526 = vsel %vm1501, %v1523, %v1525
      %v1527 = vrot.slane %v855, 3
      %v1528 = vsel %vm1501, %v1525, %v1527
      %v1529 = vrot.slane %v856, 3
      %v1530 = vsel %vm1501, %v1527, %v1529
      %v1531 = vrot.slane %v1467, 3
      %v1532 = vsel %vm1501, %v1529, %v1531
      %v1565 = vunpack.c.l.b16 %v1469
      %v1566 = vunpack.c.l.b16 %v1470
      %v1567 = vunpack.c.l.b16 %v1471
      %v1568 = vunpack.c.l.b16 %v1472
      %v1569 = vunpack.c.l.b16 %v1473
      %v1570 = vunpack.c.l.b16 %v1474
      %v1571 = vunpack.c.l.b16 %v1475
      %v1572 = vunpack.c.l.b16 %v1476
      %v1573 = vunpack.c.l.b16 %v1477
      %v1574 = vunpack.c.l.b16 %v1478
      %v1575 = vunpack.c.l.b16 %v1479
      %v1576 = vunpack.c.l.b16 %v1480
      %v1577 = vunpack.c.l.b16 %v1481
      %v1578 = vunpack.c.l.b16 %v1482
      %v1579 = vunpack.c.l.b16 %v1483
      %v1580 = vunpack.c.l.b16 %v1484
      %v1581 = vpack.c.b16 %v1566, %v1565
      %v1582 = vpack.c.b16 %v1568, %v1567
      %v1583 = vpack.c.b16 %v1570, %v1569
      %v1584 = vpack.c.b16 %v1572, %v1571
      %v1585 = vpack.c.b16 %v1574, %v1573
      %v1586 = vpack.c.b16 %v1576, %v1575
      %v1587 = vpack.c.b16 %v1578, %v1577
      %v1588 = vpack.c.b16 %v1580, %v1579
      %1597 = vmatprep.subr.bf16.mxu0 0
      %1598 = vmatpush1.bf16.msra.mxu0 %v1581
      %1599 = vmatprep.subr.bf16.mxu0 0
      %1600 = vmatpush1.bf16.msra.mxu0 %v1582
      %1601 = vmatprep.subr.bf16.mxu0 0
      %1602 = vmatpush1.bf16.msra.mxu0 %v1583
      %1603 = vmatprep.subr.bf16.mxu0 0
      %1604 = vmatpush1.bf16.msra.mxu0 %v1584
      %1605 = vmatprep.subr.bf16.mxu0 0
      %1606 = vmatpush1.bf16.msra.mxu0 %v1585
      %1607 = vmatprep.subr.bf16.mxu0 0
      %1608 = vmatpush1.bf16.msra.mxu0 %v1586
      %1609 = vmatprep.subr.bf16.mxu0 0
      %1610 = vmatpush1.bf16.msra.mxu0 %v1587
      %1611 = vmatprep.subr.bf16.mxu0 0
      %1612 = vmatpush1.bf16.msra.mxu0 %v1588
      %1613 = vmatprep.subr.bf16.mxu0 0
      %1614 = vmatpush1.bf16.msra.mxu0 0
      %1615 = vmatprep.subr.bf16.mxu0 0
      %1616 = vmatpush1.bf16.msra.mxu0 0
      %1617 = vmatprep.subr.bf16.mxu0 0
      %1618 = vmatpush1.bf16.msra.mxu0 0
      %1619 = vmatprep.subr.bf16.mxu0 0
      %1620 = vmatpush1.bf16.msra.mxu0 0
      %1621 = vmatprep.subr.bf16.mxu0 0
      %1622 = vmatpush1.bf16.msra.mxu0 0
      %1623 = vmatprep.subr.bf16.mxu0 0
      %1624 = vmatpush1.bf16.msra.mxu0 0
      %1625 = vmatprep.subr.bf16.mxu0 0
      %1626 = vmatpush1.bf16.msra.mxu0 0
      %1627 = vmatprep.subr.bf16.mxu0 0
      %1628 = vmatpush1.bf16.msra.mxu0 0
      %1629 = vmatprep.mubr.bf16.mxu0 0
      %1630 = vmatmul.mubr.bf16.gmra.mrb[0].mxu0 %v1504
      %v1631 = vpop.f32.mrb[0].mxu0
      %v1632 = vadd.f32 0.0, %v1631
      %v1633 = vpop.f32.mrb[0].mxu0
      %v1634 = vpop.f32.mrb[0].mxu0
      %v1635 = vadd.f32 0.0, %v1634
      %v1636 = vpop.f32.mrb[0].mxu0
      %1637 = vmatprep.mubr.bf16.mxu0 0
      %1638 = vmatmul.mubr.bf16.gmra.mrb[0].mxu0 %v1506
      %v1639 = vpop.f32.mrb[0].mxu0
      %v1640 = vadd.f32 0.0, %v1639
      %v1641 = vpop.f32.mrb[0].mxu0
      %v1642 = vpop.f32.mrb[0].mxu0
      %v1643 = vadd.f32 0.0, %v1642
      %v1644 = vpop.f32.mrb[0].mxu0
      %1645 = vmatprep.mubr.bf16.mxu0 0
      %1646 = vmatmul.mubr.bf16.gmra.mrb[0].mxu0 %v1508
      %v1647 = vpop.f32.mrb[0].mxu0
      %v1648 = vadd.f32 0.0, %v1647
      %v1649 = vpop.f32.mrb[0].mxu0
      %v1650 = vpop.f32.mrb[0].mxu0
      %v1651 = vadd.f32 0.0, %v1650
      %v1652 = vpop.f32.mrb[0].mxu0
      %1653 = vmatprep.mubr.bf16.mxu0 0
      %1654 = vmatmul.mubr.bf16.gmra.mrb[0].mxu0 %v1510
      %v1655 = vpop.f32.mrb[0].mxu0
      %v1656 = vadd.f32 0.0, %v1655
      %v1657 = vpop.f32.mrb[0].mxu0
      %v1658 = vpop.f32.mrb[0].mxu0
      %v1659 = vadd.f32 0.0, %v1658
      %v1660 = vpop.f32.mrb[0].mxu0
      %1661 = vmatprep.mubr.bf16.mxu0 0
      %1662 = vmatmul.mubr.bf16.gmra.mrb[0].mxu0 %v1512
      %v1663 = vpop.f32.mrb[0].mxu0
      %v1664 = vadd.f32 0.0, %v1663
      %v1665 = vpop.f32.mrb[0].mxu0
      %v1666 = vpop.f32.mrb[0].mxu0
      %v1667 = vadd.f32 0.0, %v1666
      %v1668 = vpop.f32.mrb[0].mxu0
      %1669 = vmatprep.mubr.bf16.mxu0 0
      %1670 = vmatmul.mubr.bf16.gmra.mrb[0].mxu0 %v1514
      %v1671 = vpop.f32.mrb[0].mxu0
      %v1672 = vadd.f32 0.0, %v1671
      %v1673 = vpop.f32.mrb[0].mxu0
      %v1674 = vpop.f32.mrb[0].mxu0
      %v1675 = vadd.f32 0.0, %v1674
      %v1676 = vpop.f32.mrb[0].mxu0
      %1677 = vmatprep.mubr.bf16.mxu0 0
      %1678 = vmatmul.mubr.bf16.gmra.mrb[0].mxu0 %v1516
      %v1679 = vpop.f32.mrb[0].mxu0
      %v1680 = vadd.f32 0.0, %v1679
      %v1681 = vpop.f32.mrb[0].mxu0
      %v1682 = vpop.f32.mrb[0].mxu0
      %v1683 = vadd.f32 0.0, %v1682
      %v1684 = vpop.f32.mrb[0].mxu0
      %1685 = vmatprep.mubr.bf16.mxu0 0
      %1686 = vmatmul.mubr.bf16.gmra.mrb[0].mxu0 %v1518
      %v1687 = vpop.f32.mrb[0].mxu0
      %v1688 = vadd.f32 0.0, %v1687
      %v1689 = vpop.f32.mrb[0].mxu0
      %v1690 = vpop.f32.mrb[0].mxu0
      %v1691 = vadd.f32 0.0, %v1690
      %v1692 = vpop.f32.mrb[0].mxu0
      %1693 = vmatprep.mubr.bf16.mxu0 0
      %1694 = vmatmul.mubr.bf16.gmra.mrb[0].mxu0 %v1520
      %v1695 = vpop.f32.mrb[0].mxu0
      %v1696 = vadd.f32 0.0, %v1695
      %v1697 = vpop.f32.mrb[0].mxu0
      %v1698 = vpop.f32.mrb[0].mxu0
      %v1699 = vadd.f32 0.0, %v1698
      %v1700 = vpop.f32.mrb[0].mxu0
      %1701 = vmatprep.mubr.bf16.mxu0 0
      %1702 = vmatmul.mubr.bf16.gmra.mrb[0].mxu0 %v1522
      %v1703 = vpop.f32.mrb[0].mxu0
      %v1704 = vadd.f32 0.0, %v1703
      %v1705 = vpop.f32.mrb[0].mxu0
      %v1706 = vpop.f32.mrb[0].mxu0
      %v1707 = vadd.f32 0.0, %v1706
      %v1708 = vpop.f32.mrb[0].mxu0
      %1709 = vmatprep.mubr.bf16.mxu0 0
      %1710 = vmatmul.mubr.bf16.gmra.mrb[0].mxu0 %v1524
      %v1711 = vpop.f32.mrb[0].mxu0
      %v1712 = vadd.f32 0.0, %v1711
      %v1713 = vpop.f32.mrb[0].mxu0
      %v1714 = vpop.f32.mrb[0].mxu0
      %v1715 = vadd.f32 0.0, %v1714
      %v1716 = vpop.f32.mrb[0].mxu0
      %1717 = vmatprep.mubr.bf16.mxu0 0
      %1718 = vmatmul.mubr.bf16.gmra.mrb[0].mxu0 %v1526
      %v1719 = vpop.f32.mrb[0].mxu0
      %v1720 = vadd.f32 0.0, %v1719
      %v1721 = vpop.f32.mrb[0].mxu0
      %v1722 = vpop.f32.mrb[0].mxu0
      %v1723 = vadd.f32 0.0, %v1722
      %v1724 = vpop.f32.mrb[0].mxu0
      %1725 = vmatprep.mubr.bf16.mxu0 0
      %1726 = vmatmul.mubr.bf16.gmra.mrb[0].mxu0 %v1528
      %v1727 = vpop.f32.mrb[0].mxu0
      %v1728 = vadd.f32 0.0, %v1727
      %v1729 = vpop.f32.mrb[0].mxu0
      %v1730 = vpop.f32.mrb[0].mxu0
      %v1731 = vadd.f32 0.0, %v1730
      %v1732 = vpop.f32.mrb[0].mxu0
      %1733 = vmatprep.mubr.bf16.mxu0 0
      %1734 = vmatmul.mubr.bf16.gmra.mrb[0].mxu0 %v1530
      %v1735 = vpop.f32.mrb[0].mxu0
      %v1736 = vadd.f32 0.0, %v1735
      %v1737 = vpop.f32.mrb[0].mxu0
      %v1738 = vpop.f32.mrb[0].mxu0
      %v1739 = vadd.f32 0.0, %v1738
      %v1740 = vpop.f32.mrb[0].mxu0
      %1741 = vmatprep.mubr.bf16.mxu0 0
      %1742 = vmatmul.mubr.bf16.gmra.mrb[0].mxu0 %v1532
      %v1743 = vpop.f32.mrb[0].mxu0
      %v1744 = vadd.f32 0.0, %v1743
      %v1745 = vpop.f32.mrb[0].mxu0
      %v1746 = vpop.f32.mrb[0].mxu0
      %v1747 = vadd.f32 0.0, %v1746
      %v1748 = vpop.f32.mrb[0].mxu0
      %1749 = vmatprep.mubr.bf16.mxu0 0
      %1750 = vmatmul.mubr.bf16.gmra.mrb[0].mxu0 %v1531
      %v1751 = vpop.f32.mrb[0].mxu0
      %v1752 = vadd.f32 0.0, %v1751
      %v1753 = vpop.f32.mrb[0].mxu0
      %v1754 = vpop.f32.mrb[0].mxu0
      %v1755 = vpop.f32.mrb[0].mxu0
      %1756 = vdwg.mxu0
      %v1757 = vadd.f32 %v1342, %v1632
      %v1758 = vadd.f32 %v1345, %v1635
      %v1759 = vadd.f32 %v1350, %v1640
      %v1760 = vadd.f32 %v1353, %v1643
      %v1761 = vadd.f32 %v1358, %v1648
      %v1762 = vadd.f32 %v1361, %v1651
      %v1763 = vadd.f32 %v1366, %v1656
      %v1764 = vadd.f32 %v1369, %v1659
      %v1765 = vadd.f32 %v1374, %v1664
      %v1766 = vadd.f32 %v1377, %v1667
      %v1767 = vadd.f32 %v1382, %v1672
      %v1768 = vadd.f32 %v1385, %v1675
      %v1769 = vadd.f32 %v1390, %v1680
      %v1770 = vadd.f32 %v1393, %v1683
      %v1771 = vadd.f32 %v1398, %v1688
      %v1772 = vadd.f32 %v1401, %v1691
      %v1773 = vadd.f32 %v1406, %v1696
      %v1774 = vadd.f32 %v1409, %v1699
      %v1775 = vadd.f32 %v1414, %v1704
      %v1776 = vadd.f32 %v1417, %v1707
      %v1777 = vadd.f32 %v1422, %v1712
      %v1778 = vadd.f32 %v1425, %v1715
      %v1779 = vadd.f32 %v1430, %v1720
      %v1780 = vadd.f32 %v1433, %v1723
      %v1781 = vadd.f32 %v1438, %v1728
      %v1782 = vadd.f32 %v1441, %v1731
      %v1783 = vadd.f32 %v1446, %v1736
      %v1784 = vadd.f32 %v1449, %v1739
      %v1785 = vadd.f32 %v1454, %v1744
      %v1786 = vadd.f32 %v1457, %v1747
      %v1787 = vadd.f32 %v1462, %v1752
      %v1788 = vld [vmem:[%s4] sm:$0x1]
      %v1790 = vlaneseq
      %v1791 = vshrl.u32 %v1790, 7
      %v1792 = vsub.s32 0, %v1791
      %v1793 = vrot.slane %v1788, %v1792
      %v1795 = vadd.f32 %v1757, %v1793
      %v1796 = vadd.f32 %v1758, %v1793
      %v1797 = vadd.f32 %v1759, %v1793
      %v1798 = vadd.f32 %v1760, %v1793
      %v1799 = vadd.f32 %v1761, %v1793
      %v1800 = vadd.f32 %v1762, %v1793
      %v1801 = vadd.f32 %v1763, %v1793
      %v1802 = vadd.f32 %v1764, %v1793
      %v1803 = vadd.f32 %v1765, %v1793
      %v1804 = vadd.f32 %v1766, %v1793
      %v1805 = vadd.f32 %v1767, %v1793
      %v1806 = vadd.f32 %v1768, %v1793
      %v1807 = vadd.f32 %v1769, %v1793
      %v1808 = vadd.f32 %v1770, %v1793
      %v1809 = vadd.f32 %v1771, %v1793
      %v1810 = vadd.f32 %v1772, %v1793
      %v1811 = vadd.f32 %v1773, %v1793
      %v1812 = vadd.f32 %v1774, %v1793
      %v1813 = vadd.f32 %v1775, %v1793
      %v1814 = vadd.f32 %v1776, %v1793
      %v1815 = vadd.f32 %v1777, %v1793
      %v1816 = vadd.f32 %v1778, %v1793
      %v1817 = vadd.f32 %v1779, %v1793
      %v1818 = vadd.f32 %v1780, %v1793
      %v1819 = vadd.f32 %v1781, %v1793
      %v1820 = vadd.f32 %v1782, %v1793
      %v1821 = vadd.f32 %v1783, %v1793
      %v1822 = vadd.f32 %v1784, %v1793
      %v1823 = vadd.f32 %v1785, %v1793
      %v1824 = vadd.f32 %v1786, %v1793
      %v1825 = vadd.f32 %v1787, %v1793
      %vm1857 = vcmask 1044480
      %v1858 = vrot.slane %v620, 3
      %v1859 = vrot.slane %v623, 3
      %v1860 = vsel %vm1857, %v1858, %v1859
      %v1861 = vrot.slane %v628, 3
      %v1862 = vsel %vm1857, %v1859, %v1861
      %v1863 = vrot.slane %v631, 3
      %v1864 = vsel %vm1857, %v1861, %v1863
      %v1865 = vrot.slane %v636, 3
      %v1866 = vsel %vm1857, %v1863, %v1865
      %v1867 = vrot.slane %v639, 3
      %v1868 = vsel %vm1857, %v1865, %v1867
      %v1869 = vrot.slane %v644, 3
      %v1870 = vsel %vm1857, %v1867, %v1869
      %v1871 = vrot.slane %v647, 3
      %v1872 = vsel %vm1857, %v1869, %v1871
      %v1873 = vrot.slane %v652, 3
      %v1874 = vsel %vm1857, %v1871, %v1873
      %v1875 = vrot.slane %v655, 3
      %v1876 = vsel %vm1857, %v1873, %v1875
      %v1877 = vrot.slane %v660, 3
      %v1878 = vsel %vm1857, %v1875, %v1877
      %v1879 = vrot.slane %v663, 3
      %v1880 = vsel %vm1857, %v1877, %v1879
      %v1881 = vrot.slane %v668, 3
      %v1882 = vsel %vm1857, %v1879, %v1881
      %v1883 = vrot.slane %v671, 3
      %v1884 = vsel %vm1857, %v1881, %v1883
      %v1885 = vrot.slane %v676, 3
      %v1886 = vsel %vm1857, %v1883, %v1885
      %v1887 = vrot.slane %v679, 3
      %v1888 = vsel %vm1857, %v1885, %v1887
      %v1889 = vrot.slane %v684, 3
      %v1890 = vsel %vm1857, %v1887, %v1889
      %v1891 = vrot.slane %v687, 3
      %v1892 = vsel %vm1857, %v1889, %v1891
      %v1893 = vrot.slane %v692, 3
      %v1894 = vsel %vm1857, %v1891, %v1893
      %v1895 = vrot.slane %v695, 3
      %v1896 = vsel %vm1857, %v1893, %v1895
      %v1897 = vrot.slane %v700, 3
      %v1898 = vsel %vm1857, %v1895, %v1897
      %v1899 = vrot.slane %v703, 3
      %v1900 = vsel %vm1857, %v1897, %v1899
      %v1901 = vrot.slane %v708, 3
      %v1902 = vsel %vm1857, %v1899, %v1901
      %v1903 = vrot.slane %v711, 3
      %v1904 = vsel %vm1857, %v1901, %v1903
      %v1905 = vrot.slane %v716, 3
      %v1906 = vsel %vm1857, %v1903, %v1905
      %v1907 = vrot.slane %v719, 3
      %v1908 = vsel %vm1857, %v1905, %v1907
      %v1909 = vrot.slane %v724, 3
      %v1910 = vsel %vm1857, %v1907, %v1909
      %v1911 = vrot.slane %v727, 3
      %v1912 = vsel %vm1857, %v1909, %v1911
      %v1913 = vrot.slane %v732, 3
      %v1914 = vsel %vm1857, %v1911, %v1913
      %v1915 = vrot.slane %v735, 3
      %v1916 = vsel %vm1857, %v1913, %v1915
      %v1917 = vrot.slane %v740, 3
      %v1918 = vsel %vm1857, %v1915, %v1917
      %v1950 = vadd.f32 %v1795, %v1860
      %v1951 = vadd.f32 %v1796, %v1862
      %v1952 = vadd.f32 %v1797, %v1864
      %v1953 = vadd.f32 %v1798, %v1866
      %v1954 = vadd.f32 %v1799, %v1868
      %v1955 = vadd.f32 %v1800, %v1870
      %v1956 = vadd.f32 %v1801, %v1872
      %v1957 = vadd.f32 %v1802, %v1874
      %v1958 = vadd.f32 %v1803, %v1876
      %v1959 = vadd.f32 %v1804, %v1878
      %v1960 = vadd.f32 %v1805, %v1880
      %v1961 = vadd.f32 %v1806, %v1882
      %v1962 = vadd.f32 %v1807, %v1884
      %v1963 = vadd.f32 %v1808, %v1886
      %v1964 = vadd.f32 %v1809, %v1888
      %v1965 = vadd.f32 %v1810, %v1890
      %v1966 = vadd.f32 %v1811, %v1892
      %v1967 = vadd.f32 %v1812, %v1894
      %v1968 = vadd.f32 %v1813, %v1896
      %v1969 = vadd.f32 %v1814, %v1898
      %v1970 = vadd.f32 %v1815, %v1900
      %v1971 = vadd.f32 %v1816, %v1902
      %v1972 = vadd.f32 %v1817, %v1904
      %v1973 = vadd.f32 %v1818, %v1906
      %v1974 = vadd.f32 %v1819, %v1908
      %v1975 = vadd.f32 %v1820, %v1910
      %v1976 = vadd.f32 %v1821, %v1912
      %v1977 = vadd.f32 %v1822, %v1914
      %v1978 = vadd.f32 %v1823, %v1916
      %v1979 = vadd.f32 %v1824, %v1918
      %v1980 = vadd.f32 %v1825, %v1917
      %vm1981 = vcmp.ge.f32.partialorder %v1950, 0.0
      %vm1982 = vcmp.ge.f32.partialorder %v1951, 0.0
      %vm1983 = vcmp.ge.f32.partialorder %v1952, 0.0
      %vm1984 = vcmp.ge.f32.partialorder %v1953, 0.0
      %vm1985 = vcmp.ge.f32.partialorder %v1954, 0.0
      %vm1986 = vcmp.ge.f32.partialorder %v1955, 0.0
      %vm1987 = vcmp.ge.f32.partialorder %v1956, 0.0
      %vm1988 = vcmp.ge.f32.partialorder %v1957, 0.0
      %vm1989 = vcmp.ge.f32.partialorder %v1958, 0.0
      %vm1990 = vcmp.ge.f32.partialorder %v1959, 0.0
      %vm1991 = vcmp.ge.f32.partialorder %v1960, 0.0
      %vm1992 = vcmp.ge.f32.partialorder %v1961, 0.0
      %vm1993 = vcmp.ge.f32.partialorder %v1962, 0.0
      %vm1994 = vcmp.ge.f32.partialorder %v1963, 0.0
      %vm1995 = vcmp.ge.f32.partialorder %v1964, 0.0
      %vm1996 = vcmp.ge.f32.partialorder %v1965, 0.0
      %vm1997 = vcmp.ge.f32.partialorder %v1966, 0.0
      %vm1998 = vcmp.ge.f32.partialorder %v1967, 0.0
      %vm1999 = vcmp.ge.f32.partialorder %v1968, 0.0
      %vm2000 = vcmp.ge.f32.partialorder %v1969, 0.0
      %vm2001 = vcmp.ge.f32.partialorder %v1970, 0.0
      %vm2002 = vcmp.ge.f32.partialorder %v1971, 0.0
      %vm2003 = vcmp.ge.f32.partialorder %v1972, 0.0
      %vm2004 = vcmp.ge.f32.partialorder %v1973, 0.0
      %vm2005 = vcmp.ge.f32.partialorder %v1974, 0.0
      %vm2006 = vcmp.ge.f32.partialorder %v1975, 0.0
      %vm2007 = vcmp.ge.f32.partialorder %v1976, 0.0
      %vm2008 = vcmp.ge.f32.partialorder %v1977, 0.0
      %vm2009 = vcmp.ge.f32.partialorder %v1978, 0.0
      %vm2010 = vcmp.ge.f32.partialorder %v1979, 0.0
      %vm2011 = vcmp.ge.f32.partialorder %v1980, 0.0
      %v2012 = vmul.f32 %v1950, 0.1
      %v2013 = vmul.f32 %v1951, 0.1
      %v2014 = vmul.f32 %v1952, 0.1
      %v2015 = vmul.f32 %v1953, 0.1
      %v2016 = vmul.f32 %v1954, 0.1
      %v2017 = vmul.f32 %v1955, 0.1
      %v2018 = vmul.f32 %v1956, 0.1
      %v2019 = vmul.f32 %v1957, 0.1
      %v2020 = vmul.f32 %v1958, 0.1
      %v2021 = vmul.f32 %v1959, 0.1
      %v2022 = vmul.f32 %v1960, 0.1
      %v2023 = vmul.f32 %v1961, 0.1
      %v2024 = vmul.f32 %v1962, 0.1
      %v2025 = vmul.f32 %v1963, 0.1
      %v2026 = vmul.f32 %v1964, 0.1
      %v2027 = vmul.f32 %v1965, 0.1
      %v2028 = vmul.f32 %v1966, 0.1
      %v2029 = vmul.f32 %v1967, 0.1
      %v2030 = vmul.f32 %v1968, 0.1
      %v2031 = vmul.f32 %v1969, 0.1
      %v2032 = vmul.f32 %v1970, 0.1
      %v2033 = vmul.f32 %v1971, 0.1
      %v2034 = vmul.f32 %v1972, 0.1
      %v2035 = vmul.f32 %v1973, 0.1
      %v2036 = vmul.f32 %v1974, 0.1
      %v2037 = vmul.f32 %v1975, 0.1
      %v2038 = vmul.f32 %v1976, 0.1
      %v2039 = vmul.f32 %v1977, 0.1
      %v2040 = vmul.f32 %v1978, 0.1
      %v2041 = vmul.f32 %v1979, 0.1
      %v2042 = vmul.f32 %v1980, 0.1
      %v2043 = vsel %vm1981, %v1950, %v2012
      %v2044 = vsel %vm1982, %v1951, %v2013
      %v2045 = vsel %vm1983, %v1952, %v2014
      %v2046 = vsel %vm1984, %v1953, %v2015
      %v2047 = vsel %vm1985, %v1954, %v2016
      %v2048 = vsel %vm1986, %v1955, %v2017
      %v2049 = vsel %vm1987, %v1956, %v2018
      %v2050 = vsel %vm1988, %v1957, %v2019
      %v2051 = vsel %vm1989, %v1958, %v2020
      %v2052 = vsel %vm1990, %v1959, %v2021
      %v2053 = vsel %vm1991, %v1960, %v2022
      %v2054 = vsel %vm1992, %v1961, %v2023
      %v2055 = vsel %vm1993, %v1962, %v2024
      %v2056 = vsel %vm1994, %v1963, %v2025
      %v2057 = vsel %vm1995, %v1964, %v2026
      %v2058 = vsel %vm1996, %v1965, %v2027
      %v2059 = vsel %vm1997, %v1966, %v2028
      %v2060 = vsel %vm1998, %v1967, %v2029
      %v2061 = vsel %vm1999, %v1968, %v2030
      %v2062 = vsel %vm2000, %v1969, %v2031
      %v2063 = vsel %vm2001, %v1970, %v2032
      %v2064 = vsel %vm2002, %v1971, %v2033
      %v2065 = vsel %vm2003, %v1972, %v2034
      %v2066 = vsel %vm2004, %v1973, %v2035
      %v2067 = vsel %vm2005, %v1974, %v2036
      %v2068 = vsel %vm2006, %v1975, %v2037
      %v2069 = vsel %vm2007, %v1976, %v2038
      %v2070 = vsel %vm2008, %v1977, %v2039
      %v2071 = vsel %vm2009, %v1978, %v2040
      %v2072 = vsel %vm2010, %v1979, %v2041
      %v2073 = vsel %vm2011, %v1980, %v2042
      %v2074 = vpack.c.bf16 %v2044, %v2043
      %v2075 = vpack.c.bf16 %v2046, %v2045
      %v2076 = vpack.c.bf16 %v2048, %v2047
      %v2077 = vpack.c.bf16 %v2050, %v2049
      %v2078 = vpack.c.bf16 %v2052, %v2051
      %v2079 = vpack.c.bf16 %v2054, %v2053
      %v2080 = vpack.c.bf16 %v2056, %v2055
      %v2081 = vpack.c.bf16 %v2058, %v2057
      %v2082 = vpack.c.bf16 %v2060, %v2059
      %v2083 = vpack.c.bf16 %v2062, %v2061
      %v2084 = vpack.c.bf16 %v2064, %v2063
      %v2085 = vpack.c.bf16 %v2066, %v2065
      %v2086 = vpack.c.bf16 %v2068, %v2067
      %v2087 = vpack.c.bf16 %v2070, %v2069
      %v2088 = vpack.c.bf16 %v2072, %v2071
      %v2089 = vld [vmem:[%s5] sm:$0xf]
      %v2090 = vld [vmem:[%s5 + $0x4] sm:$0xf]
      %v2091 = vld [vmem:[%s5 + $0x8] sm:$0xf]
      %v2092 = vld [vmem:[%s5 + $0xc] sm:$0xf]
      %v2093 = vld [vmem:[%s5 + $0x10] sm:$0xf]
      %v2094 = vld [vmem:[%s5 + $0x14] sm:$0xf]
      %v2095 = vld [vmem:[%s5 + $0x18] sm:$0xf]
      %v2096 = vld [vmem:[%s5 + $0x1c] sm:$0xf]
      %v2097 = vld [vmem:[%s5 + $0x20] sm:$0xf]
      %v2098 = vld [vmem:[%s5 + $0x24] sm:$0xf]
      %v2099 = vld [vmem:[%s5 + $0x28] sm:$0xf]
      %v2100 = vld [vmem:[%s5 + $0x2c] sm:$0xf]
      %v2101 = vld [vmem:[%s5 + $0x30] sm:$0xf]
      %v2102 = vld [vmem:[%s5 + $0x34] sm:$0xf]
      %v2103 = vld [vmem:[%s5 + $0x38] sm:$0xf]
      %v2104 = vld [vmem:[%s5 + $0x3c] sm:$0xf]
      %v2105 = vpack.c.bf16 %v2073, %v2073
      %s2106 = scalar_lea.vmem %s5, 64
      %v2107 = vld [vmem:[%s2106] sm:$0xf]
      %v2108 = vld [vmem:[%s2106 + $0x4] sm:$0xf]
      %v2109 = vld [vmem:[%s2106 + $0x8] sm:$0xf]
      %v2110 = vld [vmem:[%s2106 + $0xc] sm:$0xf]
      %v2111 = vld [vmem:[%s2106 + $0x10] sm:$0xf]
      %v2112 = vld [vmem:[%s2106 + $0x14] sm:$0xf]
      %v2113 = vld [vmem:[%s2106 + $0x18] sm:$0xf]
      %v2114 = vld [vmem:[%s2106 + $0x1c] sm:$0xf]
      %v2115 = vld [vmem:[%s2106 + $0x20] sm:$0xf]
      %v2116 = vld [vmem:[%s2106 + $0x24] sm:$0xf]
      %v2117 = vld [vmem:[%s2106 + $0x28] sm:$0xf]
      %v2118 = vld [vmem:[%s2106 + $0x2c] sm:$0xf]
      %v2119 = vld [vmem:[%s2106 + $0x30] sm:$0xf]
      %v2120 = vld [vmem:[%s2106 + $0x34] sm:$0xf]
      %v2121 = vld [vmem:[%s2106 + $0x38] sm:$0xf]
      %v2122 = vld [vmem:[%s2106 + $0x3c] sm:$0xf]
      %v2124 = vshrl.u32 %v2074, 16
      %v2126 = vrot.slane %v2124, 1
      %v2127 = vshll.u32 %v2074, 16
      %v2129 = vrot.slane %v2127, 2
      %v2130 = vor.u32 %v2126, %v2129
      %v2132 = vshrl.u32 %v2075, 16
      %v2134 = vrot.slane %v2132, 1
      %v2135 = vshll.u32 %v2075, 16
      %v2137 = vrot.slane %v2135, 2
      %v2138 = vor.u32 %v2134, %v2137
      %v2139 = vsel %vm891, %v2130, %v2138
      %v2141 = vshrl.u32 %v2076, 16
      %v2143 = vrot.slane %v2141, 1
      %v2144 = vshll.u32 %v2076, 16
      %v2146 = vrot.slane %v2144, 2
      %v2147 = vor.u32 %v2143, %v2146
      %v2148 = vsel %vm891, %v2138, %v2147
      %v2150 = vshrl.u32 %v2077, 16
      %v2152 = vrot.slane %v2150, 1
      %v2153 = vshll.u32 %v2077, 16
      %v2155 = vrot.slane %v2153, 2
      %v2156 = vor.u32 %v2152, %v2155
      %v2157 = vsel %vm891, %v2147, %v2156
      %v2159 = vshrl.u32 %v2078, 16
      %v2161 = vrot.slane %v2159, 1
      %v2162 = vshll.u32 %v2078, 16
      %v2164 = vrot.slane %v2162, 2
      %v2165 = vor.u32 %v2161, %v2164
      %v2166 = vsel %vm891, %v2156, %v2165
      %v2168 = vshrl.u32 %v2079, 16
      %v2170 = vrot.slane %v2168, 1
      %v2171 = vshll.u32 %v2079, 16
      %v2173 = vrot.slane %v2171, 2
      %v2174 = vor.u32 %v2170, %v2173
      %v2175 = vsel %vm891, %v2165, %v2174
      %v2177 = vshrl.u32 %v2080, 16
      %v2179 = vrot.slane %v2177, 1
      %v2180 = vshll.u32 %v2080, 16
      %v2182 = vrot.slane %v2180, 2
      %v2183 = vor.u32 %v2179, %v2182
      %v2184 = vsel %vm891, %v2174, %v2183
      %v2186 = vshrl.u32 %v2081, 16
      %v2188 = vrot.slane %v2186, 1
      %v2189 = vshll.u32 %v2081, 16
      %v2191 = vrot.slane %v2189, 2
      %v2192 = vor.u32 %v2188, %v2191
      %v2193 = vsel %vm891, %v2183, %v2192
      %v2195 = vshrl.u32 %v2082, 16
      %v2197 = vrot.slane %v2195, 1
      %v2198 = vshll.u32 %v2082, 16
      %v2200 = vrot.slane %v2198, 2
      %v2201 = vor.u32 %v2197, %v2200
      %v2202 = vsel %vm891, %v2192, %v2201
      %v2204 = vshrl.u32 %v2083, 16
      %v2206 = vrot.slane %v2204, 1
      %v2207 = vshll.u32 %v2083, 16
      %v2209 = vrot.slane %v2207, 2
      %v2210 = vor.u32 %v2206, %v2209
      %v2211 = vsel %vm891, %v2201, %v2210
      %v2213 = vshrl.u32 %v2084, 16
      %v2215 = vrot.slane %v2213, 1
      %v2216 = vshll.u32 %v2084, 16
      %v2218 = vrot.slane %v2216, 2
      %v2219 = vor.u32 %v2215, %v2218
      %v2220 = vsel %vm891, %v2210, %v2219
      %v2222 = vshrl.u32 %v2085, 16
      %v2224 = vrot.slane %v2222, 1
      %v2225 = vshll.u32 %v2085, 16
      %v2227 = vrot.slane %v2225, 2
      %v2228 = vor.u32 %v2224, %v2227
      %v2229 = vsel %vm891, %v2219, %v2228
      %v2231 = vshrl.u32 %v2086, 16
      %v2233 = vrot.slane %v2231, 1
      %v2234 = vshll.u32 %v2086, 16
      %v2236 = vrot.slane %v2234, 2
      %v2237 = vor.u32 %v2233, %v2236
      %v2238 = vsel %vm891, %v2228, %v2237
      %v2240 = vshrl.u32 %v2087, 16
      %v2242 = vrot.slane %v2240, 1
      %v2243 = vshll.u32 %v2087, 16
      %v2245 = vrot.slane %v2243, 2
      %v2246 = vor.u32 %v2242, %v2245
      %v2247 = vsel %vm891, %v2237, %v2246
      %v2249 = vshrl.u32 %v2088, 16
      %v2251 = vrot.slane %v2249, 1
      %v2252 = vshll.u32 %v2088, 16
      %v2254 = vrot.slane %v2252, 2
      %v2255 = vor.u32 %v2251, %v2254
      %v2256 = vsel %vm891, %v2246, %v2255
      %v2258 = vshll.u32 %v2105, 16
      %v2260 = vrot.slane %v2258, 2
      %v2261 = vsel %vm891, %v2255, %v2260
      %v2293 = vunpack.c.l.b16 %v2107
      %v2294 = vunpack.c.l.b16 %v2108
      %v2295 = vunpack.c.l.b16 %v2109
      %v2296 = vunpack.c.l.b16 %v2110
      %v2297 = vunpack.c.l.b16 %v2111
      %v2298 = vunpack.c.l.b16 %v2112
      %v2299 = vunpack.c.l.b16 %v2113
      %v2300 = vunpack.c.l.b16 %v2114
      %v2301 = vunpack.c.l.b16 %v2115
      %v2302 = vunpack.c.l.b16 %v2116
      %v2303 = vunpack.c.l.b16 %v2117
      %v2304 = vunpack.c.l.b16 %v2118
      %v2305 = vunpack.c.l.b16 %v2119
      %v2306 = vunpack.c.l.b16 %v2120
      %v2307 = vunpack.c.l.b16 %v2121
      %v2308 = vunpack.c.l.b16 %v2122
      %v2309 = vpack.c.b16 %v2294, %v2293
      %v2310 = vpack.c.b16 %v2296, %v2295
      %v2311 = vpack.c.b16 %v2298, %v2297
      %v2312 = vpack.c.b16 %v2300, %v2299
      %v2313 = vpack.c.b16 %v2302, %v2301
      %v2314 = vpack.c.b16 %v2304, %v2303
      %v2315 = vpack.c.b16 %v2306, %v2305
      %v2316 = vpack.c.b16 %v2308, %v2307
      %2325 = vmatprep.subr.bf16.mxu0 0
      %2326 = vmatpush1.bf16.msra.mxu0 %v2309
      %2327 = vmatprep.subr.bf16.mxu0 0
      %2328 = vmatpush1.bf16.msra.mxu0 %v2310
      %2329 = vmatprep.subr.bf16.mxu0 0
      %2330 = vmatpush1.bf16.msra.mxu0 %v2311
      %2331 = vmatprep.subr.bf16.mxu0 0
      %2332 = vmatpush1.bf16.msra.mxu0 %v2312
      %2333 = vmatprep.subr.bf16.mxu0 0
      %2334 = vmatpush1.bf16.msra.mxu0 %v2313
      %2335 = vmatprep.subr.bf16.mxu0 0
      %2336 = vmatpush1.bf16.msra.mxu0 %v2314
      %2337 = vmatprep.subr.bf16.mxu0 0
      %2338 = vmatpush1.bf16.msra.mxu0 %v2315
      %2339 = vmatprep.subr.bf16.mxu0 0
      %2340 = vmatpush1.bf16.msra.mxu0 %v2316
      %2341 = vmatprep.subr.bf16.mxu0 0
      %2342 = vmatpush1.bf16.msra.mxu0 0
      %2343 = vmatprep.subr.bf16.mxu0 0
      %2344 = vmatpush1.bf16.msra.mxu0 0
      %2345 = vmatprep.subr.bf16.mxu0 0
      %2346 = vmatpush1.bf16.msra.mxu0 0
      %2347 = vmatprep.subr.bf16.mxu0 0
      %2348 = vmatpush1.bf16.msra.mxu0 0
      %2349 = vmatprep.subr.bf16.mxu0 0
      %2350 = vmatpush1.bf16.msra.mxu0 0
      %2351 = vmatprep.subr.bf16.mxu0 0
      %2352 = vmatpush1.bf16.msra.mxu0 0
      %2353 = vmatprep.subr.bf16.mxu0 0
      %2354 = vmatpush1.bf16.msra.mxu0 0
      %2355 = vmatprep.subr.bf16.mxu0 0
      %2356 = vmatpush1.bf16.msra.mxu0 0
      %2357 = vmatprep.mubr.bf16.mxu0 0
      %2358 = vmatmul.mubr.bf16.gmra.mrb[0].mxu0 %v2139
      %v2359 = vpop.f32.mrb[0].mxu0
      %v2360 = vadd.f32 0.0, %v2359
      %v2361 = vpop.f32.mrb[0].mxu0
      %v2362 = vpop.f32.mrb[0].mxu0
      %v2363 = vadd.f32 0.0, %v2362
      %v2364 = vpop.f32.mrb[0].mxu0
      %2365 = vmatprep.mubr.bf16.mxu0 0
      %2366 = vmatmul.mubr.bf16.gmra.mrb[0].mxu0 %v2148
      %v2367 = vpop.f32.mrb[0].mxu0
      %v2368 = vadd.f32 0.0, %v2367
      %v2369 = vpop.f32.mrb[0].mxu0
      %v2370 = vpop.f32.mrb[0].mxu0
      %v2371 = vadd.f32 0.0, %v2370
      %v2372 = vpop.f32.mrb[0].mxu0
      %2373 = vmatprep.mubr.bf16.mxu0 0
      %2374 = vmatmul.mubr.bf16.gmra.mrb[0].mxu0 %v2157
      %v2375 = vpop.f32.mrb[0].mxu0
      %v2376 = vadd.f32 0.0, %v2375
      %v2377 = vpop.f32.mrb[0].mxu0
      %v2378 = vpop.f32.mrb[0].mxu0
      %v2379 = vadd.f32 0.0, %v2378
      %v2380 = vpop.f32.mrb[0].mxu0
      %2381 = vmatprep.mubr.bf16.mxu0 0
      %2382 = vmatmul.mubr.bf16.gmra.mrb[0].mxu0 %v2166
      %v2383 = vpop.f32.mrb[0].mxu0
      %v2384 = vadd.f32 0.0, %v2383
      %v2385 = vpop.f32.mrb[0].mxu0
      %v2386 = vpop.f32.mrb[0].mxu0
      %v2387 = vadd.f32 0.0, %v2386
      %v2388 = vpop.f32.mrb[0].mxu0
      %2389 = vmatprep.mubr.bf16.mxu0 0
      %2390 = vmatmul.mubr.bf16.gmra.mrb[0].mxu0 %v2175
      %v2391 = vpop.f32.mrb[0].mxu0
      %v2392 = vadd.f32 0.0, %v2391
      %v2393 = vpop.f32.mrb[0].mxu0
      %v2394 = vpop.f32.mrb[0].mxu0
      %v2395 = vadd.f32 0.0, %v2394
      %v2396 = vpop.f32.mrb[0].mxu0
      %2397 = vmatprep.mubr.bf16.mxu0 0
      %2398 = vmatmul.mubr.bf16.gmra.mrb[0].mxu0 %v2184
      %v2399 = vpop.f32.mrb[0].mxu0
      %v2400 = vadd.f32 0.0, %v2399
      %v2401 = vpop.f32.mrb[0].mxu0
      %v2402 = vpop.f32.mrb[0].mxu0
      %v2403 = vadd.f32 0.0, %v2402
      %v2404 = vpop.f32.mrb[0].mxu0
      %2405 = vmatprep.mubr.bf16.mxu0 0
      %2406 = vmatmul.mubr.bf16.gmra.mrb[0].mxu0 %v2193
      %v2407 = vpop.f32.mrb[0].mxu0
      %v2408 = vadd.f32 0.0, %v2407
      %v2409 = vpop.f32.mrb[0].mxu0
      %v2410 = vpop.f32.mrb[0].mxu0
      %v2411 = vadd.f32 0.0, %v2410
      %v2412 = vpop.f32.mrb[0].mxu0
      %2413 = vmatprep.mubr.bf16.mxu0 0
      %2414 = vmatmul.mubr.bf16.gmra.mrb[0].mxu0 %v2202
      %v2415 = vpop.f32.mrb[0].mxu0
      %v2416 = vadd.f32 0.0, %v2415
      %v2417 = vpop.f32.mrb[0].mxu0
      %v2418 = vpop.f32.mrb[0].mxu0
      %v2419 = vadd.f32 0.0, %v2418
      %v2420 = vpop.f32.mrb[0].mxu0
      %2421 = vmatprep.mubr.bf16.mxu0 0
      %2422 = vmatmul.mubr.bf16.gmra.mrb[0].mxu0 %v2211
      %v2423 = vpop.f32.mrb[0].mxu0
      %v2424 = vadd.f32 0.0, %v2423
      %v2425 = vpop.f32.mrb[0].mxu0
      %v2426 = vpop.f32.mrb[0].mxu0
      %v2427 = vadd.f32 0.0, %v2426
      %v2428 = vpop.f32.mrb[0].mxu0
      %2429 = vmatprep.mubr.bf16.mxu0 0
      %2430 = vmatmul.mubr.bf16.gmra.mrb[0].mxu0 %v2220
      %v2431 = vpop.f32.mrb[0].mxu0
      %v2432 = vadd.f32 0.0, %v2431
      %v2433 = vpop.f32.mrb[0].mxu0
      %v2434 = vpop.f32.mrb[0].mxu0
      %v2435 = vadd.f32 0.0, %v2434
      %v2436 = vpop.f32.mrb[0].mxu0
      %2437 = vmatprep.mubr.bf16.mxu0 0
      %2438 = vmatmul.mubr.bf16.gmra.mrb[0].mxu0 %v2229
      %v2439 = vpop.f32.mrb[0].mxu0
      %v2440 = vadd.f32 0.0, %v2439
      %v2441 = vpop.f32.mrb[0].mxu0
      %v2442 = vpop.f32.mrb[0].mxu0
      %v2443 = vadd.f32 0.0, %v2442
      %v2444 = vpop.f32.mrb[0].mxu0
      %2445 = vmatprep.mubr.bf16.mxu0 0
      %2446 = vmatmul.mubr.bf16.gmra.mrb[0].mxu0 %v2238
      %v2447 = vpop.f32.mrb[0].mxu0
      %v2448 = vadd.f32 0.0, %v2447
      %v2449 = vpop.f32.mrb[0].mxu0
      %v2450 = vpop.f32.mrb[0].mxu0
      %v2451 = vadd.f32 0.0, %v2450
      %v2452 = vpop.f32.mrb[0].mxu0
      %2453 = vmatprep.mubr.bf16.mxu0 0
      %2454 = vmatmul.mubr.bf16.gmra.mrb[0].mxu0 %v2247
      %v2455 = vpop.f32.mrb[0].mxu0
      %v2456 = vadd.f32 0.0, %v2455
      %v2457 = vpop.f32.mrb[0].mxu0
      %v2458 = vpop.f32.mrb[0].mxu0
      %v2459 = vadd.f32 0.0, %v2458
      %v2460 = vpop.f32.mrb[0].mxu0
      %2461 = vmatprep.mubr.bf16.mxu0 0
      %2462 = vmatmul.mubr.bf16.gmra.mrb[0].mxu0 %v2256
      %v2463 = vpop.f32.mrb[0].mxu0
      %v2464 = vadd.f32 0.0, %v2463
      %v2465 = vpop.f32.mrb[0].mxu0
      %v2466 = vpop.f32.mrb[0].mxu0
      %v2467 = vadd.f32 0.0, %v2466
      %v2468 = vpop.f32.mrb[0].mxu0
      %2469 = vmatprep.mubr.bf16.mxu0 0
      %2470 = vmatmul.mubr.bf16.gmra.mrb[0].mxu0 %v2261
      %v2471 = vpop.f32.mrb[0].mxu0
      %v2472 = vadd.f32 0.0, %v2471
      %v2473 = vpop.f32.mrb[0].mxu0
      %v2474 = vpop.f32.mrb[0].mxu0
      %v2475 = vadd.f32 0.0, %v2474
      %v2476 = vpop.f32.mrb[0].mxu0
      %2477 = vdwg.mxu0
      %v2494 = vunpack.c.l.b16 %v2089
      %v2495 = vunpack.c.l.b16 %v2090
      %v2496 = vunpack.c.l.b16 %v2091
      %v2497 = vunpack.c.l.b16 %v2092
      %v2498 = vunpack.c.l.b16 %v2093
      %v2499 = vunpack.c.l.b16 %v2094
      %v2500 = vunpack.c.l.b16 %v2095
      %v2501 = vunpack.c.l.b16 %v2096
      %v2502 = vunpack.c.l.b16 %v2097
      %v2503 = vunpack.c.l.b16 %v2098
      %v2504 = vunpack.c.l.b16 %v2099
      %v2505 = vunpack.c.l.b16 %v2100
      %v2506 = vunpack.c.l.b16 %v2101
      %v2507 = vunpack.c.l.b16 %v2102
      %v2508 = vunpack.c.l.b16 %v2103
      %v2509 = vunpack.c.l.b16 %v2104
      %v2510 = vpack.c.b16 %v2495, %v2494
      %v2511 = vpack.c.b16 %v2497, %v2496
      %v2512 = vpack.c.b16 %v2499, %v2498
      %v2513 = vpack.c.b16 %v2501, %v2500
      %v2514 = vpack.c.b16 %v2503, %v2502
      %v2515 = vpack.c.b16 %v2505, %v2504
      %v2516 = vpack.c.b16 %v2507, %v2506
      %v2517 = vpack.c.b16 %v2509, %v2508
      %2526 = vmatprep.subr.bf16.mxu0 0
      %2527 = vmatpush1.bf16.msra.mxu0 %v2510
      %2528 = vmatprep.subr.bf16.mxu0 0
      %2529 = vmatpush1.bf16.msra.mxu0 %v2511
      %2530 = vmatprep.subr.bf16.mxu0 0
      %2531 = vmatpush1.bf16.msra.mxu0 %v2512
      %2532 = vmatprep.subr.bf16.mxu0 0
      %2533 = vmatpush1.bf16.msra.mxu0 %v2513
      %2534 = vmatprep.subr.bf16.mxu0 0
      %2535 = vmatpush1.bf16.msra.mxu0 %v2514
      %2536 = vmatprep.subr.bf16.mxu0 0
      %2537 = vmatpush1.bf16.msra.mxu0 %v2515
      %2538 = vmatprep.subr.bf16.mxu0 0
      %2539 = vmatpush1.bf16.msra.mxu0 %v2516
      %2540 = vmatprep.subr.bf16.mxu0 0
      %2541 = vmatpush1.bf16.msra.mxu0 %v2517
      %2542 = vmatprep.subr.bf16.mxu0 0
      %2543 = vmatpush1.bf16.msra.mxu0 0
      %2544 = vmatprep.subr.bf16.mxu0 0
      %2545 = vmatpush1.bf16.msra.mxu0 0
      %2546 = vmatprep.subr.bf16.mxu0 0
      %2547 = vmatpush1.bf16.msra.mxu0 0
      %2548 = vmatprep.subr.bf16.mxu0 0
      %2549 = vmatpush1.bf16.msra.mxu0 0
      %2550 = vmatprep.subr.bf16.mxu0 0
      %2551 = vmatpush1.bf16.msra.mxu0 0
      %2552 = vmatprep.subr.bf16.mxu0 0
      %2553 = vmatpush1.bf16.msra.mxu0 0
      %2554 = vmatprep.subr.bf16.mxu0 0
      %2555 = vmatpush1.bf16.msra.mxu0 0
      %2556 = vmatprep.subr.bf16.mxu0 0
      %2557 = vmatpush1.bf16.msra.mxu0 0
      %2558 = vmatprep.mubr.bf16.mxu0 0
      %2559 = vmatmul.mubr.bf16.gmra.mrb[0].mxu0 %v2074
      %v2560 = vpop.f32.mrb[0].mxu0
      %v2561 = vadd.f32 %v2360, %v2560
      %v2562 = vpop.f32.mrb[0].mxu0
      %v2563 = vpop.f32.mrb[0].mxu0
      %v2564 = vadd.f32 %v2363, %v2563
      %v2565 = vpop.f32.mrb[0].mxu0
      %2566 = vmatprep.mubr.bf16.mxu0 0
      %2567 = vmatmul.mubr.bf16.gmra.mrb[0].mxu0 %v2075
      %v2568 = vpop.f32.mrb[0].mxu0
      %v2569 = vadd.f32 %v2368, %v2568
      %v2570 = vpop.f32.mrb[0].mxu0
      %v2571 = vpop.f32.mrb[0].mxu0
      %v2572 = vadd.f32 %v2371, %v2571
      %v2573 = vpop.f32.mrb[0].mxu0
      %2574 = vmatprep.mubr.bf16.mxu0 0
      %2575 = vmatmul.mubr.bf16.gmra.mrb[0].mxu0 %v2076
      %v2576 = vpop.f32.mrb[0].mxu0
      %v2577 = vadd.f32 %v2376, %v2576
      %v2578 = vpop.f32.mrb[0].mxu0
      %v2579 = vpop.f32.mrb[0].mxu0
      %v2580 = vadd.f32 %v2379, %v2579
      %v2581 = vpop.f32.mrb[0].mxu0
      %2582 = vmatprep.mubr.bf16.mxu0 0
      %2583 = vmatmul.mubr.bf16.gmra.mrb[0].mxu0 %v2077
      %v2584 = vpop.f32.mrb[0].mxu0
      %v2585 = vadd.f32 %v2384, %v2584
      %v2586 = vpop.f32.mrb[0].mxu0
      %v2587 = vpop.f32.mrb[0].mxu0
      %v2588 = vadd.f32 %v2387, %v2587
      %v2589 = vpop.f32.mrb[0].mxu0
      %2590 = vmatprep.mubr.bf16.mxu0 0
      %2591 = vmatmul.mubr.bf16.gmra.mrb[0].mxu0 %v2078
      %v2592 = vpop.f32.mrb[0].mxu0
      %v2593 = vadd.f32 %v2392, %v2592
      %v2594 = vpop.f32.mrb[0].mxu0
      %v2595 = vpop.f32.mrb[0].mxu0
      %v2596 = vadd.f32 %v2395, %v2595
      %v2597 = vpop.f32.mrb[0].mxu0
      %2598 = vmatprep.mubr.bf16.mxu0 0
      %2599 = vmatmul.mubr.bf16.gmra.mrb[0].mxu0 %v2079
      %v2600 = vpop.f32.mrb[0].mxu0
      %v2601 = vadd.f32 %v2400, %v2600
      %v2602 = vpop.f32.mrb[0].mxu0
      %v2603 = vpop.f32.mrb[0].mxu0
      %v2604 = vadd.f32 %v2403, %v2603
      %v2605 = vpop.f32.mrb[0].mxu0
      %2606 = vmatprep.mubr.bf16.mxu0 0
      %2607 = vmatmul.mubr.bf16.gmra.mrb[0].mxu0 %v2080
      %v2608 = vpop.f32.mrb[0].mxu0
      %v2609 = vadd.f32 %v2408, %v2608
      %v2610 = vpop.f32.mrb[0].mxu0
      %v2611 = vpop.f32.mrb[0].mxu0
      %v2612 = vadd.f32 %v2411, %v2611
      %v2613 = vpop.f32.mrb[0].mxu0
      %2614 = vmatprep.mubr.bf16.mxu0 0
      %2615 = vmatmul.mubr.bf16.gmra.mrb[0].mxu0 %v2081
      %v2616 = vpop.f32.mrb[0].mxu0
      %v2617 = vadd.f32 %v2416, %v2616
      %v2618 = vpop.f32.mrb[0].mxu0
      %v2619 = vpop.f32.mrb[0].mxu0
      %v2620 = vadd.f32 %v2419, %v2619
      %v2621 = vpop.f32.mrb[0].mxu0
      %2622 = vmatprep.mubr.bf16.mxu0 0
      %2623 = vmatmul.mubr.bf16.gmra.mrb[0].mxu0 %v2082
      %v2624 = vpop.f32.mrb[0].mxu0
      %v2625 = vadd.f32 %v2424, %v2624
      %v2626 = vpop.f32.mrb[0].mxu0
      %v2627 = vpop.f32.mrb[0].mxu0
      %v2628 = vadd.f32 %v2427, %v2627
      %v2629 = vpop.f32.mrb[0].mxu0
      %2630 = vmatprep.mubr.bf16.mxu0 0
      %2631 = vmatmul.mubr.bf16.gmra.mrb[0].mxu0 %v2083
      %v2632 = vpop.f32.mrb[0].mxu0
      %v2633 = vadd.f32 %v2432, %v2632
      %v2634 = vpop.f32.mrb[0].mxu0
      %v2635 = vpop.f32.mrb[0].mxu0
      %v2636 = vadd.f32 %v2435, %v2635
      %v2637 = vpop.f32.mrb[0].mxu0
      %2638 = vmatprep.mubr.bf16.mxu0 0
      %2639 = vmatmul.mubr.bf16.gmra.mrb[0].mxu0 %v2084
      %v2640 = vpop.f32.mrb[0].mxu0
      %v2641 = vadd.f32 %v2440, %v2640
      %v2642 = vpop.f32.mrb[0].mxu0
      %v2643 = vpop.f32.mrb[0].mxu0
      %v2644 = vadd.f32 %v2443, %v2643
      %v2645 = vpop.f32.mrb[0].mxu0
      %2646 = vmatprep.mubr.bf16.mxu0 0
      %2647 = vmatmul.mubr.bf16.gmra.mrb[0].mxu0 %v2085
      %v2648 = vpop.f32.mrb[0].mxu0
      %v2649 = vadd.f32 %v2448, %v2648
      %v2650 = vpop.f32.mrb[0].mxu0
      %v2651 = vpop.f32.mrb[0].mxu0
      %v2652 = vadd.f32 %v2451, %v2651
      %v2653 = vpop.f32.mrb[0].mxu0
      %2654 = vmatprep.mubr.bf16.mxu0 0
      %2655 = vmatmul.mubr.bf16.gmra.mrb[0].mxu0 %v2086
      %v2656 = vpop.f32.mrb[0].mxu0
      %v2657 = vadd.f32 %v2456, %v2656
      %v2658 = vpop.f32.mrb[0].mxu0
      %v2659 = vpop.f32.mrb[0].mxu0
      %v2660 = vadd.f32 %v2459, %v2659
      %v2661 = vpop.f32.mrb[0].mxu0
      %2662 = vmatprep.mubr.bf16.mxu0 0
      %2663 = vmatmul.mubr.bf16.gmra.mrb[0].mxu0 %v2087
      %v2664 = vpop.f32.mrb[0].mxu0
      %v2665 = vadd.f32 %v2464, %v2664
      %v2666 = vpop.f32.mrb[0].mxu0
      %v2667 = vpop.f32.mrb[0].mxu0
      %v2668 = vadd.f32 %v2467, %v2667
      %v2669 = vpop.f32.mrb[0].mxu0
      %2670 = vmatprep.mubr.bf16.mxu0 0
      %2671 = vmatmul.mubr.bf16.gmra.mrb[0].mxu0 %v2088
      %v2672 = vpop.f32.mrb[0].mxu0
      %v2673 = vadd.f32 %v2472, %v2672
      %v2674 = vpop.f32.mrb[0].mxu0
      %v2675 = vpop.f32.mrb[0].mxu0
      %v2676 = vadd.f32 %v2475, %v2675
      %v2677 = vpop.f32.mrb[0].mxu0
      %2678 = vdwg.mxu0
      %s2679 = scalar_lea.vmem %s5, 128
      %v2680 = vld [vmem:[%s2679] sm:$0xf]
      %v2681 = vld [vmem:[%s2679 + $0x4] sm:$0xf]
      %v2682 = vld [vmem:[%s2679 + $0x8] sm:$0xf]
      %v2683 = vld [vmem:[%s2679 + $0xc] sm:$0xf]
      %v2684 = vld [vmem:[%s2679 + $0x10] sm:$0xf]
      %v2685 = vld [vmem:[%s2679 + $0x14] sm:$0xf]
      %v2686 = vld [vmem:[%s2679 + $0x18] sm:$0xf]
      %v2687 = vld [vmem:[%s2679 + $0x1c] sm:$0xf]
      %v2688 = vld [vmem:[%s2679 + $0x20] sm:$0xf]
      %v2689 = vld [vmem:[%s2679 + $0x24] sm:$0xf]
      %v2690 = vld [vmem:[%s2679 + $0x28] sm:$0xf]
      %v2691 = vld [vmem:[%s2679 + $0x2c] sm:$0xf]
      %v2692 = vld [vmem:[%s2679 + $0x30] sm:$0xf]
      %v2693 = vld [vmem:[%s2679 + $0x34] sm:$0xf]
      %v2694 = vld [vmem:[%s2679 + $0x38] sm:$0xf]
      %v2695 = vld [vmem:[%s2679 + $0x3c] sm:$0xf]
      %v2712 = vrot.slane %v2074, 3
      %v2713 = vrot.slane %v2075, 3
      %v2714 = vsel %vm1501, %v2712, %v2713
      %v2715 = vrot.slane %v2076, 3
      %v2716 = vsel %vm1501, %v2713, %v2715
      %v2717 = vrot.slane %v2077, 3
      %v2718 = vsel %vm1501, %v2715, %v2717
      %v2719 = vrot.slane %v2078, 3
      %v2720 = vsel %vm1501, %v2717, %v2719
      %v2721 = vrot.slane %v2079, 3
      %v2722 = vsel %vm1501, %v2719, %v2721
      %v2723 = vrot.slane %v2080, 3
      %v2724 = vsel %vm1501, %v2721, %v2723
      %v2725 = vrot.slane %v2081, 3
      %v2726 = vsel %vm1501, %v2723, %v2725
      %v2727 = vrot.slane %v2082, 3
      %v2728 = vsel %vm1501, %v2725, %v2727
      %v2729 = vrot.slane %v2083, 3
      %v2730 = vsel %vm1501, %v2727, %v2729
      %v2731 = vrot.slane %v2084, 3
      %v2732 = vsel %vm1501, %v2729, %v2731
      %v2733 = vrot.slane %v2085, 3
      %v2734 = vsel %vm1501, %v2731, %v2733
      %v2735 = vrot.slane %v2086, 3
      %v2736 = vsel %vm1501, %v2733, %v2735
      %v2737 = vrot.slane %v2087, 3
      %v2738 = vsel %vm1501, %v2735, %v2737
      %v2739 = vrot.slane %v2088, 3
      %v2740 = vsel %vm1501, %v2737, %v2739
      %v2741 = vrot.slane %v2105, 3
      %v2742 = vsel %vm1501, %v2739, %v2741
      %v2774 = vunpack.c.l.b16 %v2680
      %v2775 = vunpack.c.l.b16 %v2681
      %v2776 = vunpack.c.l.b16 %v2682
      %v2777 = vunpack.c.l.b16 %v2683
      %v2778 = vunpack.c.l.b16 %v2684
      %v2779 = vunpack.c.l.b16 %v2685
      %v2780 = vunpack.c.l.b16 %v2686
      %v2781 = vunpack.c.l.b16 %v2687
      %v2782 = vunpack.c.l.b16 %v2688
      %v2783 = vunpack.c.l.b16 %v2689
      %v2784 = vunpack.c.l.b16 %v2690
      %v2785 = vunpack.c.l.b16 %v2691
      %v2786 = vunpack.c.l.b16 %v2692
      %v2787 = vunpack.c.l.b16 %v2693
      %v2788 = vunpack.c.l.b16 %v2694
      %v2789 = vunpack.c.l.b16 %v2695
      %v2790 = vpack.c.b16 %v2775, %v2774
      %v2791 = vpack.c.b16 %v2777, %v2776
      %v2792 = vpack.c.b16 %v2779, %v2778
      %v2793 = vpack.c.b16 %v2781, %v2780
      %v2794 = vpack.c.b16 %v2783, %v2782
      %v2795 = vpack.c.b16 %v2785, %v2784
      %v2796 = vpack.c.b16 %v2787, %v2786
      %v2797 = vpack.c.b16 %v2789, %v2788
      %2806 = vmatprep.subr.bf16.mxu0 0
      %2807 = vmatpush1.bf16.msra.mxu0 %v2790
      %2808 = vmatprep.subr.bf16.mxu0 0
      %2809 = vmatpush1.bf16.msra.mxu0 %v2791
      %2810 = vmatprep.subr.bf16.mxu0 0
      %2811 = vmatpush1.bf16.msra.mxu0 %v2792
      %2812 = vmatprep.subr.bf16.mxu0 0
      %2813 = vmatpush1.bf16.msra.mxu0 %v2793
      %2814 = vmatprep.subr.bf16.mxu0 0
      %2815 = vmatpush1.bf16.msra.mxu0 %v2794
      %2816 = vmatprep.subr.bf16.mxu0 0
      %2817 = vmatpush1.bf16.msra.mxu0 %v2795
      %2818 = vmatprep.subr.bf16.mxu0 0
      %2819 = vmatpush1.bf16.msra.mxu0 %v2796
      %2820 = vmatprep.subr.bf16.mxu0 0
      %2821 = vmatpush1.bf16.msra.mxu0 %v2797
      %2822 = vmatprep.subr.bf16.mxu0 0
      %2823 = vmatpush1.bf16.msra.mxu0 0
      %2824 = vmatprep.subr.bf16.mxu0 0
      %2825 = vmatpush1.bf16.msra.mxu0 0
      %2826 = vmatprep.subr.bf16.mxu0 0
      %2827 = vmatpush1.bf16.msra.mxu0 0
      %2828 = vmatprep.subr.bf16.mxu0 0
      %2829 = vmatpush1.bf16.msra.mxu0 0
      %2830 = vmatprep.subr.bf16.mxu0 0
      %2831 = vmatpush1.bf16.msra.mxu0 0
      %2832 = vmatprep.subr.bf16.mxu0 0
      %2833 = vmatpush1.bf16.msra.mxu0 0
      %2834 = vmatprep.subr.bf16.mxu0 0
      %2835 = vmatpush1.bf16.msra.mxu0 0
      %2836 = vmatprep.subr.bf16.mxu0 0
      %2837 = vmatpush1.bf16.msra.mxu0 0
      %2838 = vmatprep.mubr.bf16.mxu0 0
      %2839 = vmatmul.mubr.bf16.gmra.mrb[0].mxu0 %v2714
      %v2840 = vpop.f32.mrb[0].mxu0
      %v2841 = vadd.f32 0.0, %v2840
      %v2842 = vpop.f32.mrb[0].mxu0
      %v2843 = vpop.f32.mrb[0].mxu0
      %v2844 = vadd.f32 0.0, %v2843
      %v2845 = vpop.f32.mrb[0].mxu0
      %2846 = vmatprep.mubr.bf16.mxu0 0
      %2847 = vmatmul.mubr.bf16.gmra.mrb[0].mxu0 %v2716
      %v2848 = vpop.f32.mrb[0].mxu0
      %v2849 = vadd.f32 0.0, %v2848
      %v2850 = vpop.f32.mrb[0].mxu0
      %v2851 = vpop.f32.mrb[0].mxu0
      %v2852 = vadd.f32 0.0, %v2851
      %v2853 = vpop.f32.mrb[0].mxu0
      %2854 = vmatprep.mubr.bf16.mxu0 0
      %2855 = vmatmul.mubr.bf16.gmra.mrb[0].mxu0 %v2718
      %v2856 = vpop.f32.mrb[0].mxu0
      %v2857 = vadd.f32 0.0, %v2856
      %v2858 = vpop.f32.mrb[0].mxu0
      %v2859 = vpop.f32.mrb[0].mxu0
      %v2860 = vadd.f32 0.0, %v2859
      %v2861 = vpop.f32.mrb[0].mxu0
      %2862 = vmatprep.mubr.bf16.mxu0 0
      %2863 = vmatmul.mubr.bf16.gmra.mrb[0].mxu0 %v2720
      %v2864 = vpop.f32.mrb[0].mxu0
      %v2865 = vadd.f32 0.0, %v2864
      %v2866 = vpop.f32.mrb[0].mxu0
      %v2867 = vpop.f32.mrb[0].mxu0
      %v2868 = vadd.f32 0.0, %v2867
      %v2869 = vpop.f32.mrb[0].mxu0
      %2870 = vmatprep.mubr.bf16.mxu0 0
      %2871 = vmatmul.mubr.bf16.gmra.mrb[0].mxu0 %v2722
      %v2872 = vpop.f32.mrb[0].mxu0
      %v2873 = vadd.f32 0.0, %v2872
      %v2874 = vpop.f32.mrb[0].mxu0
      %v2875 = vpop.f32.mrb[0].mxu0
      %v2876 = vadd.f32 0.0, %v2875
      %v2877 = vpop.f32.mrb[0].mxu0
      %2878 = vmatprep.mubr.bf16.mxu0 0
      %2879 = vmatmul.mubr.bf16.gmra.mrb[0].mxu0 %v2724
      %v2880 = vpop.f32.mrb[0].mxu0
      %v2881 = vadd.f32 0.0, %v2880
      %v2882 = vpop.f32.mrb[0].mxu0
      %v2883 = vpop.f32.mrb[0].mxu0
      %v2884 = vadd.f32 0.0, %v2883
      %v2885 = vpop.f32.mrb[0].mxu0
      %2886 = vmatprep.mubr.bf16.mxu0 0
      %2887 = vmatmul.mubr.bf16.gmra.mrb[0].mxu0 %v2726
      %v2888 = vpop.f32.mrb[0].mxu0
      %v2889 = vadd.f32 0.0, %v2888
      %v2890 = vpop.f32.mrb[0].mxu0
      %v2891 = vpop.f32.mrb[0].mxu0
      %v2892 = vadd.f32 0.0, %v2891
      %v2893 = vpop.f32.mrb[0].mxu0
      %2894 = vmatprep.mubr.bf16.mxu0 0
      %2895 = vmatmul.mubr.bf16.gmra.mrb[0].mxu0 %v2728
      %v2896 = vpop.f32.mrb[0].mxu0
      %v2897 = vadd.f32 0.0, %v2896
      %v2898 = vpop.f32.mrb[0].mxu0
      %v2899 = vpop.f32.mrb[0].mxu0
      %v2900 = vadd.f32 0.0, %v2899
      %v2901 = vpop.f32.mrb[0].mxu0
      %2902 = vmatprep.mubr.bf16.mxu0 0
      %2903 = vmatmul.mubr.bf16.gmra.mrb[0].mxu0 %v2730
      %v2904 = vpop.f32.mrb[0].mxu0
      %v2905 = vadd.f32 0.0, %v2904
      %v2906 = vpop.f32.mrb[0].mxu0
      %v2907 = vpop.f32.mrb[0].mxu0
      %v2908 = vadd.f32 0.0, %v2907
      %v2909 = vpop.f32.mrb[0].mxu0
      %2910 = vmatprep.mubr.bf16.mxu0 0
      %2911 = vmatmul.mubr.bf16.gmra.mrb[0].mxu0 %v2732
      %v2912 = vpop.f32.mrb[0].mxu0
      %v2913 = vadd.f32 0.0, %v2912
      %v2914 = vpop.f32.mrb[0].mxu0
      %v2915 = vpop.f32.mrb[0].mxu0
      %v2916 = vadd.f32 0.0, %v2915
      %v2917 = vpop.f32.mrb[0].mxu0
      %2918 = vmatprep.mubr.bf16.mxu0 0
      %2919 = vmatmul.mubr.bf16.gmra.mrb[0].mxu0 %v2734
      %v2920 = vpop.f32.mrb[0].mxu0
      %v2921 = vadd.f32 0.0, %v2920
      %v2922 = vpop.f32.mrb[0].mxu0
      %v2923 = vpop.f32.mrb[0].mxu0
      %v2924 = vadd.f32 0.0, %v2923
      %v2925 = vpop.f32.mrb[0].mxu0
      %2926 = vmatprep.mubr.bf16.mxu0 0
      %2927 = vmatmul.mubr.bf16.gmra.mrb[0].mxu0 %v2736
      %v2928 = vpop.f32.mrb[0].mxu0
      %v2929 = vadd.f32 0.0, %v2928
      %v2930 = vpop.f32.mrb[0].mxu0
      %v2931 = vpop.f32.mrb[0].mxu0
      %v2932 = vadd.f32 0.0, %v2931
      %v2933 = vpop.f32.mrb[0].mxu0
      %2934 = vmatprep.mubr.bf16.mxu0 0
      %2935 = vmatmul.mubr.bf16.gmra.mrb[0].mxu0 %v2738
      %v2936 = vpop.f32.mrb[0].mxu0
      %v2937 = vadd.f32 0.0, %v2936
      %v2938 = vpop.f32.mrb[0].mxu0
      %v2939 = vpop.f32.mrb[0].mxu0
      %v2940 = vadd.f32 0.0, %v2939
      %v2941 = vpop.f32.mrb[0].mxu0
      %2942 = vmatprep.mubr.bf16.mxu0 0
      %2943 = vmatmul.mubr.bf16.gmra.mrb[0].mxu0 %v2740
      %v2944 = vpop.f32.mrb[0].mxu0
      %v2945 = vadd.f32 0.0, %v2944
      %v2946 = vpop.f32.mrb[0].mxu0
      %v2947 = vpop.f32.mrb[0].mxu0
      %v2948 = vadd.f32 0.0, %v2947
      %v2949 = vpop.f32.mrb[0].mxu0
      %2950 = vmatprep.mubr.bf16.mxu0 0
      %2951 = vmatmul.mubr.bf16.gmra.mrb[0].mxu0 %v2742
      %v2952 = vpop.f32.mrb[0].mxu0
      %v2953 = vadd.f32 0.0, %v2952
      %v2954 = vpop.f32.mrb[0].mxu0
      %v2955 = vpop.f32.mrb[0].mxu0
      %v2956 = vadd.f32 0.0, %v2955
      %v2957 = vpop.f32.mrb[0].mxu0
      %2958 = vdwg.mxu0
      %v2959 = vadd.f32 %v2561, %v2841
      %v2960 = vadd.f32 %v2564, %v2844
      %v2961 = vadd.f32 %v2569, %v2849
      %v2962 = vadd.f32 %v2572, %v2852
      %v2963 = vadd.f32 %v2577, %v2857
      %v2964 = vadd.f32 %v2580, %v2860
      %v2965 = vadd.f32 %v2585, %v2865
      %v2966 = vadd.f32 %v2588, %v2868
      %v2967 = vadd.f32 %v2593, %v2873
      %v2968 = vadd.f32 %v2596, %v2876
      %v2969 = vadd.f32 %v2601, %v2881
      %v2970 = vadd.f32 %v2604, %v2884
      %v2971 = vadd.f32 %v2609, %v2889
      %v2972 = vadd.f32 %v2612, %v2892
      %v2973 = vadd.f32 %v2617, %v2897
      %v2974 = vadd.f32 %v2620, %v2900
      %v2975 = vadd.f32 %v2625, %v2905
      %v2976 = vadd.f32 %v2628, %v2908
      %v2977 = vadd.f32 %v2633, %v2913
      %v2978 = vadd.f32 %v2636, %v2916
      %v2979 = vadd.f32 %v2641, %v2921
      %v2980 = vadd.f32 %v2644, %v2924
      %v2981 = vadd.f32 %v2649, %v2929
      %v2982 = vadd.f32 %v2652, %v2932
      %v2983 = vadd.f32 %v2657, %v2937
      %v2984 = vadd.f32 %v2660, %v2940
      %v2985 = vadd.f32 %v2665, %v2945
      %v2986 = vadd.f32 %v2668, %v2948
      %v2987 = vadd.f32 %v2673, %v2953
      %v2988 = vadd.f32 %v2676, %v2956
      %v2989 = vld [vmem:[%s6] sm:$0x1]
      %v2991 = vlaneseq
      %v2992 = vshrl.u32 %v2991, 7
      %v2993 = vsub.s32 0, %v2992
      %v2994 = vrot.slane %v2989, %v2993
      %v2996 = vadd.f32 %v2959, %v2994
      %v2997 = vadd.f32 %v2960, %v2994
      %v2998 = vadd.f32 %v2961, %v2994
      %v2999 = vadd.f32 %v2962, %v2994
      %v3000 = vadd.f32 %v2963, %v2994
      %v3001 = vadd.f32 %v2964, %v2994
      %v3002 = vadd.f32 %v2965, %v2994
      %v3003 = vadd.f32 %v2966, %v2994
      %v3004 = vadd.f32 %v2967, %v2994
      %v3005 = vadd.f32 %v2968, %v2994
      %v3006 = vadd.f32 %v2969, %v2994
      %v3007 = vadd.f32 %v2970, %v2994
      %v3008 = vadd.f32 %v2971, %v2994
      %v3009 = vadd.f32 %v2972, %v2994
      %v3010 = vadd.f32 %v2973, %v2994
      %v3011 = vadd.f32 %v2974, %v2994
      %v3012 = vadd.f32 %v2975, %v2994
      %v3013 = vadd.f32 %v2976, %v2994
      %v3014 = vadd.f32 %v2977, %v2994
      %v3015 = vadd.f32 %v2978, %v2994
      %v3016 = vadd.f32 %v2979, %v2994
      %v3017 = vadd.f32 %v2980, %v2994
      %v3018 = vadd.f32 %v2981, %v2994
      %v3019 = vadd.f32 %v2982, %v2994
      %v3020 = vadd.f32 %v2983, %v2994
      %v3021 = vadd.f32 %v2984, %v2994
      %v3022 = vadd.f32 %v2985, %v2994
      %v3023 = vadd.f32 %v2986, %v2994
      %v3024 = vadd.f32 %v2987, %v2994
      %v3025 = vadd.f32 %v2988, %v2994
      %v3057 = vrot.slane %v1950, 3
      %v3058 = vrot.slane %v1951, 3
      %v3059 = vsel %vm1857, %v3057, %v3058
      %v3060 = vrot.slane %v1952, 3
      %v3061 = vsel %vm1857, %v3058, %v3060
      %v3062 = vrot.slane %v1953, 3
      %v3063 = vsel %vm1857, %v3060, %v3062
      %v3064 = vrot.slane %v1954, 3
      %v3065 = vsel %vm1857, %v3062, %v3064
      %v3066 = vrot.slane %v1955, 3
      %v3067 = vsel %vm1857, %v3064, %v3066
      %v3068 = vrot.slane %v1956, 3
      %v3069 = vsel %vm1857, %v3066, %v3068
      %v3070 = vrot.slane %v1957, 3
      %v3071 = vsel %vm1857, %v3068, %v3070
      %v3072 = vrot.slane %v1958, 3
      %v3073 = vsel %vm1857, %v3070, %v3072
      %v3074 = vrot.slane %v1959, 3
      %v3075 = vsel %vm1857, %v3072, %v3074
      %v3076 = vrot.slane %v1960, 3
      %v3077 = vsel %vm1857, %v3074, %v3076
      %v3078 = vrot.slane %v1961, 3
      %v3079 = vsel %vm1857, %v3076, %v3078
      %v3080 = vrot.slane %v1962, 3
      %v3081 = vsel %vm1857, %v3078, %v3080
      %v3082 = vrot.slane %v1963, 3
      %v3083 = vsel %vm1857, %v3080, %v3082
      %v3084 = vrot.slane %v1964, 3
      %v3085 = vsel %vm1857, %v3082, %v3084
      %v3086 = vrot.slane %v1965, 3
      %v3087 = vsel %vm1857, %v3084, %v3086
      %v3088 = vrot.slane %v1966, 3
      %v3089 = vsel %vm1857, %v3086, %v3088
      %v3090 = vrot.slane %v1967, 3
      %v3091 = vsel %vm1857, %v3088, %v3090
      %v3092 = vrot.slane %v1968, 3
      %v3093 = vsel %vm1857, %v3090, %v3092
      %v3094 = vrot.slane %v1969, 3
      %v3095 = vsel %vm1857, %v3092, %v3094
      %v3096 = vrot.slane %v1970, 3
      %v3097 = vsel %vm1857, %v3094, %v3096
      %v3098 = vrot.slane %v1971, 3
      %v3099 = vsel %vm1857, %v3096, %v3098
      %v3100 = vrot.slane %v1972, 3
      %v3101 = vsel %vm1857, %v3098, %v3100
      %v3102 = vrot.slane %v1973, 3
      %v3103 = vsel %vm1857, %v3100, %v3102
      %v3104 = vrot.slane %v1974, 3
      %v3105 = vsel %vm1857, %v3102, %v3104
      %v3106 = vrot.slane %v1975, 3
      %v3107 = vsel %vm1857, %v3104, %v3106
      %v3108 = vrot.slane %v1976, 3
      %v3109 = vsel %vm1857, %v3106, %v3108
      %v3110 = vrot.slane %v1977, 3
      %v3111 = vsel %vm1857, %v3108, %v3110
      %v3112 = vrot.slane %v1978, 3
      %v3113 = vsel %vm1857, %v3110, %v3112
      %v3114 = vrot.slane %v1979, 3
      %v3115 = vsel %vm1857, %v3112, %v3114
      %v3116 = vrot.slane %v1980, 3
      %v3117 = vsel %vm1857, %v3114, %v3116
      %v3148 = vadd.f32 %v2996, %v3059
      %v3149 = vadd.f32 %v2997, %v3061
      %v3150 = vadd.f32 %v2998, %v3063
      %v3151 = vadd.f32 %v2999, %v3065
      %v3152 = vadd.f32 %v3000, %v3067
      %v3153 = vadd.f32 %v3001, %v3069
      %v3154 = vadd.f32 %v3002, %v3071
      %v3155 = vadd.f32 %v3003, %v3073
      %v3156 = vadd.f32 %v3004, %v3075
      %v3157 = vadd.f32 %v3005, %v3077
      %v3158 = vadd.f32 %v3006, %v3079
      %v3159 = vadd.f32 %v3007, %v3081
      %v3160 = vadd.f32 %v3008, %v3083
      %v3161 = vadd.f32 %v3009, %v3085
      %v3162 = vadd.f32 %v3010, %v3087
      %v3163 = vadd.f32 %v3011, %v3089
      %v3164 = vadd.f32 %v3012, %v3091
      %v3165 = vadd.f32 %v3013, %v3093
      %v3166 = vadd.f32 %v3014, %v3095
      %v3167 = vadd.f32 %v3015, %v3097
      %v3168 = vadd.f32 %v3016, %v3099
      %v3169 = vadd.f32 %v3017, %v3101
      %v3170 = vadd.f32 %v3018, %v3103
      %v3171 = vadd.f32 %v3019, %v3105
      %v3172 = vadd.f32 %v3020, %v3107
      %v3173 = vadd.f32 %v3021, %v3109
      %v3174 = vadd.f32 %v3022, %v3111
      %v3175 = vadd.f32 %v3023, %v3113
      %v3176 = vadd.f32 %v3024, %v3115
      %v3177 = vadd.f32 %v3025, %v3117
      %vm3178 = vcmp.ge.f32.partialorder %v3148, 0.0
      %vm3179 = vcmp.ge.f32.partialorder %v3149, 0.0
      %vm3180 = vcmp.ge.f32.partialorder %v3150, 0.0
      %vm3181 = vcmp.ge.f32.partialorder %v3151, 0.0
      %vm3182 = vcmp.ge.f32.partialorder %v3152, 0.0
      %vm3183 = vcmp.ge.f32.partialorder %v3153, 0.0
      %vm3184 = vcmp.ge.f32.partialorder %v3154, 0.0
      %vm3185 = vcmp.ge.f32.partialorder %v3155, 0.0
      %vm3186 = vcmp.ge.f32.partialorder %v3156, 0.0
      %vm3187 = vcmp.ge.f32.partialorder %v3157, 0.0
      %vm3188 = vcmp.ge.f32.partialorder %v3158, 0.0
      %vm3189 = vcmp.ge.f32.partialorder %v3159, 0.0
      %vm3190 = vcmp.ge.f32.partialorder %v3160, 0.0
      %vm3191 = vcmp.ge.f32.partialorder %v3161, 0.0
      %vm3192 = vcmp.ge.f32.partialorder %v3162, 0.0
      %vm3193 = vcmp.ge.f32.partialorder %v3163, 0.0
      %vm3194 = vcmp.ge.f32.partialorder %v3164, 0.0
      %vm3195 = vcmp.ge.f32.partialorder %v3165, 0.0
      %vm3196 = vcmp.ge.f32.partialorder %v3166, 0.0
      %vm3197 = vcmp.ge.f32.partialorder %v3167, 0.0
      %vm3198 = vcmp.ge.f32.partialorder %v3168, 0.0
      %vm3199 = vcmp.ge.f32.partialorder %v3169, 0.0
      %vm3200 = vcmp.ge.f32.partialorder %v3170, 0.0
      %vm3201 = vcmp.ge.f32.partialorder %v3171, 0.0
      %vm3202 = vcmp.ge.f32.partialorder %v3172, 0.0
      %vm3203 = vcmp.ge.f32.partialorder %v3173, 0.0
      %vm3204 = vcmp.ge.f32.partialorder %v3174, 0.0
      %vm3205 = vcmp.ge.f32.partialorder %v3175, 0.0
      %vm3206 = vcmp.ge.f32.partialorder %v3176, 0.0
      %vm3207 = vcmp.ge.f32.partialorder %v3177, 0.0
      %v3208 = vmul.f32 %v3148, 0.1
      %v3209 = vmul.f32 %v3149, 0.1
      %v3210 = vmul.f32 %v3150, 0.1
      %v3211 = vmul.f32 %v3151, 0.1
      %v3212 = vmul.f32 %v3152, 0.1
      %v3213 = vmul.f32 %v3153, 0.1
      %v3214 = vmul.f32 %v3154, 0.1
      %v3215 = vmul.f32 %v3155, 0.1
      %v3216 = vmul.f32 %v3156, 0.1
      %v3217 = vmul.f32 %v3157, 0.1
      %v3218 = vmul.f32 %v3158, 0.1
      %v3219 = vmul.f32 %v3159, 0.1
      %v3220 = vmul.f32 %v3160, 0.1
      %v3221 = vmul.f32 %v3161, 0.1
      %v3222 = vmul.f32 %v3162, 0.1
      %v3223 = vmul.f32 %v3163, 0.1
      %v3224 = vmul.f32 %v3164, 0.1
      %v3225 = vmul.f32 %v3165, 0.1
      %v3226 = vmul.f32 %v3166, 0.1
      %v3227 = vmul.f32 %v3167, 0.1
      %v3228 = vmul.f32 %v3168, 0.1
      %v3229 = vmul.f32 %v3169, 0.1
      %v3230 = vmul.f32 %v3170, 0.1
      %v3231 = vmul.f32 %v3171, 0.1
      %v3232 = vmul.f32 %v3172, 0.1
      %v3233 = vmul.f32 %v3173, 0.1
      %v3234 = vmul.f32 %v3174, 0.1
      %v3235 = vmul.f32 %v3175, 0.1
      %v3236 = vmul.f32 %v3176, 0.1
      %v3237 = vmul.f32 %v3177, 0.1
      %v3238 = vsel %vm3178, %v3148, %v3208
      %v3239 = vsel %vm3179, %v3149, %v3209
      %v3240 = vsel %vm3180, %v3150, %v3210
      %v3241 = vsel %vm3181, %v3151, %v3211
      %v3242 = vsel %vm3182, %v3152, %v3212
      %v3243 = vsel %vm3183, %v3153, %v3213
      %v3244 = vsel %vm3184, %v3154, %v3214
      %v3245 = vsel %vm3185, %v3155, %v3215
      %v3246 = vsel %vm3186, %v3156, %v3216
      %v3247 = vsel %vm3187, %v3157, %v3217
      %v3248 = vsel %vm3188, %v3158, %v3218
      %v3249 = vsel %vm3189, %v3159, %v3219
      %v3250 = vsel %vm3190, %v3160, %v3220
      %v3251 = vsel %vm3191, %v3161, %v3221
      %v3252 = vsel %vm3192, %v3162, %v3222
      %v3253 = vsel %vm3193, %v3163, %v3223
      %v3254 = vsel %vm3194, %v3164, %v3224
      %v3255 = vsel %vm3195, %v3165, %v3225
      %v3256 = vsel %vm3196, %v3166, %v3226
      %v3257 = vsel %vm3197, %v3167, %v3227
      %v3258 = vsel %vm3198, %v3168, %v3228
      %v3259 = vsel %vm3199, %v3169, %v3229
      %v3260 = vsel %vm3200, %v3170, %v3230
      %v3261 = vsel %vm3201, %v3171, %v3231
      %v3262 = vsel %vm3202, %v3172, %v3232
      %v3263 = vsel %vm3203, %v3173, %v3233
      %v3264 = vsel %vm3204, %v3174, %v3234
      %v3265 = vsel %vm3205, %v3175, %v3235
      %v3266 = vsel %vm3206, %v3176, %v3236
      %v3267 = vsel %vm3207, %v3177, %v3237
      %v3268 = vpack.c.bf16 %v3239, %v3238
      %v3269 = vpack.c.bf16 %v3241, %v3240
      %v3270 = vpack.c.bf16 %v3243, %v3242
      %v3271 = vpack.c.bf16 %v3245, %v3244
      %v3272 = vpack.c.bf16 %v3247, %v3246
      %v3273 = vpack.c.bf16 %v3249, %v3248
      %v3274 = vpack.c.bf16 %v3251, %v3250
      %v3275 = vpack.c.bf16 %v3253, %v3252
      %v3276 = vpack.c.bf16 %v3255, %v3254
      %v3277 = vpack.c.bf16 %v3257, %v3256
      %v3278 = vpack.c.bf16 %v3259, %v3258
      %v3279 = vpack.c.bf16 %v3261, %v3260
      %v3280 = vpack.c.bf16 %v3263, %v3262
      %v3281 = vpack.c.bf16 %v3265, %v3264
      %v3282 = vpack.c.bf16 %v3266, %v3266
      %v3283 = vld [vmem:[%s7] sm:$0xf]
      %v3284 = vld [vmem:[%s7 + $0x4] sm:$0xf]
      %v3285 = vld [vmem:[%s7 + $0x8] sm:$0xf]
      %v3286 = vld [vmem:[%s7 + $0xc] sm:$0xf]
      %v3287 = vld [vmem:[%s7 + $0x10] sm:$0xf]
      %v3288 = vld [vmem:[%s7 + $0x14] sm:$0xf]
      %v3289 = vld [vmem:[%s7 + $0x18] sm:$0xf]
      %v3290 = vld [vmem:[%s7 + $0x1c] sm:$0xf]
      %v3291 = vld [vmem:[%s7 + $0x20] sm:$0xf]
      %v3292 = vld [vmem:[%s7 + $0x24] sm:$0xf]
      %v3293 = vld [vmem:[%s7 + $0x28] sm:$0xf]
      %v3294 = vld [vmem:[%s7 + $0x2c] sm:$0xf]
      %v3295 = vld [vmem:[%s7 + $0x30] sm:$0xf]
      %v3296 = vld [vmem:[%s7 + $0x34] sm:$0xf]
      %v3297 = vld [vmem:[%s7 + $0x38] sm:$0xf]
      %v3298 = vld [vmem:[%s7 + $0x3c] sm:$0xf]
      %v3299 = vpack.c.bf16 %v3267, %v3266
      %s3300 = scalar_lea.vmem %s7, 64
      %v3301 = vld [vmem:[%s3300] sm:$0xf]
      %v3302 = vld [vmem:[%s3300 + $0x4] sm:$0xf]
      %v3303 = vld [vmem:[%s3300 + $0x8] sm:$0xf]
      %v3304 = vld [vmem:[%s3300 + $0xc] sm:$0xf]
      %v3305 = vld [vmem:[%s3300 + $0x10] sm:$0xf]
      %v3306 = vld [vmem:[%s3300 + $0x14] sm:$0xf]
      %v3307 = vld [vmem:[%s3300 + $0x18] sm:$0xf]
      %v3308 = vld [vmem:[%s3300 + $0x1c] sm:$0xf]
      %v3309 = vld [vmem:[%s3300 + $0x20] sm:$0xf]
      %v3310 = vld [vmem:[%s3300 + $0x24] sm:$0xf]
      %v3311 = vld [vmem:[%s3300 + $0x28] sm:$0xf]
      %v3312 = vld [vmem:[%s3300 + $0x2c] sm:$0xf]
      %v3313 = vld [vmem:[%s3300 + $0x30] sm:$0xf]
      %v3314 = vld [vmem:[%s3300 + $0x34] sm:$0xf]
      %v3315 = vld [vmem:[%s3300 + $0x38] sm:$0xf]
      %v3316 = vld [vmem:[%s3300 + $0x3c] sm:$0xf]
      %v3318 = vshrl.u32 %v3268, 16
      %v3320 = vrot.slane %v3318, 1
      %v3321 = vshll.u32 %v3268, 16
      %v3323 = vrot.slane %v3321, 2
      %v3324 = vor.u32 %v3320, %v3323
      %v3326 = vshrl.u32 %v3269, 16
      %v3328 = vrot.slane %v3326, 1
      %v3329 = vshll.u32 %v3269, 16
      %v3331 = vrot.slane %v3329, 2
      %v3332 = vor.u32 %v3328, %v3331
      %v3333 = vsel %vm891, %v3324, %v3332
      %v3335 = vshrl.u32 %v3270, 16
      %v3337 = vrot.slane %v3335, 1
      %v3338 = vshll.u32 %v3270, 16
      %v3340 = vrot.slane %v3338, 2
      %v3341 = vor.u32 %v3337, %v3340
      %v3342 = vsel %vm891, %v3332, %v3341
      %v3344 = vshrl.u32 %v3271, 16
      %v3346 = vrot.slane %v3344, 1
      %v3347 = vshll.u32 %v3271, 16
      %v3349 = vrot.slane %v3347, 2
      %v3350 = vor.u32 %v3346, %v3349
      %v3351 = vsel %vm891, %v3341, %v3350
      %v3353 = vshrl.u32 %v3272, 16
      %v3355 = vrot.slane %v3353, 1
      %v3356 = vshll.u32 %v3272, 16
      %v3358 = vrot.slane %v3356, 2
      %v3359 = vor.u32 %v3355, %v3358
      %v3360 = vsel %vm891, %v3350, %v3359
      %v3362 = vshrl.u32 %v3273, 16
      %v3364 = vrot.slane %v3362, 1
      %v3365 = vshll.u32 %v3273, 16
      %v3367 = vrot.slane %v3365, 2
      %v3368 = vor.u32 %v3364, %v3367
      %v3369 = vsel %vm891, %v3359, %v3368
      %v3371 = vshrl.u32 %v3274, 16
      %v3373 = vrot.slane %v3371, 1
      %v3374 = vshll.u32 %v3274, 16
      %v3376 = vrot.slane %v3374, 2
      %v3377 = vor.u32 %v3373, %v3376
      %v3378 = vsel %vm891, %v3368, %v3377
      %v3380 = vshrl.u32 %v3275, 16
      %v3382 = vrot.slane %v3380, 1
      %v3383 = vshll.u32 %v3275, 16
      %v3385 = vrot.slane %v3383, 2
      %v3386 = vor.u32 %v3382, %v3385
      %v3387 = vsel %vm891, %v3377, %v3386
      %v3389 = vshrl.u32 %v3276, 16
      %v3391 = vrot.slane %v3389, 1
      %v3392 = vshll.u32 %v3276, 16
      %v3394 = vrot.slane %v3392, 2
      %v3395 = vor.u32 %v3391, %v3394
      %v3396 = vsel %vm891, %v3386, %v3395
      %v3398 = vshrl.u32 %v3277, 16
      %v3400 = vrot.slane %v3398, 1
      %v3401 = vshll.u32 %v3277, 16
      %v3403 = vrot.slane %v3401, 2
      %v3404 = vor.u32 %v3400, %v3403
      %v3405 = vsel %vm891, %v3395, %v3404
      %v3407 = vshrl.u32 %v3278, 16
      %v3409 = vrot.slane %v3407, 1
      %v3410 = vshll.u32 %v3278, 16
      %v3412 = vrot.slane %v3410, 2
      %v3413 = vor.u32 %v3409, %v3412
      %v3414 = vsel %vm891, %v3404, %v3413
      %v3416 = vshrl.u32 %v3279, 16
      %v3418 = vrot.slane %v3416, 1
      %v3419 = vshll.u32 %v3279, 16
      %v3421 = vrot.slane %v3419, 2
      %v3422 = vor.u32 %v3418, %v3421
      %v3423 = vsel %vm891, %v3413, %v3422
      %v3425 = vshrl.u32 %v3280, 16
      %v3427 = vrot.slane %v3425, 1
      %v3428 = vshll.u32 %v3280, 16
      %v3430 = vrot.slane %v3428, 2
      %v3431 = vor.u32 %v3427, %v3430
      %v3432 = vsel %vm891, %v3422, %v3431
      %v3434 = vshrl.u32 %v3281, 16
      %v3436 = vrot.slane %v3434, 1
      %v3437 = vshll.u32 %v3281, 16
      %v3439 = vrot.slane %v3437, 2
      %v3440 = vor.u32 %v3436, %v3439
      %v3441 = vsel %vm891, %v3431, %v3440
      %v3443 = vshrl.u32 %v3299, 16
      %v3445 = vrot.slane %v3443, 1
      %v3446 = vshll.u32 %v3299, 16
      %v3448 = vrot.slane %v3446, 2
      %v3449 = vor.u32 %v3445, %v3448
      %v3450 = vsel %vm891, %v3440, %v3449
      %v3482 = vunpack.c.l.b16 %v3301
      %v3483 = vunpack.c.l.b16 %v3302
      %v3484 = vunpack.c.l.b16 %v3303
      %v3485 = vunpack.c.l.b16 %v3304
      %v3486 = vunpack.c.l.b16 %v3305
      %v3487 = vunpack.c.l.b16 %v3306
      %v3488 = vunpack.c.l.b16 %v3307
      %v3489 = vunpack.c.l.b16 %v3308
      %v3490 = vunpack.c.l.b16 %v3309
      %v3491 = vunpack.c.l.b16 %v3310
      %v3492 = vunpack.c.l.b16 %v3311
      %v3493 = vunpack.c.l.b16 %v3312
      %v3494 = vunpack.c.l.b16 %v3313
      %v3495 = vunpack.c.l.b16 %v3314
      %v3496 = vunpack.c.l.b16 %v3315
      %v3497 = vunpack.c.l.b16 %v3316
      %v3498 = vpack.c.b16 %v3483, %v3482
      %v3499 = vpack.c.b16 %v3485, %v3484
      %v3500 = vpack.c.b16 %v3487, %v3486
      %v3501 = vpack.c.b16 %v3489, %v3488
      %v3502 = vpack.c.b16 %v3491, %v3490
      %v3503 = vpack.c.b16 %v3493, %v3492
      %v3504 = vpack.c.b16 %v3495, %v3494
      %v3505 = vpack.c.b16 %v3497, %v3496
      %3514 = vmatprep.subr.bf16.mxu0 0
      %3515 = vmatpush1.bf16.msra.mxu0 %v3498
      %3516 = vmatprep.subr.bf16.mxu0 0
      %3517 = vmatpush1.bf16.msra.mxu0 %v3499
      %3518 = vmatprep.subr.bf16.mxu0 0
      %3519 = vmatpush1.bf16.msra.mxu0 %v3500
      %3520 = vmatprep.subr.bf16.mxu0 0
      %3521 = vmatpush1.bf16.msra.mxu0 %v3501
      %3522 = vmatprep.subr.bf16.mxu0 0
      %3523 = vmatpush1.bf16.msra.mxu0 %v3502
      %3524 = vmatprep.subr.bf16.mxu0 0
      %3525 = vmatpush1.bf16.msra.mxu0 %v3503
      %3526 = vmatprep.subr.bf16.mxu0 0
      %3527 = vmatpush1.bf16.msra.mxu0 %v3504
      %3528 = vmatprep.subr.bf16.mxu0 0
      %3529 = vmatpush1.bf16.msra.mxu0 %v3505
      %3530 = vmatprep.subr.bf16.mxu0 0
      %3531 = vmatpush1.bf16.msra.mxu0 0
      %3532 = vmatprep.subr.bf16.mxu0 0
      %3533 = vmatpush1.bf16.msra.mxu0 0
      %3534 = vmatprep.subr.bf16.mxu0 0
      %3535 = vmatpush1.bf16.msra.mxu0 0
      %3536 = vmatprep.subr.bf16.mxu0 0
      %3537 = vmatpush1.bf16.msra.mxu0 0
      %3538 = vmatprep.subr.bf16.mxu0 0
      %3539 = vmatpush1.bf16.msra.mxu0 0
      %3540 = vmatprep.subr.bf16.mxu0 0
      %3541 = vmatpush1.bf16.msra.mxu0 0
      %3542 = vmatprep.subr.bf16.mxu0 0
      %3543 = vmatpush1.bf16.msra.mxu0 0
      %3544 = vmatprep.subr.bf16.mxu0 0
      %3545 = vmatpush1.bf16.msra.mxu0 0
      %3546 = vmatprep.mubr.bf16.mxu0 0
      %3547 = vmatmul.mubr.bf16.gmra.mrb[0].mxu0 %v3333
      %v3548 = vpop.f32.mrb[0].mxu0
      %v3549 = vadd.f32 0.0, %v3548
      %v3550 = vpop.f32.mrb[0].mxu0
      %v3551 = vpop.f32.mrb[0].mxu0
      %v3552 = vadd.f32 0.0, %v3551
      %v3553 = vpop.f32.mrb[0].mxu0
      %3554 = vmatprep.mubr.bf16.mxu0 0
      %3555 = vmatmul.mubr.bf16.gmra.mrb[0].mxu0 %v3342
      %v3556 = vpop.f32.mrb[0].mxu0
      %v3557 = vadd.f32 0.0, %v3556
      %v3558 = vpop.f32.mrb[0].mxu0
      %v3559 = vpop.f32.mrb[0].mxu0
      %v3560 = vadd.f32 0.0, %v3559
      %v3561 = vpop.f32.mrb[0].mxu0
      %3562 = vmatprep.mubr.bf16.mxu0 0
      %3563 = vmatmul.mubr.bf16.gmra.mrb[0].mxu0 %v3351
      %v3564 = vpop.f32.mrb[0].mxu0
      %v3565 = vadd.f32 0.0, %v3564
      %v3566 = vpop.f32.mrb[0].mxu0
      %v3567 = vpop.f32.mrb[0].mxu0
      %v3568 = vadd.f32 0.0, %v3567
      %v3569 = vpop.f32.mrb[0].mxu0
      %3570 = vmatprep.mubr.bf16.mxu0 0
      %3571 = vmatmul.mubr.bf16.gmra.mrb[0].mxu0 %v3360
      %v3572 = vpop.f32.mrb[0].mxu0
      %v3573 = vadd.f32 0.0, %v3572
      %v3574 = vpop.f32.mrb[0].mxu0
      %v3575 = vpop.f32.mrb[0].mxu0
      %v3576 = vadd.f32 0.0, %v3575
      %v3577 = vpop.f32.mrb[0].mxu0
      %3578 = vmatprep.mubr.bf16.mxu0 0
      %3579 = vmatmul.mubr.bf16.gmra.mrb[0].mxu0 %v3369
      %v3580 = vpop.f32.mrb[0].mxu0
      %v3581 = vadd.f32 0.0, %v3580
      %v3582 = vpop.f32.mrb[0].mxu0
      %v3583 = vpop.f32.mrb[0].mxu0
      %v3584 = vadd.f32 0.0, %v3583
      %v3585 = vpop.f32.mrb[0].mxu0
      %3586 = vmatprep.mubr.bf16.mxu0 0
      %3587 = vmatmul.mubr.bf16.gmra.mrb[0].mxu0 %v3378
      %v3588 = vpop.f32.mrb[0].mxu0
      %v3589 = vadd.f32 0.0, %v3588
      %v3590 = vpop.f32.mrb[0].mxu0
      %v3591 = vpop.f32.mrb[0].mxu0
      %v3592 = vadd.f32 0.0, %v3591
      %v3593 = vpop.f32.mrb[0].mxu0
      %3594 = vmatprep.mubr.bf16.mxu0 0
      %3595 = vmatmul.mubr.bf16.gmra.mrb[0].mxu0 %v3387
      %v3596 = vpop.f32.mrb[0].mxu0
      %v3597 = vadd.f32 0.0, %v3596
      %v3598 = vpop.f32.mrb[0].mxu0
      %v3599 = vpop.f32.mrb[0].mxu0
      %v3600 = vadd.f32 0.0, %v3599
      %v3601 = vpop.f32.mrb[0].mxu0
      %3602 = vmatprep.mubr.bf16.mxu0 0
      %3603 = vmatmul.mubr.bf16.gmra.mrb[0].mxu0 %v3396
      %v3604 = vpop.f32.mrb[0].mxu0
      %v3605 = vadd.f32 0.0, %v3604
      %v3606 = vpop.f32.mrb[0].mxu0
      %v3607 = vpop.f32.mrb[0].mxu0
      %v3608 = vadd.f32 0.0, %v3607
      %v3609 = vpop.f32.mrb[0].mxu0
      %3610 = vmatprep.mubr.bf16.mxu0 0
      %3611 = vmatmul.mubr.bf16.gmra.mrb[0].mxu0 %v3405
      %v3612 = vpop.f32.mrb[0].mxu0
      %v3613 = vadd.f32 0.0, %v3612
      %v3614 = vpop.f32.mrb[0].mxu0
      %v3615 = vpop.f32.mrb[0].mxu0
      %v3616 = vadd.f32 0.0, %v3615
      %v3617 = vpop.f32.mrb[0].mxu0
      %3618 = vmatprep.mubr.bf16.mxu0 0
      %3619 = vmatmul.mubr.bf16.gmra.mrb[0].mxu0 %v3414
      %v3620 = vpop.f32.mrb[0].mxu0
      %v3621 = vadd.f32 0.0, %v3620
      %v3622 = vpop.f32.mrb[0].mxu0
      %v3623 = vpop.f32.mrb[0].mxu0
      %v3624 = vadd.f32 0.0, %v3623
      %v3625 = vpop.f32.mrb[0].mxu0
      %3626 = vmatprep.mubr.bf16.mxu0 0
      %3627 = vmatmul.mubr.bf16.gmra.mrb[0].mxu0 %v3423
      %v3628 = vpop.f32.mrb[0].mxu0
      %v3629 = vadd.f32 0.0, %v3628
      %v3630 = vpop.f32.mrb[0].mxu0
      %v3631 = vpop.f32.mrb[0].mxu0
      %v3632 = vadd.f32 0.0, %v3631
      %v3633 = vpop.f32.mrb[0].mxu0
      %3634 = vmatprep.mubr.bf16.mxu0 0
      %3635 = vmatmul.mubr.bf16.gmra.mrb[0].mxu0 %v3432
      %v3636 = vpop.f32.mrb[0].mxu0
      %v3637 = vadd.f32 0.0, %v3636
      %v3638 = vpop.f32.mrb[0].mxu0
      %v3639 = vpop.f32.mrb[0].mxu0
      %v3640 = vadd.f32 0.0, %v3639
      %v3641 = vpop.f32.mrb[0].mxu0
      %3642 = vmatprep.mubr.bf16.mxu0 0
      %3643 = vmatmul.mubr.bf16.gmra.mrb[0].mxu0 %v3441
      %v3644 = vpop.f32.mrb[0].mxu0
      %v3645 = vadd.f32 0.0, %v3644
      %v3646 = vpop.f32.mrb[0].mxu0
      %v3647 = vpop.f32.mrb[0].mxu0
      %v3648 = vadd.f32 0.0, %v3647
      %v3649 = vpop.f32.mrb[0].mxu0
      %3650 = vmatprep.mubr.bf16.mxu0 0
      %3651 = vmatmul.mubr.bf16.gmra.mrb[0].mxu0 %v3450
      %v3652 = vpop.f32.mrb[0].mxu0
      %v3653 = vadd.f32 0.0, %v3652
      %v3654 = vpop.f32.mrb[0].mxu0
      %v3655 = vpop.f32.mrb[0].mxu0
      %v3656 = vadd.f32 0.0, %v3655
      %v3657 = vpop.f32.mrb[0].mxu0
      %3658 = vmatprep.mubr.bf16.mxu0 0
      %3659 = vmatmul.mubr.bf16.gmra.mrb[0].mxu0 %v3449
      %v3660 = vpop.f32.mrb[0].mxu0
      %v3661 = vadd.f32 0.0, %v3660
      %v3662 = vpop.f32.mrb[0].mxu0
      %v3663 = vpop.f32.mrb[0].mxu0
      %v3664 = vpop.f32.mrb[0].mxu0
      %3665 = vdwg.mxu0
      %v3682 = vunpack.c.l.b16 %v3283
      %v3683 = vunpack.c.l.b16 %v3284
      %v3684 = vunpack.c.l.b16 %v3285
      %v3685 = vunpack.c.l.b16 %v3286
      %v3686 = vunpack.c.l.b16 %v3287
      %v3687 = vunpack.c.l.b16 %v3288
      %v3688 = vunpack.c.l.b16 %v3289
      %v3689 = vunpack.c.l.b16 %v3290
      %v3690 = vunpack.c.l.b16 %v3291
      %v3691 = vunpack.c.l.b16 %v3292
      %v3692 = vunpack.c.l.b16 %v3293
      %v3693 = vunpack.c.l.b16 %v3294
      %v3694 = vunpack.c.l.b16 %v3295
      %v3695 = vunpack.c.l.b16 %v3296
      %v3696 = vunpack.c.l.b16 %v3297
      %v3697 = vunpack.c.l.b16 %v3298
      %v3698 = vpack.c.b16 %v3683, %v3682
      %v3699 = vpack.c.b16 %v3685, %v3684
      %v3700 = vpack.c.b16 %v3687, %v3686
      %v3701 = vpack.c.b16 %v3689, %v3688
      %v3702 = vpack.c.b16 %v3691, %v3690
      %v3703 = vpack.c.b16 %v3693, %v3692
      %v3704 = vpack.c.b16 %v3695, %v3694
      %v3705 = vpack.c.b16 %v3697, %v3696
      %3714 = vmatprep.subr.bf16.mxu0 0
      %3715 = vmatpush1.bf16.msra.mxu0 %v3698
      %3716 = vmatprep.subr.bf16.mxu0 0
      %3717 = vmatpush1.bf16.msra.mxu0 %v3699
      %3718 = vmatprep.subr.bf16.mxu0 0
      %3719 = vmatpush1.bf16.msra.mxu0 %v3700
      %3720 = vmatprep.subr.bf16.mxu0 0
      %3721 = vmatpush1.bf16.msra.mxu0 %v3701
      %3722 = vmatprep.subr.bf16.mxu0 0
      %3723 = vmatpush1.bf16.msra.mxu0 %v3702
      %3724 = vmatprep.subr.bf16.mxu0 0
      %3725 = vmatpush1.bf16.msra.mxu0 %v3703
      %3726 = vmatprep.subr.bf16.mxu0 0
      %3727 = vmatpush1.bf16.msra.mxu0 %v3704
      %3728 = vmatprep.subr.bf16.mxu0 0
      %3729 = vmatpush1.bf16.msra.mxu0 %v3705
      %3730 = vmatprep.subr.bf16.mxu0 0
      %3731 = vmatpush1.bf16.msra.mxu0 0
      %3732 = vmatprep.subr.bf16.mxu0 0
      %3733 = vmatpush1.bf16.msra.mxu0 0
      %3734 = vmatprep.subr.bf16.mxu0 0
      %3735 = vmatpush1.bf16.msra.mxu0 0
      %3736 = vmatprep.subr.bf16.mxu0 0
      %3737 = vmatpush1.bf16.msra.mxu0 0
      %3738 = vmatprep.subr.bf16.mxu0 0
      %3739 = vmatpush1.bf16.msra.mxu0 0
      %3740 = vmatprep.subr.bf16.mxu0 0
      %3741 = vmatpush1.bf16.msra.mxu0 0
      %3742 = vmatprep.subr.bf16.mxu0 0
      %3743 = vmatpush1.bf16.msra.mxu0 0
      %3744 = vmatprep.subr.bf16.mxu0 0
      %3745 = vmatpush1.bf16.msra.mxu0 0
      %3746 = vmatprep.mubr.bf16.mxu0 0
      %3747 = vmatmul.mubr.bf16.gmra.mrb[0].mxu0 %v3268
      %v3748 = vpop.f32.mrb[0].mxu0
      %v3749 = vadd.f32 %v3549, %v3748
      %v3750 = vpop.f32.mrb[0].mxu0
      %v3751 = vpop.f32.mrb[0].mxu0
      %v3752 = vadd.f32 %v3552, %v3751
      %v3753 = vpop.f32.mrb[0].mxu0
      %3754 = vmatprep.mubr.bf16.mxu0 0
      %3755 = vmatmul.mubr.bf16.gmra.mrb[0].mxu0 %v3269
      %v3756 = vpop.f32.mrb[0].mxu0
      %v3757 = vadd.f32 %v3557, %v3756
      %v3758 = vpop.f32.mrb[0].mxu0
      %v3759 = vpop.f32.mrb[0].mxu0
      %v3760 = vadd.f32 %v3560, %v3759
      %v3761 = vpop.f32.mrb[0].mxu0
      %3762 = vmatprep.mubr.bf16.mxu0 0
      %3763 = vmatmul.mubr.bf16.gmra.mrb[0].mxu0 %v3270
      %v3764 = vpop.f32.mrb[0].mxu0
      %v3765 = vadd.f32 %v3565, %v3764
      %v3766 = vpop.f32.mrb[0].mxu0
      %v3767 = vpop.f32.mrb[0].mxu0
      %v3768 = vadd.f32 %v3568, %v3767
      %v3769 = vpop.f32.mrb[0].mxu0
      %3770 = vmatprep.mubr.bf16.mxu0 0
      %3771 = vmatmul.mubr.bf16.gmra.mrb[0].mxu0 %v3271
      %v3772 = vpop.f32.mrb[0].mxu0
      %v3773 = vadd.f32 %v3573, %v3772
      %v3774 = vpop.f32.mrb[0].mxu0
      %v3775 = vpop.f32.mrb[0].mxu0
      %v3776 = vadd.f32 %v3576, %v3775
      %v3777 = vpop.f32.mrb[0].mxu0
      %3778 = vmatprep.mubr.bf16.mxu0 0
      %3779 = vmatmul.mubr.bf16.gmra.mrb[0].mxu0 %v3272
      %v3780 = vpop.f32.mrb[0].mxu0
      %v3781 = vadd.f32 %v3581, %v3780
      %v3782 = vpop.f32.mrb[0].mxu0
      %v3783 = vpop.f32.mrb[0].mxu0
      %v3784 = vadd.f32 %v3584, %v3783
      %v3785 = vpop.f32.mrb[0].mxu0
      %3786 = vmatprep.mubr.bf16.mxu0 0
      %3787 = vmatmul.mubr.bf16.gmra.mrb[0].mxu0 %v3273
      %v3788 = vpop.f32.mrb[0].mxu0
      %v3789 = vadd.f32 %v3589, %v3788
      %v3790 = vpop.f32.mrb[0].mxu0
      %v3791 = vpop.f32.mrb[0].mxu0
      %v3792 = vadd.f32 %v3592, %v3791
      %v3793 = vpop.f32.mrb[0].mxu0
      %3794 = vmatprep.mubr.bf16.mxu0 0
      %3795 = vmatmul.mubr.bf16.gmra.mrb[0].mxu0 %v3274
      %v3796 = vpop.f32.mrb[0].mxu0
      %v3797 = vadd.f32 %v3597, %v3796
      %v3798 = vpop.f32.mrb[0].mxu0
      %v3799 = vpop.f32.mrb[0].mxu0
      %v3800 = vadd.f32 %v3600, %v3799
      %v3801 = vpop.f32.mrb[0].mxu0
      %3802 = vmatprep.mubr.bf16.mxu0 0
      %3803 = vmatmul.mubr.bf16.gmra.mrb[0].mxu0 %v3275
      %v3804 = vpop.f32.mrb[0].mxu0
      %v3805 = vadd.f32 %v3605, %v3804
      %v3806 = vpop.f32.mrb[0].mxu0
      %v3807 = vpop.f32.mrb[0].mxu0
      %v3808 = vadd.f32 %v3608, %v3807
      %v3809 = vpop.f32.mrb[0].mxu0
      %3810 = vmatprep.mubr.bf16.mxu0 0
      %3811 = vmatmul.mubr.bf16.gmra.mrb[0].mxu0 %v3276
      %v3812 = vpop.f32.mrb[0].mxu0
      %v3813 = vadd.f32 %v3613, %v3812
      %v3814 = vpop.f32.mrb[0].mxu0
      %v3815 = vpop.f32.mrb[0].mxu0
      %v3816 = vadd.f32 %v3616, %v3815
      %v3817 = vpop.f32.mrb[0].mxu0
      %3818 = vmatprep.mubr.bf16.mxu0 0
      %3819 = vmatmul.mubr.bf16.gmra.mrb[0].mxu0 %v3277
      %v3820 = vpop.f32.mrb[0].mxu0
      %v3821 = vadd.f32 %v3621, %v3820
      %v3822 = vpop.f32.mrb[0].mxu0
      %v3823 = vpop.f32.mrb[0].mxu0
      %v3824 = vadd.f32 %v3624, %v3823
      %v3825 = vpop.f32.mrb[0].mxu0
      %3826 = vmatprep.mubr.bf16.mxu0 0
      %3827 = vmatmul.mubr.bf16.gmra.mrb[0].mxu0 %v3278
      %v3828 = vpop.f32.mrb[0].mxu0
      %v3829 = vadd.f32 %v3629, %v3828
      %v3830 = vpop.f32.mrb[0].mxu0
      %v3831 = vpop.f32.mrb[0].mxu0
      %v3832 = vadd.f32 %v3632, %v3831
      %v3833 = vpop.f32.mrb[0].mxu0
      %3834 = vmatprep.mubr.bf16.mxu0 0
      %3835 = vmatmul.mubr.bf16.gmra.mrb[0].mxu0 %v3279
      %v3836 = vpop.f32.mrb[0].mxu0
      %v3837 = vadd.f32 %v3637, %v3836
      %v3838 = vpop.f32.mrb[0].mxu0
      %v3839 = vpop.f32.mrb[0].mxu0
      %v3840 = vadd.f32 %v3640, %v3839
      %v3841 = vpop.f32.mrb[0].mxu0
      %3842 = vmatprep.mubr.bf16.mxu0 0
      %3843 = vmatmul.mubr.bf16.gmra.mrb[0].mxu0 %v3280
      %v3844 = vpop.f32.mrb[0].mxu0
      %v3845 = vadd.f32 %v3645, %v3844
      %v3846 = vpop.f32.mrb[0].mxu0
      %v3847 = vpop.f32.mrb[0].mxu0
      %v3848 = vadd.f32 %v3648, %v3847
      %v3849 = vpop.f32.mrb[0].mxu0
      %3850 = vmatprep.mubr.bf16.mxu0 0
      %3851 = vmatmul.mubr.bf16.gmra.mrb[0].mxu0 %v3281
      %v3852 = vpop.f32.mrb[0].mxu0
      %v3853 = vadd.f32 %v3653, %v3852
      %v3854 = vpop.f32.mrb[0].mxu0
      %v3855 = vpop.f32.mrb[0].mxu0
      %v3856 = vadd.f32 %v3656, %v3855
      %v3857 = vpop.f32.mrb[0].mxu0
      %3858 = vmatprep.mubr.bf16.mxu0 0
      %3859 = vmatmul.mubr.bf16.gmra.mrb[0].mxu0 %v3282
      %v3860 = vpop.f32.mrb[0].mxu0
      %v3861 = vadd.f32 %v3661, %v3860
      %v3862 = vpop.f32.mrb[0].mxu0
      %v3863 = vpop.f32.mrb[0].mxu0
      %v3864 = vpop.f32.mrb[0].mxu0
      %3865 = vdwg.mxu0
      %s3866 = scalar_lea.vmem %s7, 128
      %v3867 = vld [vmem:[%s3866] sm:$0xf]
      %v3868 = vld [vmem:[%s3866 + $0x4] sm:$0xf]
      %v3869 = vld [vmem:[%s3866 + $0x8] sm:$0xf]
      %v3870 = vld [vmem:[%s3866 + $0xc] sm:$0xf]
      %v3871 = vld [vmem:[%s3866 + $0x10] sm:$0xf]
      %v3872 = vld [vmem:[%s3866 + $0x14] sm:$0xf]
      %v3873 = vld [vmem:[%s3866 + $0x18] sm:$0xf]
      %v3874 = vld [vmem:[%s3866 + $0x1c] sm:$0xf]
      %v3875 = vld [vmem:[%s3866 + $0x20] sm:$0xf]
      %v3876 = vld [vmem:[%s3866 + $0x24] sm:$0xf]
      %v3877 = vld [vmem:[%s3866 + $0x28] sm:$0xf]
      %v3878 = vld [vmem:[%s3866 + $0x2c] sm:$0xf]
      %v3879 = vld [vmem:[%s3866 + $0x30] sm:$0xf]
      %v3880 = vld [vmem:[%s3866 + $0x34] sm:$0xf]
      %v3881 = vld [vmem:[%s3866 + $0x38] sm:$0xf]
      %v3882 = vld [vmem:[%s3866 + $0x3c] sm:$0xf]
      %v3898 = vrot.slane %v3268, 3
      %v3899 = vrot.slane %v3269, 3
      %v3900 = vsel %vm1501, %v3898, %v3899
      %v3901 = vrot.slane %v3270, 3
      %v3902 = vsel %vm1501, %v3899, %v3901
      %v3903 = vrot.slane %v3271, 3
      %v3904 = vsel %vm1501, %v3901, %v3903
      %v3905 = vrot.slane %v3272, 3
      %v3906 = vsel %vm1501, %v3903, %v3905
      %v3907 = vrot.slane %v3273, 3
      %v3908 = vsel %vm1501, %v3905, %v3907
      %v3909 = vrot.slane %v3274, 3
      %v3910 = vsel %vm1501, %v3907, %v3909
      %v3911 = vrot.slane %v3275, 3
      %v3912 = vsel %vm1501, %v3909, %v3911
      %v3913 = vrot.slane %v3276, 3
      %v3914 = vsel %vm1501, %v3911, %v3913
      %v3915 = vrot.slane %v3277, 3
      %v3916 = vsel %vm1501, %v3913, %v3915
      %v3917 = vrot.slane %v3278, 3
      %v3918 = vsel %vm1501, %v3915, %v3917
      %v3919 = vrot.slane %v3279, 3
      %v3920 = vsel %vm1501, %v3917, %v3919
      %v3921 = vrot.slane %v3280, 3
      %v3922 = vsel %vm1501, %v3919, %v3921
      %v3923 = vrot.slane %v3281, 3
      %v3924 = vsel %vm1501, %v3921, %v3923
      %v3925 = vrot.slane %v3299, 3
      %v3926 = vsel %vm1501, %v3923, %v3925
      %v3958 = vunpack.c.l.b16 %v3867
      %v3959 = vunpack.c.l.b16 %v3868
      %v3960 = vunpack.c.l.b16 %v3869
      %v3961 = vunpack.c.l.b16 %v3870
      %v3962 = vunpack.c.l.b16 %v3871
      %v3963 = vunpack.c.l.b16 %v3872
      %v3964 = vunpack.c.l.b16 %v3873
      %v3965 = vunpack.c.l.b16 %v3874
      %v3966 = vunpack.c.l.b16 %v3875
      %v3967 = vunpack.c.l.b16 %v3876
      %v3968 = vunpack.c.l.b16 %v3877
      %v3969 = vunpack.c.l.b16 %v3878
      %v3970 = vunpack.c.l.b16 %v3879
      %v3971 = vunpack.c.l.b16 %v3880
      %v3972 = vunpack.c.l.b16 %v3881
      %v3973 = vunpack.c.l.b16 %v3882
      %v3974 = vpack.c.b16 %v3959, %v3958
      %v3975 = vpack.c.b16 %v3961, %v3960
      %v3976 = vpack.c.b16 %v3963, %v3962
      %v3977 = vpack.c.b16 %v3965, %v3964
      %v3978 = vpack.c.b16 %v3967, %v3966
      %v3979 = vpack.c.b16 %v3969, %v3968
      %v3980 = vpack.c.b16 %v3971, %v3970
      %v3981 = vpack.c.b16 %v3973, %v3972
      %3990 = vmatprep.subr.bf16.mxu0 0
      %3991 = vmatpush1.bf16.msra.mxu0 %v3974
      %3992 = vmatprep.subr.bf16.mxu0 0
      %3993 = vmatpush1.bf16.msra.mxu0 %v3975
      %3994 = vmatprep.subr.bf16.mxu0 0
      %3995 = vmatpush1.bf16.msra.mxu0 %v3976
      %3996 = vmatprep.subr.bf16.mxu0 0
      %3997 = vmatpush1.bf16.msra.mxu0 %v3977
      %3998 = vmatprep.subr.bf16.mxu0 0
      %3999 = vmatpush1.bf16.msra.mxu0 %v3978
      %4000 = vmatprep.subr.bf16.mxu0 0
      %4001 = vmatpush1.bf16.msra.mxu0 %v3979
      %4002 = vmatprep.subr.bf16.mxu0 0
      %4003 = vmatpush1.bf16.msra.mxu0 %v3980
      %4004 = vmatprep.subr.bf16.mxu0 0
      %4005 = vmatpush1.bf16.msra.mxu0 %v3981
      %4006 = vmatprep.subr.bf16.mxu0 0
      %4007 = vmatpush1.bf16.msra.mxu0 0
      %4008 = vmatprep.subr.bf16.mxu0 0
      %4009 = vmatpush1.bf16.msra.mxu0 0
      %4010 = vmatprep.subr.bf16.mxu0 0
      %4011 = vmatpush1.bf16.msra.mxu0 0
      %4012 = vmatprep.subr.bf16.mxu0 0
      %4013 = vmatpush1.bf16.msra.mxu0 0
      %4014 = vmatprep.subr.bf16.mxu0 0
      %4015 = vmatpush1.bf16.msra.mxu0 0
      %4016 = vmatprep.subr.bf16.mxu0 0
      %4017 = vmatpush1.bf16.msra.mxu0 0
      %4018 = vmatprep.subr.bf16.mxu0 0
      %4019 = vmatpush1.bf16.msra.mxu0 0
      %4020 = vmatprep.subr.bf16.mxu0 0
      %4021 = vmatpush1.bf16.msra.mxu0 0
      %4022 = vmatprep.mubr.bf16.mxu0 0
      %4023 = vmatmul.mubr.bf16.gmra.mrb[0].mxu0 %v3900
      %v4024 = vpop.f32.mrb[0].mxu0
      %v4025 = vadd.f32 0.0, %v4024
      %v4026 = vpop.f32.mrb[0].mxu0
      %v4027 = vpop.f32.mrb[0].mxu0
      %v4028 = vadd.f32 0.0, %v4027
      %v4029 = vpop.f32.mrb[0].mxu0
      %4030 = vmatprep.mubr.bf16.mxu0 0
      %4031 = vmatmul.mubr.bf16.gmra.mrb[0].mxu0 %v3902
      %v4032 = vpop.f32.mrb[0].mxu0
      %v4033 = vadd.f32 0.0, %v4032
      %v4034 = vpop.f32.mrb[0].mxu0
      %v4035 = vpop.f32.mrb[0].mxu0
      %v4036 = vadd.f32 0.0, %v4035
      %v4037 = vpop.f32.mrb[0].mxu0
      %4038 = vmatprep.mubr.bf16.mxu0 0
      %4039 = vmatmul.mubr.bf16.gmra.mrb[0].mxu0 %v3904
      %v4040 = vpop.f32.mrb[0].mxu0
      %v4041 = vadd.f32 0.0, %v4040
      %v4042 = vpop.f32.mrb[0].mxu0
      %v4043 = vpop.f32.mrb[0].mxu0
      %v4044 = vadd.f32 0.0, %v4043
      %v4045 = vpop.f32.mrb[0].mxu0
      %4046 = vmatprep.mubr.bf16.mxu0 0
      %4047 = vmatmul.mubr.bf16.gmra.mrb[0].mxu0 %v3906
      %v4048 = vpop.f32.mrb[0].mxu0
      %v4049 = vadd.f32 0.0, %v4048
      %v4050 = vpop.f32.mrb[0].mxu0
      %v4051 = vpop.f32.mrb[0].mxu0
      %v4052 = vadd.f32 0.0, %v4051
      %v4053 = vpop.f32.mrb[0].mxu0
      %4054 = vmatprep.mubr.bf16.mxu0 0
      %4055 = vmatmul.mubr.bf16.gmra.mrb[0].mxu0 %v3908
      %v4056 = vpop.f32.mrb[0].mxu0
      %v4057 = vadd.f32 0.0, %v4056
      %v4058 = vpop.f32.mrb[0].mxu0
      %v4059 = vpop.f32.mrb[0].mxu0
      %v4060 = vadd.f32 0.0, %v4059
      %v4061 = vpop.f32.mrb[0].mxu0
      %4062 = vmatprep.mubr.bf16.mxu0 0
      %4063 = vmatmul.mubr.bf16.gmra.mrb[0].mxu0 %v3910
      %v4064 = vpop.f32.mrb[0].mxu0
      %v4065 = vadd.f32 0.0, %v4064
      %v4066 = vpop.f32.mrb[0].mxu0
      %v4067 = vpop.f32.mrb[0].mxu0
      %v4068 = vadd.f32 0.0, %v4067
      %v4069 = vpop.f32.mrb[0].mxu0
      %4070 = vmatprep.mubr.bf16.mxu0 0
      %4071 = vmatmul.mubr.bf16.gmra.mrb[0].mxu0 %v3912
      %v4072 = vpop.f32.mrb[0].mxu0
      %v4073 = vadd.f32 0.0, %v4072
      %v4074 = vpop.f32.mrb[0].mxu0
      %v4075 = vpop.f32.mrb[0].mxu0
      %v4076 = vadd.f32 0.0, %v4075
      %v4077 = vpop.f32.mrb[0].mxu0
      %4078 = vmatprep.mubr.bf16.mxu0 0
      %4079 = vmatmul.mubr.bf16.gmra.mrb[0].mxu0 %v3914
      %v4080 = vpop.f32.mrb[0].mxu0
      %v4081 = vadd.f32 0.0, %v4080
      %v4082 = vpop.f32.mrb[0].mxu0
      %v4083 = vpop.f32.mrb[0].mxu0
      %v4084 = vadd.f32 0.0, %v4083
      %v4085 = vpop.f32.mrb[0].mxu0
      %4086 = vmatprep.mubr.bf16.mxu0 0
      %4087 = vmatmul.mubr.bf16.gmra.mrb[0].mxu0 %v3916
      %v4088 = vpop.f32.mrb[0].mxu0
      %v4089 = vadd.f32 0.0, %v4088
      %v4090 = vpop.f32.mrb[0].mxu0
      %v4091 = vpop.f32.mrb[0].mxu0
      %v4092 = vadd.f32 0.0, %v4091
      %v4093 = vpop.f32.mrb[0].mxu0
      %4094 = vmatprep.mubr.bf16.mxu0 0
      %4095 = vmatmul.mubr.bf16.gmra.mrb[0].mxu0 %v3918
      %v4096 = vpop.f32.mrb[0].mxu0
      %v4097 = vadd.f32 0.0, %v4096
      %v4098 = vpop.f32.mrb[0].mxu0
      %v4099 = vpop.f32.mrb[0].mxu0
      %v4100 = vadd.f32 0.0, %v4099
      %v4101 = vpop.f32.mrb[0].mxu0
      %4102 = vmatprep.mubr.bf16.mxu0 0
      %4103 = vmatmul.mubr.bf16.gmra.mrb[0].mxu0 %v3920
      %v4104 = vpop.f32.mrb[0].mxu0
      %v4105 = vadd.f32 0.0, %v4104
      %v4106 = vpop.f32.mrb[0].mxu0
      %v4107 = vpop.f32.mrb[0].mxu0
      %v4108 = vadd.f32 0.0, %v4107
      %v4109 = vpop.f32.mrb[0].mxu0
      %4110 = vmatprep.mubr.bf16.mxu0 0
      %4111 = vmatmul.mubr.bf16.gmra.mrb[0].mxu0 %v3922
      %v4112 = vpop.f32.mrb[0].mxu0
      %v4113 = vadd.f32 0.0, %v4112
      %v4114 = vpop.f32.mrb[0].mxu0
      %v4115 = vpop.f32.mrb[0].mxu0
      %v4116 = vadd.f32 0.0, %v4115
      %v4117 = vpop.f32.mrb[0].mxu0
      %4118 = vmatprep.mubr.bf16.mxu0 0
      %4119 = vmatmul.mubr.bf16.gmra.mrb[0].mxu0 %v3924
      %v4120 = vpop.f32.mrb[0].mxu0
      %v4121 = vadd.f32 0.0, %v4120
      %v4122 = vpop.f32.mrb[0].mxu0
      %v4123 = vpop.f32.mrb[0].mxu0
      %v4124 = vadd.f32 0.0, %v4123
      %v4125 = vpop.f32.mrb[0].mxu0
      %4126 = vmatprep.mubr.bf16.mxu0 0
      %4127 = vmatmul.mubr.bf16.gmra.mrb[0].mxu0 %v3926
      %v4128 = vpop.f32.mrb[0].mxu0
      %v4129 = vadd.f32 0.0, %v4128
      %v4130 = vpop.f32.mrb[0].mxu0
      %v4131 = vpop.f32.mrb[0].mxu0
      %v4132 = vadd.f32 0.0, %v4131
      %v4133 = vpop.f32.mrb[0].mxu0
      %4134 = vmatprep.mubr.bf16.mxu0 0
      %4135 = vmatmul.mubr.bf16.gmra.mrb[0].mxu0 %v3925
      %v4136 = vpop.f32.mrb[0].mxu0
      %v4137 = vadd.f32 0.0, %v4136
      %v4138 = vpop.f32.mrb[0].mxu0
      %v4139 = vpop.f32.mrb[0].mxu0
      %v4140 = vpop.f32.mrb[0].mxu0
      %4141 = vdwg.mxu0
      %v4142 = vadd.f32 %v3749, %v4025
      %v4143 = vadd.f32 %v3752, %v4028
      %v4144 = vadd.f32 %v3757, %v4033
      %v4145 = vadd.f32 %v3760, %v4036
      %v4146 = vadd.f32 %v3765, %v4041
      %v4147 = vadd.f32 %v3768, %v4044
      %v4148 = vadd.f32 %v3773, %v4049
      %v4149 = vadd.f32 %v3776, %v4052
      %v4150 = vadd.f32 %v3781, %v4057
      %v4151 = vadd.f32 %v3784, %v4060
      %v4152 = vadd.f32 %v3789, %v4065
      %v4153 = vadd.f32 %v3792, %v4068
      %v4154 = vadd.f32 %v3797, %v4073
      %v4155 = vadd.f32 %v3800, %v4076
      %v4156 = vadd.f32 %v3805, %v4081
      %v4157 = vadd.f32 %v3808, %v4084
      %v4158 = vadd.f32 %v3813, %v4089
      %v4159 = vadd.f32 %v3816, %v4092
      %v4160 = vadd.f32 %v3821, %v4097
      %v4161 = vadd.f32 %v3824, %v4100
      %v4162 = vadd.f32 %v3829, %v4105
      %v4163 = vadd.f32 %v3832, %v4108
      %v4164 = vadd.f32 %v3837, %v4113
      %v4165 = vadd.f32 %v3840, %v4116
      %v4166 = vadd.f32 %v3845, %v4121
      %v4167 = vadd.f32 %v3848, %v4124
      %v4168 = vadd.f32 %v3853, %v4129
      %v4169 = vadd.f32 %v3856, %v4132
      %v4170 = vadd.f32 %v3861, %v4137
      %v4171 = vld [vmem:[%s8] sm:$0x1]
      %v4173 = vlaneseq
      %v4174 = vshrl.u32 %v4173, 7
      %v4175 = vsub.s32 0, %v4174
      %v4176 = vrot.slane %v4171, %v4175
      %v4178 = vadd.f32 %v4142, %v4176
      %v4179 = vadd.f32 %v4143, %v4176
      %v4180 = vadd.f32 %v4144, %v4176
      %v4181 = vadd.f32 %v4145, %v4176
      %v4182 = vadd.f32 %v4146, %v4176
      %v4183 = vadd.f32 %v4147, %v4176
      %v4184 = vadd.f32 %v4148, %v4176
      %v4185 = vadd.f32 %v4149, %v4176
      %v4186 = vadd.f32 %v4150, %v4176
      %v4187 = vadd.f32 %v4151, %v4176
      %v4188 = vadd.f32 %v4152, %v4176
      %v4189 = vadd.f32 %v4153, %v4176
      %v4190 = vadd.f32 %v4154, %v4176
      %v4191 = vadd.f32 %v4155, %v4176
      %v4192 = vadd.f32 %v4156, %v4176
      %v4193 = vadd.f32 %v4157, %v4176
      %v4194 = vadd.f32 %v4158, %v4176
      %v4195 = vadd.f32 %v4159, %v4176
      %v4196 = vadd.f32 %v4160, %v4176
      %v4197 = vadd.f32 %v4161, %v4176
      %v4198 = vadd.f32 %v4162, %v4176
      %v4199 = vadd.f32 %v4163, %v4176
      %v4200 = vadd.f32 %v4164, %v4176
      %v4201 = vadd.f32 %v4165, %v4176
      %v4202 = vadd.f32 %v4166, %v4176
      %v4203 = vadd.f32 %v4167, %v4176
      %v4204 = vadd.f32 %v4168, %v4176
      %v4205 = vadd.f32 %v4169, %v4176
      %v4206 = vadd.f32 %v4170, %v4176
      %v4237 = vrot.slane %v3148, 3
      %v4238 = vrot.slane %v3149, 3
      %v4239 = vsel %vm1857, %v4237, %v4238
      %v4240 = vrot.slane %v3150, 3
      %v4241 = vsel %vm1857, %v4238, %v4240
      %v4242 = vrot.slane %v3151, 3
      %v4243 = vsel %vm1857, %v4240, %v4242
      %v4244 = vrot.slane %v3152, 3
      %v4245 = vsel %vm1857, %v4242, %v4244
      %v4246 = vrot.slane %v3153, 3
      %v4247 = vsel %vm1857, %v4244, %v4246
      %v4248 = vrot.slane %v3154, 3
      %v4249 = vsel %vm1857, %v4246, %v4248
      %v4250 = vrot.slane %v3155, 3
      %v4251 = vsel %vm1857, %v4248, %v4250
      %v4252 = vrot.slane %v3156, 3
      %v4253 = vsel %vm1857, %v4250, %v4252
      %v4254 = vrot.slane %v3157, 3
      %v4255 = vsel %vm1857, %v4252, %v4254
      %v4256 = vrot.slane %v3158, 3
      %v4257 = vsel %vm1857, %v4254, %v4256
      %v4258 = vrot.slane %v3159, 3
      %v4259 = vsel %vm1857, %v4256, %v4258
      %v4260 = vrot.slane %v3160, 3
      %v4261 = vsel %vm1857, %v4258, %v4260
      %v4262 = vrot.slane %v3161, 3
      %v4263 = vsel %vm1857, %v4260, %v4262
      %v4264 = vrot.slane %v3162, 3
      %v4265 = vsel %vm1857, %v4262, %v4264
      %v4266 = vrot.slane %v3163, 3
      %v4267 = vsel %vm1857, %v4264, %v4266
      %v4268 = vrot.slane %v3164, 3
      %v4269 = vsel %vm1857, %v4266, %v4268
      %v4270 = vrot.slane %v3165, 3
      %v4271 = vsel %vm1857, %v4268, %v4270
      %v4272 = vrot.slane %v3166, 3
      %v4273 = vsel %vm1857, %v4270, %v4272
      %v4274 = vrot.slane %v3167, 3
      %v4275 = vsel %vm1857, %v4272, %v4274
      %v4276 = vrot.slane %v3168, 3
      %v4277 = vsel %vm1857, %v4274, %v4276
      %v4278 = vrot.slane %v3169, 3
      %v4279 = vsel %vm1857, %v4276, %v4278
      %v4280 = vrot.slane %v3170, 3
      %v4281 = vsel %vm1857, %v4278, %v4280
      %v4282 = vrot.slane %v3171, 3
      %v4283 = vsel %vm1857, %v4280, %v4282
      %v4284 = vrot.slane %v3172, 3
      %v4285 = vsel %vm1857, %v4282, %v4284
      %v4286 = vrot.slane %v3173, 3
      %v4287 = vsel %vm1857, %v4284, %v4286
      %v4288 = vrot.slane %v3174, 3
      %v4289 = vsel %vm1857, %v4286, %v4288
      %v4290 = vrot.slane %v3175, 3
      %v4291 = vsel %vm1857, %v4288, %v4290
      %v4292 = vrot.slane %v3176, 3
      %v4293 = vsel %vm1857, %v4290, %v4292
      %v4294 = vrot.slane %v3177, 3
      %v4295 = vsel %vm1857, %v4292, %v4294
      %v4325 = vadd.f32 %v4178, %v4239
      %v4326 = vadd.f32 %v4179, %v4241
      %v4327 = vadd.f32 %v4180, %v4243
      %v4328 = vadd.f32 %v4181, %v4245
      %v4329 = vadd.f32 %v4182, %v4247
      %v4330 = vadd.f32 %v4183, %v4249
      %v4331 = vadd.f32 %v4184, %v4251
      %v4332 = vadd.f32 %v4185, %v4253
      %v4333 = vadd.f32 %v4186, %v4255
      %v4334 = vadd.f32 %v4187, %v4257
      %v4335 = vadd.f32 %v4188, %v4259
      %v4336 = vadd.f32 %v4189, %v4261
      %v4337 = vadd.f32 %v4190, %v4263
      %v4338 = vadd.f32 %v4191, %v4265
      %v4339 = vadd.f32 %v4192, %v4267
      %v4340 = vadd.f32 %v4193, %v4269
      %v4341 = vadd.f32 %v4194, %v4271
      %v4342 = vadd.f32 %v4195, %v4273
      %v4343 = vadd.f32 %v4196, %v4275
      %v4344 = vadd.f32 %v4197, %v4277
      %v4345 = vadd.f32 %v4198, %v4279
      %v4346 = vadd.f32 %v4199, %v4281
      %v4347 = vadd.f32 %v4200, %v4283
      %v4348 = vadd.f32 %v4201, %v4285
      %v4349 = vadd.f32 %v4202, %v4287
      %v4350 = vadd.f32 %v4203, %v4289
      %v4351 = vadd.f32 %v4204, %v4291
      %v4352 = vadd.f32 %v4205, %v4293
      %v4353 = vadd.f32 %v4206, %v4295
      %v4354 = vld [vmem:[%s9] sm:$0xff]
      %v4355 = vld [vmem:[%s9 + $0x8] sm:$0xff]
      %vm4356 = vcmask 850944
      %v4358 = vsel %vm4356, %v4355, 0
      %4360 = vmatprep.subr.mxu0 0.0
      %4361 = vmatpush1.msra.mxu0 %v4325
      %4362 = vmatprep.subr.mxu0 0.0
      %4363 = vmatpush1.msra.mxu0 %v4326
      %4364 = vmatprep.subr.mxu0 0.0
      %4365 = vmatpush1.msra.mxu0 %v4327
      %4366 = vmatprep.subr.mxu0 0.0
      %4367 = vmatpush1.msra.mxu0 %v4328
      %4368 = vmatprep.subr.mxu0 0.0
      %4369 = vmatpush1.msra.mxu0 %v4329
      %4370 = vmatprep.subr.mxu0 0.0
      %4371 = vmatpush1.msra.mxu0 %v4330
      %4372 = vmatprep.subr.mxu0 0.0
      %4373 = vmatpush1.msra.mxu0 %v4331
      %4374 = vmatprep.subr.mxu0 0.0
      %4375 = vmatpush1.msra.mxu0 %v4332
      %4376 = vmatprep.subr.mxu0 0.0
      %4377 = vmatpush1.msra.mxu0 %v4333
      %4378 = vmatprep.subr.mxu0 0.0
      %4379 = vmatpush1.msra.mxu0 %v4334
      %4380 = vmatprep.subr.mxu0 0.0
      %4381 = vmatpush1.msra.mxu0 %v4335
      %4382 = vmatprep.subr.mxu0 0.0
      %4383 = vmatpush1.msra.mxu0 %v4336
      %4384 = vmatprep.subr.mxu0 0.0
      %4385 = vmatpush1.msra.mxu0 %v4337
      %4386 = vmatprep.subr.mxu0 0.0
      %4387 = vmatpush1.msra.mxu0 %v4338
      %4388 = vmatprep.subr.mxu0 0.0
      %4389 = vmatpush1.msra.mxu0 %v4339
      %4390 = vmatprep.subr.mxu0 0.0
      %4391 = vmatpush1.msra.mxu0 %v4340
      %4392 = vmatprep.subr.mxu0 0.0
      %4393 = vmatpush1.msra.mxu0 %v4341
      %4394 = vmatprep.subr.mxu0 0.0
      %4395 = vmatpush1.msra.mxu0 %v4342
      %4396 = vmatprep.subr.mxu0 0.0
      %4397 = vmatpush1.msra.mxu0 %v4343
      %4398 = vmatprep.subr.mxu0 0.0
      %4399 = vmatpush1.msra.mxu0 %v4344
      %4400 = vmatprep.subr.mxu0 0.0
      %4401 = vmatpush1.msra.mxu0 %v4345
      %4402 = vmatprep.subr.mxu0 0.0
      %4403 = vmatpush1.msra.mxu0 %v4346
      %4404 = vmatprep.subr.mxu0 0.0
      %4405 = vmatpush1.msra.mxu0 %v4347
      %4406 = vmatprep.subr.mxu0 0.0
      %4407 = vmatpush1.msra.mxu0 %v4348
      %4408 = vmatprep.subr.mxu0 0.0
      %4409 = vmatpush1.msra.mxu0 %v4349
      %4410 = vmatprep.subr.mxu0 0.0
      %4411 = vmatpush1.msra.mxu0 %v4350
      %4412 = vmatprep.subr.mxu0 0.0
      %4413 = vmatpush1.msra.mxu0 %v4351
      %4414 = vmatprep.subr.mxu0 0.0
      %4415 = vmatpush1.msra.mxu0 %v4352
      %4416 = vmatprep.subr.mxu0 0.0
      %4417 = vmatpush1.msra.mxu0 %v4353
      %4418 = vmatprep.subr.mxu0 0.0
      %4419 = vmatpush1.msra.mxu0 0.0
      %4420 = vmatprep.subr.mxu0 0.0
      %4421 = vmatpush1.msra.mxu0 0.0
      %4422 = vmatprep.subr.mxu0 0.0
      %4423 = vmatpush1.msra.mxu0 0.0
      %4424 = vmatprep.mubr.f32.mxu0 %v4358
      %4425 = vmatmul.mubr.f32.gmra.mrb[0].mxu0 %v4354
      %v4426 = vpop.f32.mrb[0].mxu0
      %v4427 = vadd.f32 0.0, %v4426
      %v4428 = vpop.f32.mrb[0].mxu0
      %4429 = vdwg.mxu0
      %4430 = vst [vmem:[%s359] sm:$0xff] %v4427
      %p4431 = scmp.lt.s32.totalorder %s21, 1
      %s4432 = scalar_select %p4431, %s21, 1
      %s4433 = smul.addr %s4432, 8
      %s4434 = scalar_lea.vmem %s10, %s4433
      // Predicated region
      $region61: #{mapping_net_forward.1} parent=59 // pred_check
        %p4435 = pneg %p254
      $region62: #{mapping_net_forward.1} parent=59 // pred_check_branch
        %4437 = sbr.rel (%p4435) target = $region64
      $region63: #{mapping_net_forward.1} parent=59 // pred_region
        _
      $region64: #{mapping_net_forward.1} parent=59 // pred_fallthru
        _
    $region60: #{mapping_net_forward.1} parent=5 // pred_fallthru
      _
    %p4438 = scmp.le.s32.totalorder 2, %s16
    // Predicated region
    $region65: #{mapping_net_forward.1} parent=5 // pred_check
      %p4439 = pneg %p4438
    $region66: #{mapping_net_forward.1} parent=5 // pred_check_branch
      %4441 = sbr.rel (%p4439) target = $region68
    $region67: #{mapping_net_forward.1} parent=5 // pred_region
      %s4442 = ssub.s32 %s16, 2
      // Predicated region
      $region69: #{mapping_net_forward.1} parent=67 // pred_check
        %p4443 = pneg %p260
      $region70: #{mapping_net_forward.1} parent=67 // pred_check_branch
        %4445 = sbr.rel (%p4443) target = $region72
      $region71: #{mapping_net_forward.1} parent=67 // pred_region
        %p4446 = scmp.lt.s32.totalorder %s22, 1
        %s4447 = scalar_select %p4446, %s22, 1
        %s4448 = smul.addr %s4447, 8
        %s4449 = scalar_lea.vmem %s10, %s4448
      $region72: #{mapping_net_forward.1} parent=67 // pred_fallthru
        _
    $region68: #{mapping_net_forward.1} parent=5 // pred_fallthru
      _
  $region6: #{mapping_net_forward.1} parent=0 // loop_footer
    %s20 = sadd.s32 1, %s16
  $region7: #{mapping_net_forward.1} parent=0 // loop_footer_branch
    %15 = sbr.rel target = $region3
  $region8: #{mapping_net_forward.1} parent=0 // loop_exit
    _

</llo_original>
